<compile_context>
chip_gen: v5e
topology: v5e:2x2
jax: 0.10.0
libtpu: 0.0.40
codegen_flags: <defaults>
</compile_context>

<pallas_src>
import jax
import jax.numpy as jnp
import numpy as np
from jax.experimental import pallas as pl
from jax.experimental.pallas import tpu as pltpu


def ntn_kernel(x1_ref, x2_ref, a1_ref, t2_ref, c_ref, o_ref):
    """One batch tile, everything resident in VMEM.

    x1:(tb,in1)  x2:(tb,in2)
    a1:(in1, K+out) f32  = [Wr | v1],  K = out*in2,  Wr[i, k*in2+j] = W[k,i,j]
    t2:(in2, K)     bf16 = 0/1 selector, (x2 @ t2)[b, k*in2+j] = x2[b, j]
    c :(pad, out)   f32  = rows [0:K]      R (0/1 reducer, R[k*in2+j, k'] = (k==k'))
                           rows [K:K+in2]  v2
                           row  [K+in2]    bias   (rest zero pad)
    o :(tb, out)
    """
    f32 = jnp.float32
    hi = jax.lax.Precision.HIGHEST       # keep f32 activations exact through the MXU

    in2 = x2_ref.shape[1]
    K = t2_ref.shape[1]                  # out * in2

    x1 = x1_ref[...]                     # (tb, in1)
    x2 = x2_ref[...]                     # (tb, in2)

    # --- contract over in1 first (also yields the x1-half of the Linear term) ---
    y1 = jnp.dot(x1, a1_ref[...], preferred_element_type=f32, precision=hi)   # (tb, K+out)
    g = y1[:, :K]                        # (tb, K)   lane slice at a 128-multiple -> free
    lin1 = y1[:, K:]                     # (tb, out)

    # --- lane-tile x2 via the bf16 0/1 selector (exact selection under HIGHEST) ---
    x2t = jnp.dot(x2, t2_ref[...].astype(f32), preferred_element_type=f32,
                  precision=hi)          # (tb, K)
    h = g * x2t                          # (tb, K)   VPU

    # --- block-reduce + x2-half of Linear + bias, then tanh (EUP) ---
    z = jnp.dot(h, c_ref[0:K, :], preferred_element_type=f32, precision=hi)
    z = z + jnp.dot(x2, c_ref[K:K + in2, :], preferred_element_type=f32, precision=hi)
    z = z + lin1 + c_ref[K + in2:K + in2 + 1, :]
    o_ref[...] = jnp.tanh(z)


def prepare_ntn_params(w_bil, w_lin, b_lin):
    """One-time parameter preparation — keep OUTSIDE the per-call hot path.

    w_bil:(out,in1,in2)  w_lin:(out,in1+in2)  b_lin:(out,)
    Returns (a1, t2, c) as described in ntn_kernel's docstring.
    """
    w_bil = np.asarray(w_bil, np.float32)
    w_lin = np.asarray(w_lin, np.float32)
    b_lin = np.asarray(b_lin, np.float32)
    out_f, in1, in2 = w_bil.shape
    K = out_f * in2
    l = np.arange(K)

    # [Wr | v1]   (real weights -> keep f32)
    wr = np.transpose(w_bil, (1, 0, 2)).reshape(in1, K)      # Wr[i, k*in2+j] = W[k,i,j]
    v1 = w_lin[:, :in1].T                                    # (in1, out)
    a1 = np.concatenate([wr, v1], axis=1)                    # (in1, K+out)

    # 0/1 selector — exact in bf16, halves its DMA payload; cast to f32 in-kernel.
    t2 = np.zeros((in2, K), np.float32)
    t2[l % in2, l] = 1.0                                     # (x2@t2)[b, k*in2+j] = x2[b, j]

    # Packed small constants (R reducer, v2, bias) -> one array, one DMA descriptor.
    rows = K + in2 + 1
    rows_pad = ((rows + 7) // 8) * 8
    c = np.zeros((rows_pad, out_f), np.float32)
    c[l, l // in2] = 1.0                                     # R[k*in2+j, k] = 1
    c[K:K + in2] = w_lin[:, in1:].T                          # v2
    c[K + in2] = b_lin                                       # bias

    return (jnp.asarray(a1),
            jnp.asarray(t2, dtype=jnp.bfloat16),
            jnp.asarray(c))


@jax.jit
def neural_tensor_layer(x1, x2, a1, t2, c):
    """Hot path: one pallas_call, batch-tiled grid (single tile at small B)."""
    B, in1 = x1.shape
    in2 = x2.shape[1]
    out_f = c.shape[1]

    # Batch tile: whole batch when small; 256-row tiles once B grows, so the "parallel"
    # grid axis can be sharded across v7x's two TensorCores while the fat intermediates
    # (y1/x2t/h ~= 3 * tb * K * 4 B) stay well inside the 32 MiB scoped-VMEM default.
    tb = B if B <= 256 else 256
    assert B % tb == 0, "pad the batch to a multiple of 256 for the tiled path"

    return pl.pallas_call(
        ntn_kernel,
        out_shape=jax.ShapeDtypeStruct((B, out_f), jnp.float32),
        grid=(B // tb,),
        in_specs=[
            pl.BlockSpec((tb, in1), lambda i: (i, 0)),
            pl.BlockSpec((tb, in2), lambda i: (i, 0)),
            # Constants: constant index_map -> fetched once, VMEM-resident across tiles.
            pl.BlockSpec(a1.shape, lambda i: (0, 0)),
            pl.BlockSpec(t2.shape, lambda i: (0, 0)),
            pl.BlockSpec(c.shape, lambda i: (0, 0)),
        ],
        out_specs=pl.BlockSpec((tb, out_f), lambda i: (i, 0)),
        compiler_params=pltpu.CompilerParams(dimension_semantics=("parallel",)),
    )(x1, x2, a1, t2, c)


if __name__ == "__main__":
    B, IN1, IN2, OUT = 8, 32, 32, 16

    key = jax.random.PRNGKey(0)
    k1, k2, kw, kl, kb = jax.random.split(key, 5)

    x1 = jax.random.normal(k1, (B, IN1), dtype=jnp.float32)
    x2 = jax.random.normal(k2, (B, IN2), dtype=jnp.float32)

    # Deterministic parameter init (shapes per torch.nn.Bilinear / Linear).
    bound_bil = 1.0 / np.sqrt(IN1)
    w_bil = jax.random.uniform(kw, (OUT, IN1, IN2), jnp.float32, -bound_bil, bound_bil)
    bound_lin = 1.0 / np.sqrt(IN1 + IN2)
    w_lin = jax.random.uniform(kl, (OUT, IN1 + IN2), jnp.float32, -bound_lin, bound_lin)
    b_lin = jax.random.uniform(kb, (OUT,), jnp.float32, -bound_lin, bound_lin)

    # One-time prep (outside the hot path), then the single-kernel forward.
    params = prepare_ntn_params(w_bil, w_lin, b_lin)
    out = jax.block_until_ready(neural_tensor_layer(x1, x2, *params))

    # Independent float64 reference (avoids comparing against a default-precision TPU einsum).
    x1n = np.asarray(x1, np.float64)
    x2n = np.asarray(x2, np.float64)
    z_ref = (np.einsum('bi,kij,bj->bk', x1n, np.asarray(w_bil, np.float64), x2n)
             + np.concatenate([x1n, x2n], axis=1) @ np.asarray(w_lin, np.float64).T
             + np.asarray(b_lin, np.float64))
    ref = np.tanh(z_ref)

    np.testing.assert_allclose(np.asarray(out, np.float64), ref, rtol=1e-4, atol=1e-4)
    print("KERNEL_OK")
</pallas_src>

<mosaic_0001>
module attributes {stable_mosaic.version = 11 : i64} {
  func.func @ntn_kernel(%arg0: i32, %arg1: memref<8x32xf32, #tpu.memory_space<vmem>>, %arg2: memref<8x32xf32, #tpu.memory_space<vmem>>, %arg3: memref<32x528xf32, #tpu.memory_space<vmem>>, %arg4: memref<32x512xbf16, #tpu.memory_space<vmem>>, %arg5: memref<552x16xf32, #tpu.memory_space<vmem>>, %arg6: memref<8x16xf32, #tpu.memory_space<vmem>>) attributes {dimension_semantics = [#tpu.dimension_semantics<parallel>], iteration_bounds = array<i64: 1>, scalar_prefetch = 0 : i64, scratch_operands = 0 : i64, tpu.core_type = #tpu.core_type<tc>, window_params = [{transform_indices = @transform_0, window_bounds = array<i64: 8, 32>}, {transform_indices = @transform_1, window_bounds = array<i64: 8, 32>}, {pipeline_mode = #tpu.pipeline_mode<synchronous>, transform_indices = @transform_2, window_bounds = array<i64: 32, 528>}, {pipeline_mode = #tpu.pipeline_mode<synchronous>, transform_indices = @transform_3, window_bounds = array<i64: 32, 512>}, {pipeline_mode = #tpu.pipeline_mode<synchronous>, transform_indices = @transform_4, window_bounds = array<i64: 552, 16>}, {transform_indices = @transform_5, window_bounds = array<i64: 8, 16>}]} {
    %c0 = arith.constant 0 : index
    %c0_0 = arith.constant 0 : index
    %0 = vector.load %arg1[%c0, %c0_0] : memref<8x32xf32, #tpu.memory_space<vmem>>, vector<8x32xf32>
    %c0_1 = arith.constant 0 : index
    %c0_2 = arith.constant 0 : index
    %1 = vector.load %arg2[%c0_1, %c0_2] : memref<8x32xf32, #tpu.memory_space<vmem>>, vector<8x32xf32>
    %c0_3 = arith.constant 0 : index
    %c0_4 = arith.constant 0 : index
    %2 = vector.load %arg3[%c0_3, %c0_4] : memref<32x528xf32, #tpu.memory_space<vmem>>, vector<32x528xf32>
    %cst = arith.constant dense<0.000000e+00> : vector<8x528xf32>
    %3 = tpu.matmul %0, %2, %cst {dimension_numbers = #tpu.dot_dimension_numbers<[1], [0], [0], [1], [0, 0, 1, 1], [], []>, precision = #tpu.contract_precision<fp32>} : vector<8x32xf32>, vector<32x528xf32>, vector<8x528xf32> -> vector<8x528xf32>
    %4 = vector.extract_strided_slice %3 {offsets = [0, 0], sizes = [8, 512], strides = [1, 1]} : vector<8x528xf32> to vector<8x512xf32>
    %5 = vector.extract_strided_slice %3 {offsets = [0, 512], sizes = [8, 16], strides = [1, 1]} : vector<8x528xf32> to vector<8x16xf32>
    %c0_5 = arith.constant 0 : index
    %c0_6 = arith.constant 0 : index
    %6 = vector.load %arg4[%c0_5, %c0_6] : memref<32x512xbf16, #tpu.memory_space<vmem>>, vector<32x512xbf16>
    %7 = arith.extf %6 : vector<32x512xbf16> to vector<32x512xf32>
    %cst_7 = arith.constant dense<0.000000e+00> : vector<8x512xf32>
    %8 = tpu.matmul %1, %7, %cst_7 {dimension_numbers = #tpu.dot_dimension_numbers<[1], [0], [0], [1], [0, 0, 1, 1], [], []>, precision = #tpu.contract_precision<fp32>} : vector<8x32xf32>, vector<32x512xf32>, vector<8x512xf32> -> vector<8x512xf32>
    %9 = arith.mulf %4, %8 : vector<8x512xf32>
    %c0_8 = arith.constant 0 : index
    %c0_9 = arith.constant 0 : index
    %10 = vector.load %arg5[%c0_8, %c0_9] : memref<552x16xf32, #tpu.memory_space<vmem>>, vector<512x16xf32>
    %cst_10 = arith.constant dense<0.000000e+00> : vector<8x16xf32>
    %11 = tpu.matmul %9, %10, %cst_10 {dimension_numbers = #tpu.dot_dimension_numbers<[1], [0], [0], [1], [0, 0, 1, 1], [], []>, precision = #tpu.contract_precision<fp32>} : vector<8x512xf32>, vector<512x16xf32>, vector<8x16xf32> -> vector<8x16xf32>
    %c512 = arith.constant 512 : index
    %c0_11 = arith.constant 0 : index
    %12 = vector.load %arg5[%c512, %c0_11] : memref<552x16xf32, #tpu.memory_space<vmem>>, vector<32x16xf32>
    %cst_12 = arith.constant dense<0.000000e+00> : vector<8x16xf32>
    %13 = tpu.matmul %1, %12, %cst_12 {dimension_numbers = #tpu.dot_dimension_numbers<[1], [0], [0], [1], [0, 0, 1, 1], [], []>, precision = #tpu.contract_precision<fp32>} : vector<8x32xf32>, vector<32x16xf32>, vector<8x16xf32> -> vector<8x16xf32>
    %14 = arith.addf %11, %13 : vector<8x16xf32>
    %15 = arith.addf %14, %5 : vector<8x16xf32>
    %c544 = arith.constant 544 : index
    %c0_13 = arith.constant 0 : index
    %16 = vector.load %arg5[%c544, %c0_13] : memref<552x16xf32, #tpu.memory_space<vmem>>, vector<1x16xf32>
    %17 = vector.broadcast %16 : vector<1x16xf32> to vector<8x16xf32>
    %18 = arith.addf %15, %17 : vector<8x16xf32>
    %19 = math.tanh %18 : vector<8x16xf32>
    %c0_14 = arith.constant 0 : index
    %c0_15 = arith.constant 0 : index
    %20 = vector.load %arg6[%c0_14, %c0_15] : memref<8x16xf32, #tpu.memory_space<vmem>>, vector<8x16xf32>
    tpu.vector_store %arg6[%c0_14, %c0_15], %19 {strides = array<i32>} : memref<8x16xf32, #tpu.memory_space<vmem>>, vector<8x16xf32>,
    return
  }
  func.func @transform_0(%arg0: i32) -> (i32, i32) {
    %c0_i32 = arith.constant 0 : i32
    %c0_i32_0 = arith.constant 0 : i32
    return %arg0, %c0_i32 : i32, i32
  }
  func.func @transform_1(%arg0: i32) -> (i32, i32) {
    %c0_i32 = arith.constant 0 : i32
    %c0_i32_0 = arith.constant 0 : i32
    return %arg0, %c0_i32 : i32, i32
  }
  func.func @transform_2(%arg0: i32) -> (i32, i32) {
    %c0_i32 = arith.constant 0 : i32
    %c0_i32_0 = arith.constant 0 : i32
    %c0_i32_1 = arith.constant 0 : i32
    return %c0_i32, %c0_i32_0 : i32, i32
  }
  func.func @transform_3(%arg0: i32) -> (i32, i32) {
    %c0_i32 = arith.constant 0 : i32
    %c0_i32_0 = arith.constant 0 : i32
    %c0_i32_1 = arith.constant 0 : i32
    return %c0_i32, %c0_i32_0 : i32, i32
  }
  func.func @transform_4(%arg0: i32) -> (i32, i32) {
    %c0_i32 = arith.constant 0 : i32
    %c0_i32_0 = arith.constant 0 : i32
    %c0_i32_1 = arith.constant 0 : i32
    return %c0_i32, %c0_i32_0 : i32, i32
  }
  func.func @transform_5(%arg0: i32) -> (i32, i32) {
    %c0_i32 = arith.constant 0 : i32
    %c0_i32_0 = arith.constant 0 : i32
    return %arg0, %c0_i32 : i32, i32
  }
}

</mosaic_0001>

<llo_original>
// kernel: neural_tensor_layer.1
$region0: #{neural_tensor_layer.1}
  #allocation0 [shape = 'u32[]', space=smem, size = 0x4, offset = 0x4, fixed_abs, tag = 'smem constant byte address 0x4 - core index']
  #allocation1 [shape = 'u32[72,128]{1,0:T(1,128)}', space=vmem, size = 0x9000, scoped, tag = 'internal scratch']
  %s0 = inlined_call_operand.vmem [shape: f32[8,32], index: 0, kind: input, shape index: {}]
  %s1 = inlined_call_operand.vmem [shape: f32[8,32], index: 1, kind: input, shape index: {}]
  %s2 = inlined_call_operand.vmem [shape: f32[32,528], index: 2, kind: input, shape index: {}]
  %s3 = inlined_call_operand.vmem [shape: bf16[32,512], index: 3, kind: input, shape index: {}]
  %s4 = inlined_call_operand.vmem [shape: f32[552,16], index: 4, kind: input, shape index: {}]
  %s5 = inlined_call_operand.hbm [shape: f32[8,16], index: 5, kind: output, shape index: {}]
  %s6 = sld [smem:[#allocation0]]
  $region30: #{neural_tensor_layer.1} parent=0
    _
  %s8 = ssub.s32 1, %s6
  %s9 = scalar_select 0, %s8, %s6
  $region1: #{neural_tensor_layer.1} parent=0
    #allocation2 [shape = 'u8[4096]{0}', space=vmem, size = 0x1000, scoped, tag = 'output window, operand 0, single buffered']
    #allocation3 [shape = 's32[1]{0}', space=sflag, size = 0x4, scoped, tag = 'scoped memory for neural_tensor_layer.1']
    %10 = vsyncpa [#allocation3], 0
    // Predicated region
    $region2: #{neural_tensor_layer.1} parent=1 // pred_check
      _
    $region3: #{neural_tensor_layer.1} parent=1 // pred_check_branch
      %12 = sbr.rel (0) target = $region5
    $region4: #{neural_tensor_layer.1} parent=1 // pred_region
      _
    $region5: #{neural_tensor_layer.1} parent=1 // pred_fallthru
      _
    // Predicated region
    $region6: #{neural_tensor_layer.1} parent=1 // pred_check
      _
    $region7: #{neural_tensor_layer.1} parent=1 // pred_check_branch
      %14 = sbr.rel (0) target = $region9
    $region8: #{neural_tensor_layer.1} parent=1 // pred_region
      _
    $region9: #{neural_tensor_layer.1} parent=1 // pred_fallthru
      _
    // Predicated region
    $region10: #{neural_tensor_layer.1} parent=1 // pred_check
      _
    $region11: #{neural_tensor_layer.1} parent=1 // pred_check_branch
      %16 = sbr.rel (0) target = $region13
    $region12: #{neural_tensor_layer.1} parent=1 // pred_region
      _
    $region13: #{neural_tensor_layer.1} parent=1 // pred_fallthru
      _
    // Predicated region
    $region14: #{neural_tensor_layer.1} parent=1 // pred_check
      _
    $region15: #{neural_tensor_layer.1} parent=1 // pred_check_branch
      %18 = sbr.rel (0) target = $region17
    $region16: #{neural_tensor_layer.1} parent=1 // pred_region
      _
    $region17: #{neural_tensor_layer.1} parent=1 // pred_fallthru
      _
    // Predicated region
    $region18: #{neural_tensor_layer.1} parent=1 // pred_check
      _
    $region19: #{neural_tensor_layer.1} parent=1 // pred_check_branch
      %20 = sbr.rel (0) target = $region21
    $region20: #{neural_tensor_layer.1} parent=1 // pred_region
      _
    $region21: #{neural_tensor_layer.1} parent=1 // pred_fallthru
      _
    %v21 = vld [vmem:[%s0] sm:$0xff]
    %v22 = vld [vmem:[%s1] sm:$0xff]
    %v23 = vld [vmem:[%s2] sm:$0xff]
    %v24 = vld [vmem:[%s2 + $0x8] sm:$0xff]
    %v25 = vld [vmem:[%s2 + $0x10] sm:$0xff]
    %v26 = vld [vmem:[%s2 + $0x18] sm:$0xff]
    %v27 = vld [vmem:[%s2 + $0x20] sm:$0xff]
    %v28 = vld [vmem:[%s2 + $0x28] sm:$0xff]
    %v29 = vld [vmem:[%s2 + $0x30] sm:$0xff]
    %v30 = vld [vmem:[%s2 + $0x38] sm:$0xff]
    %v31 = vld [vmem:[%s2 + $0x40] sm:$0xff]
    %v32 = vld [vmem:[%s2 + $0x48] sm:$0xff]
    %v33 = vld [vmem:[%s2 + $0x50] sm:$0xff]
    %v34 = vld [vmem:[%s2 + $0x58] sm:$0xff]
    %v35 = vld [vmem:[%s2 + $0x60] sm:$0xff]
    %v36 = vld [vmem:[%s2 + $0x68] sm:$0xff]
    %v37 = vld [vmem:[%s2 + $0x70] sm:$0xff]
    %v38 = vld [vmem:[%s2 + $0x78] sm:$0xff]
    %v39 = vld [vmem:[%s2 + $0x80] sm:$0xff]
    %v40 = vld [vmem:[%s2 + $0x88] sm:$0xff]
    %v41 = vld [vmem:[%s2 + $0x90] sm:$0xff]
    %v42 = vld [vmem:[%s2 + $0x98] sm:$0xff]
    %vm43 = vcmask 261120
    %v45 = vsel %vm43, %v21, 0
    %47 = vmatpush.msra.mxu0 0.0
    %48 = vmatpush.msra.mxu0 0.0
    %49 = vmatpush.msra.mxu0 0.0
    %50 = vmatpush.msra.mxu0 0.0
    %51 = vmatpush.msra.mxu0 0.0
    %52 = vmatpush.msra.mxu0 0.0
    %53 = vmatpush.msra.mxu0 0.0
    %54 = vmatpush.msra.mxu0 0.0
    %55 = vmatpush.msra.mxu0 0.0
    %56 = vmatpush.msra.mxu0 0.0
    %57 = vmatpush.msra.mxu0 0.0
    %58 = vmatpush.msra.mxu0 0.0
    %v59 = vand.u32 %v38, 4294901760
    %60 = vmatpush.msra.mxu0 %v59
    %v61 = vand.u32 %v33, 4294901760
    %62 = vmatpush.msra.mxu0 %v61
    %v63 = vand.u32 %v28, 4294901760
    %64 = vmatpush.msra.mxu0 %v63
    %v65 = vand.u32 %v23, 4294901760
    %66 = vmatpush.msra.mxu0 %v65
    %v67 = vand.u32 %v45, 4294901760
    %v68 = vsub.f32 %v45, %v67
    %v69 = vand.u32 %v68, 4294901760
    %v70 = vsub.f32 %v68, %v69
    %v71 = vand.u32 %v70, 4294901760
    %72 = vmatmul.f32.gmra.mxu0 %v71
    %v73 = vpop.f32.mrf.mxu0
    %v74 = vadd.f32 0.0, %v73
    %75 = vdwg.mxu0
    %76 = vmatpush.msra.mxu0 0.0
    %77 = vmatpush.msra.mxu0 0.0
    %78 = vmatpush.msra.mxu0 0.0
    %79 = vmatpush.msra.mxu0 0.0
    %80 = vmatpush.msra.mxu0 0.0
    %81 = vmatpush.msra.mxu0 0.0
    %82 = vmatpush.msra.mxu0 0.0
    %83 = vmatpush.msra.mxu0 0.0
    %84 = vmatpush.msra.mxu0 0.0
    %85 = vmatpush.msra.mxu0 0.0
    %86 = vmatpush.msra.mxu0 0.0
    %87 = vmatpush.msra.mxu0 0.0
    %v88 = vand.u32 %v38, 4294901760
    %v89 = vsub.f32 %v38, %v88
    %v90 = vand.u32 %v89, 4294901760
    %v91 = vsub.f32 %v89, %v90
    %v92 = vand.u32 %v91, 4294901760
    %93 = vmatpush.msra.mxu0 %v92
    %v94 = vand.u32 %v33, 4294901760
    %v95 = vsub.f32 %v33, %v94
    %v96 = vand.u32 %v95, 4294901760
    %v97 = vsub.f32 %v95, %v96
    %v98 = vand.u32 %v97, 4294901760
    %99 = vmatpush.msra.mxu0 %v98
    %v100 = vand.u32 %v28, 4294901760
    %v101 = vsub.f32 %v28, %v100
    %v102 = vand.u32 %v101, 4294901760
    %v103 = vsub.f32 %v101, %v102
    %v104 = vand.u32 %v103, 4294901760
    %105 = vmatpush.msra.mxu0 %v104
    %v106 = vand.u32 %v23, 4294901760
    %v107 = vsub.f32 %v23, %v106
    %v108 = vand.u32 %v107, 4294901760
    %v109 = vsub.f32 %v107, %v108
    %v110 = vand.u32 %v109, 4294901760
    %111 = vmatpush.msra.mxu0 %v110
    %v112 = vand.u32 %v45, 4294901760
    %113 = vmatmul.f32.gmra.mxu0 %v112
    %v114 = vpop.f32.mrf.mxu0
    %v115 = vadd.f32 %v74, %v114
    %116 = vdwg.mxu0
    %117 = vmatpush.msra.mxu0 0.0
    %118 = vmatpush.msra.mxu0 0.0
    %119 = vmatpush.msra.mxu0 0.0
    %120 = vmatpush.msra.mxu0 0.0
    %121 = vmatpush.msra.mxu0 0.0
    %122 = vmatpush.msra.mxu0 0.0
    %123 = vmatpush.msra.mxu0 0.0
    %124 = vmatpush.msra.mxu0 0.0
    %125 = vmatpush.msra.mxu0 0.0
    %126 = vmatpush.msra.mxu0 0.0
    %127 = vmatpush.msra.mxu0 0.0
    %128 = vmatpush.msra.mxu0 0.0
    %v129 = vand.u32 %v38, 4294901760
    %v130 = vsub.f32 %v38, %v129
    %131 = vmatpush.msra.mxu0 %v130
    %v132 = vand.u32 %v33, 4294901760
    %v133 = vsub.f32 %v33, %v132
    %134 = vmatpush.msra.mxu0 %v133
    %v135 = vand.u32 %v28, 4294901760
    %v136 = vsub.f32 %v28, %v135
    %137 = vmatpush.msra.mxu0 %v136
    %v138 = vand.u32 %v23, 4294901760
    %v139 = vsub.f32 %v23, %v138
    %140 = vmatpush.msra.mxu0 %v139
    %v141 = vand.u32 %v45, 4294901760
    %v142 = vsub.f32 %v45, %v141
    %143 = vmatmul.f32.gmra.mxu0 %v142
    %v144 = vpop.f32.mrf.mxu0
    %v145 = vadd.f32 %v115, %v144
    %146 = vdwg.mxu0
    %147 = vmatpush.msra.mxu0 0.0
    %148 = vmatpush.msra.mxu0 0.0
    %149 = vmatpush.msra.mxu0 0.0
    %150 = vmatpush.msra.mxu0 0.0
    %151 = vmatpush.msra.mxu0 0.0
    %152 = vmatpush.msra.mxu0 0.0
    %153 = vmatpush.msra.mxu0 0.0
    %154 = vmatpush.msra.mxu0 0.0
    %155 = vmatpush.msra.mxu0 0.0
    %156 = vmatpush.msra.mxu0 0.0
    %157 = vmatpush.msra.mxu0 0.0
    %158 = vmatpush.msra.mxu0 0.0
    %v159 = vand.u32 %v38, 4294901760
    %160 = vmatpush.msra.mxu0 %v159
    %v161 = vand.u32 %v33, 4294901760
    %162 = vmatpush.msra.mxu0 %v161
    %v163 = vand.u32 %v28, 4294901760
    %164 = vmatpush.msra.mxu0 %v163
    %v165 = vand.u32 %v23, 4294901760
    %166 = vmatpush.msra.mxu0 %v165
    %v167 = vand.u32 %v45, 4294901760
    %v168 = vsub.f32 %v45, %v167
    %v169 = vand.u32 %v168, 4294901760
    %170 = vmatmul.f32.gmra.mxu0 %v169
    %v171 = vpop.f32.mrf.mxu0
    %v172 = vadd.f32 %v145, %v171
    %173 = vdwg.mxu0
    %174 = vmatpush.msra.mxu0 0.0
    %175 = vmatpush.msra.mxu0 0.0
    %176 = vmatpush.msra.mxu0 0.0
    %177 = vmatpush.msra.mxu0 0.0
    %178 = vmatpush.msra.mxu0 0.0
    %179 = vmatpush.msra.mxu0 0.0
    %180 = vmatpush.msra.mxu0 0.0
    %181 = vmatpush.msra.mxu0 0.0
    %182 = vmatpush.msra.mxu0 0.0
    %183 = vmatpush.msra.mxu0 0.0
    %184 = vmatpush.msra.mxu0 0.0
    %185 = vmatpush.msra.mxu0 0.0
    %v186 = vand.u32 %v38, 4294901760
    %v187 = vsub.f32 %v38, %v186
    %v188 = vand.u32 %v187, 4294901760
    %189 = vmatpush.msra.mxu0 %v188
    %v190 = vand.u32 %v33, 4294901760
    %v191 = vsub.f32 %v33, %v190
    %v192 = vand.u32 %v191, 4294901760
    %193 = vmatpush.msra.mxu0 %v192
    %v194 = vand.u32 %v28, 4294901760
    %v195 = vsub.f32 %v28, %v194
    %v196 = vand.u32 %v195, 4294901760
    %197 = vmatpush.msra.mxu0 %v196
    %v198 = vand.u32 %v23, 4294901760
    %v199 = vsub.f32 %v23, %v198
    %v200 = vand.u32 %v199, 4294901760
    %201 = vmatpush.msra.mxu0 %v200
    %v202 = vand.u32 %v45, 4294901760
    %203 = vmatmul.f32.gmra.mxu0 %v202
    %v204 = vpop.f32.mrf.mxu0
    %v205 = vadd.f32 %v172, %v204
    %206 = vdwg.mxu0
    %207 = vmatpush.msra.mxu0 0.0
    %208 = vmatpush.msra.mxu0 0.0
    %209 = vmatpush.msra.mxu0 0.0
    %210 = vmatpush.msra.mxu0 0.0
    %211 = vmatpush.msra.mxu0 0.0
    %212 = vmatpush.msra.mxu0 0.0
    %213 = vmatpush.msra.mxu0 0.0
    %214 = vmatpush.msra.mxu0 0.0
    %215 = vmatpush.msra.mxu0 0.0
    %216 = vmatpush.msra.mxu0 0.0
    %217 = vmatpush.msra.mxu0 0.0
    %218 = vmatpush.msra.mxu0 0.0
    %v219 = vand.u32 %v38, 4294901760
    %220 = vmatpush.msra.mxu0 %v219
    %v221 = vand.u32 %v33, 4294901760
    %222 = vmatpush.msra.mxu0 %v221
    %v223 = vand.u32 %v28, 4294901760
    %224 = vmatpush.msra.mxu0 %v223
    %v225 = vand.u32 %v23, 4294901760
    %226 = vmatpush.msra.mxu0 %v225
    %v227 = vand.u32 %v45, 4294901760
    %228 = vmatmul.f32.gmra.mxu0 %v227
    %v229 = vpop.f32.mrf.mxu0
    %v230 = vadd.f32 %v205, %v229
    %231 = vdwg.mxu0
    %232 = vmatpush.msra.mxu0 0.0
    %233 = vmatpush.msra.mxu0 0.0
    %234 = vmatpush.msra.mxu0 0.0
    %235 = vmatpush.msra.mxu0 0.0
    %236 = vmatpush.msra.mxu0 0.0
    %237 = vmatpush.msra.mxu0 0.0
    %238 = vmatpush.msra.mxu0 0.0
    %239 = vmatpush.msra.mxu0 0.0
    %240 = vmatpush.msra.mxu0 0.0
    %241 = vmatpush.msra.mxu0 0.0
    %242 = vmatpush.msra.mxu0 0.0
    %243 = vmatpush.msra.mxu0 0.0
    %v244 = vand.u32 %v39, 4294901760
    %245 = vmatpush.msra.mxu0 %v244
    %v246 = vand.u32 %v34, 4294901760
    %247 = vmatpush.msra.mxu0 %v246
    %v248 = vand.u32 %v29, 4294901760
    %249 = vmatpush.msra.mxu0 %v248
    %v250 = vand.u32 %v24, 4294901760
    %251 = vmatpush.msra.mxu0 %v250
    %v252 = vand.u32 %v45, 4294901760
    %v253 = vsub.f32 %v45, %v252
    %v254 = vand.u32 %v253, 4294901760
    %v255 = vsub.f32 %v253, %v254
    %v256 = vand.u32 %v255, 4294901760
    %257 = vmatmul.f32.gmra.mxu0 %v256
    %v258 = vpop.f32.mrf.mxu0
    %v259 = vadd.f32 0.0, %v258
    %260 = vdwg.mxu0
    %261 = vmatpush.msra.mxu0 0.0
    %262 = vmatpush.msra.mxu0 0.0
    %263 = vmatpush.msra.mxu0 0.0
    %264 = vmatpush.msra.mxu0 0.0
    %265 = vmatpush.msra.mxu0 0.0
    %266 = vmatpush.msra.mxu0 0.0
    %267 = vmatpush.msra.mxu0 0.0
    %268 = vmatpush.msra.mxu0 0.0
    %269 = vmatpush.msra.mxu0 0.0
    %270 = vmatpush.msra.mxu0 0.0
    %271 = vmatpush.msra.mxu0 0.0
    %272 = vmatpush.msra.mxu0 0.0
    %v273 = vand.u32 %v39, 4294901760
    %v274 = vsub.f32 %v39, %v273
    %v275 = vand.u32 %v274, 4294901760
    %v276 = vsub.f32 %v274, %v275
    %v277 = vand.u32 %v276, 4294901760
    %278 = vmatpush.msra.mxu0 %v277
    %v279 = vand.u32 %v34, 4294901760
    %v280 = vsub.f32 %v34, %v279
    %v281 = vand.u32 %v280, 4294901760
    %v282 = vsub.f32 %v280, %v281
    %v283 = vand.u32 %v282, 4294901760
    %284 = vmatpush.msra.mxu0 %v283
    %v285 = vand.u32 %v29, 4294901760
    %v286 = vsub.f32 %v29, %v285
    %v287 = vand.u32 %v286, 4294901760
    %v288 = vsub.f32 %v286, %v287
    %v289 = vand.u32 %v288, 4294901760
    %290 = vmatpush.msra.mxu0 %v289
    %v291 = vand.u32 %v24, 4294901760
    %v292 = vsub.f32 %v24, %v291
    %v293 = vand.u32 %v292, 4294901760
    %v294 = vsub.f32 %v292, %v293
    %v295 = vand.u32 %v294, 4294901760
    %296 = vmatpush.msra.mxu0 %v295
    %v297 = vand.u32 %v45, 4294901760
    %298 = vmatmul.f32.gmra.mxu0 %v297
    %v299 = vpop.f32.mrf.mxu0
    %v300 = vadd.f32 %v259, %v299
    %301 = vdwg.mxu0
    %302 = vmatpush.msra.mxu0 0.0
    %303 = vmatpush.msra.mxu0 0.0
    %304 = vmatpush.msra.mxu0 0.0
    %305 = vmatpush.msra.mxu0 0.0
    %306 = vmatpush.msra.mxu0 0.0
    %307 = vmatpush.msra.mxu0 0.0
    %308 = vmatpush.msra.mxu0 0.0
    %309 = vmatpush.msra.mxu0 0.0
    %310 = vmatpush.msra.mxu0 0.0
    %311 = vmatpush.msra.mxu0 0.0
    %312 = vmatpush.msra.mxu0 0.0
    %313 = vmatpush.msra.mxu0 0.0
    %v314 = vand.u32 %v39, 4294901760
    %v315 = vsub.f32 %v39, %v314
    %316 = vmatpush.msra.mxu0 %v315
    %v317 = vand.u32 %v34, 4294901760
    %v318 = vsub.f32 %v34, %v317
    %319 = vmatpush.msra.mxu0 %v318
    %v320 = vand.u32 %v29, 4294901760
    %v321 = vsub.f32 %v29, %v320
    %322 = vmatpush.msra.mxu0 %v321
    %v323 = vand.u32 %v24, 4294901760
    %v324 = vsub.f32 %v24, %v323
    %325 = vmatpush.msra.mxu0 %v324
    %v326 = vand.u32 %v45, 4294901760
    %v327 = vsub.f32 %v45, %v326
    %328 = vmatmul.f32.gmra.mxu0 %v327
    %v329 = vpop.f32.mrf.mxu0
    %v330 = vadd.f32 %v300, %v329
    %331 = vdwg.mxu0
    %332 = vmatpush.msra.mxu0 0.0
    %333 = vmatpush.msra.mxu0 0.0
    %334 = vmatpush.msra.mxu0 0.0
    %335 = vmatpush.msra.mxu0 0.0
    %336 = vmatpush.msra.mxu0 0.0
    %337 = vmatpush.msra.mxu0 0.0
    %338 = vmatpush.msra.mxu0 0.0
    %339 = vmatpush.msra.mxu0 0.0
    %340 = vmatpush.msra.mxu0 0.0
    %341 = vmatpush.msra.mxu0 0.0
    %342 = vmatpush.msra.mxu0 0.0
    %343 = vmatpush.msra.mxu0 0.0
    %v344 = vand.u32 %v39, 4294901760
    %345 = vmatpush.msra.mxu0 %v344
    %v346 = vand.u32 %v34, 4294901760
    %347 = vmatpush.msra.mxu0 %v346
    %v348 = vand.u32 %v29, 4294901760
    %349 = vmatpush.msra.mxu0 %v348
    %v350 = vand.u32 %v24, 4294901760
    %351 = vmatpush.msra.mxu0 %v350
    %v352 = vand.u32 %v45, 4294901760
    %v353 = vsub.f32 %v45, %v352
    %v354 = vand.u32 %v353, 4294901760
    %355 = vmatmul.f32.gmra.mxu0 %v354
    %v356 = vpop.f32.mrf.mxu0
    %v357 = vadd.f32 %v330, %v356
    %358 = vdwg.mxu0
    %359 = vmatpush.msra.mxu0 0.0
    %360 = vmatpush.msra.mxu0 0.0
    %361 = vmatpush.msra.mxu0 0.0
    %362 = vmatpush.msra.mxu0 0.0
    %363 = vmatpush.msra.mxu0 0.0
    %364 = vmatpush.msra.mxu0 0.0
    %365 = vmatpush.msra.mxu0 0.0
    %366 = vmatpush.msra.mxu0 0.0
    %367 = vmatpush.msra.mxu0 0.0
    %368 = vmatpush.msra.mxu0 0.0
    %369 = vmatpush.msra.mxu0 0.0
    %370 = vmatpush.msra.mxu0 0.0
    %v371 = vand.u32 %v39, 4294901760
    %v372 = vsub.f32 %v39, %v371
    %v373 = vand.u32 %v372, 4294901760
    %374 = vmatpush.msra.mxu0 %v373
    %v375 = vand.u32 %v34, 4294901760
    %v376 = vsub.f32 %v34, %v375
    %v377 = vand.u32 %v376, 4294901760
    %378 = vmatpush.msra.mxu0 %v377
    %v379 = vand.u32 %v29, 4294901760
    %v380 = vsub.f32 %v29, %v379
    %v381 = vand.u32 %v380, 4294901760
    %382 = vmatpush.msra.mxu0 %v381
    %v383 = vand.u32 %v24, 4294901760
    %v384 = vsub.f32 %v24, %v383
    %v385 = vand.u32 %v384, 4294901760
    %386 = vmatpush.msra.mxu0 %v385
    %v387 = vand.u32 %v45, 4294901760
    %388 = vmatmul.f32.gmra.mxu0 %v387
    %v389 = vpop.f32.mrf.mxu0
    %v390 = vadd.f32 %v357, %v389
    %391 = vdwg.mxu0
    %392 = vmatpush.msra.mxu0 0.0
    %393 = vmatpush.msra.mxu0 0.0
    %394 = vmatpush.msra.mxu0 0.0
    %395 = vmatpush.msra.mxu0 0.0
    %396 = vmatpush.msra.mxu0 0.0
    %397 = vmatpush.msra.mxu0 0.0
    %398 = vmatpush.msra.mxu0 0.0
    %399 = vmatpush.msra.mxu0 0.0
    %400 = vmatpush.msra.mxu0 0.0
    %401 = vmatpush.msra.mxu0 0.0
    %402 = vmatpush.msra.mxu0 0.0
    %403 = vmatpush.msra.mxu0 0.0
    %v404 = vand.u32 %v39, 4294901760
    %405 = vmatpush.msra.mxu0 %v404
    %v406 = vand.u32 %v34, 4294901760
    %407 = vmatpush.msra.mxu0 %v406
    %v408 = vand.u32 %v29, 4294901760
    %409 = vmatpush.msra.mxu0 %v408
    %v410 = vand.u32 %v24, 4294901760
    %411 = vmatpush.msra.mxu0 %v410
    %v412 = vand.u32 %v45, 4294901760
    %413 = vmatmul.f32.gmra.mxu0 %v412
    %v414 = vpop.f32.mrf.mxu0
    %v415 = vadd.f32 %v390, %v414
    %416 = vdwg.mxu0
    %417 = vmatpush.msra.mxu0 0.0
    %418 = vmatpush.msra.mxu0 0.0
    %419 = vmatpush.msra.mxu0 0.0
    %420 = vmatpush.msra.mxu0 0.0
    %421 = vmatpush.msra.mxu0 0.0
    %422 = vmatpush.msra.mxu0 0.0
    %423 = vmatpush.msra.mxu0 0.0
    %424 = vmatpush.msra.mxu0 0.0
    %425 = vmatpush.msra.mxu0 0.0
    %426 = vmatpush.msra.mxu0 0.0
    %427 = vmatpush.msra.mxu0 0.0
    %428 = vmatpush.msra.mxu0 0.0
    %v429 = vand.u32 %v40, 4294901760
    %430 = vmatpush.msra.mxu0 %v429
    %v431 = vand.u32 %v35, 4294901760
    %432 = vmatpush.msra.mxu0 %v431
    %v433 = vand.u32 %v30, 4294901760
    %434 = vmatpush.msra.mxu0 %v433
    %v435 = vand.u32 %v25, 4294901760
    %436 = vmatpush.msra.mxu0 %v435
    %v437 = vand.u32 %v45, 4294901760
    %v438 = vsub.f32 %v45, %v437
    %v439 = vand.u32 %v438, 4294901760
    %v440 = vsub.f32 %v438, %v439
    %v441 = vand.u32 %v440, 4294901760
    %442 = vmatmul.f32.gmra.mxu0 %v441
    %v443 = vpop.f32.mrf.mxu0
    %v444 = vadd.f32 0.0, %v443
    %445 = vdwg.mxu0
    %446 = vmatpush.msra.mxu0 0.0
    %447 = vmatpush.msra.mxu0 0.0
    %448 = vmatpush.msra.mxu0 0.0
    %449 = vmatpush.msra.mxu0 0.0
    %450 = vmatpush.msra.mxu0 0.0
    %451 = vmatpush.msra.mxu0 0.0
    %452 = vmatpush.msra.mxu0 0.0
    %453 = vmatpush.msra.mxu0 0.0
    %454 = vmatpush.msra.mxu0 0.0
    %455 = vmatpush.msra.mxu0 0.0
    %456 = vmatpush.msra.mxu0 0.0
    %457 = vmatpush.msra.mxu0 0.0
    %v458 = vand.u32 %v40, 4294901760
    %v459 = vsub.f32 %v40, %v458
    %v460 = vand.u32 %v459, 4294901760
    %v461 = vsub.f32 %v459, %v460
    %v462 = vand.u32 %v461, 4294901760
    %463 = vmatpush.msra.mxu0 %v462
    %v464 = vand.u32 %v35, 4294901760
    %v465 = vsub.f32 %v35, %v464
    %v466 = vand.u32 %v465, 4294901760
    %v467 = vsub.f32 %v465, %v466
    %v468 = vand.u32 %v467, 4294901760
    %469 = vmatpush.msra.mxu0 %v468
    %v470 = vand.u32 %v30, 4294901760
    %v471 = vsub.f32 %v30, %v470
    %v472 = vand.u32 %v471, 4294901760
    %v473 = vsub.f32 %v471, %v472
    %v474 = vand.u32 %v473, 4294901760
    %475 = vmatpush.msra.mxu0 %v474
    %v476 = vand.u32 %v25, 4294901760
    %v477 = vsub.f32 %v25, %v476
    %v478 = vand.u32 %v477, 4294901760
    %v479 = vsub.f32 %v477, %v478
    %v480 = vand.u32 %v479, 4294901760
    %481 = vmatpush.msra.mxu0 %v480
    %v482 = vand.u32 %v45, 4294901760
    %483 = vmatmul.f32.gmra.mxu0 %v482
    %v484 = vpop.f32.mrf.mxu0
    %v485 = vadd.f32 %v444, %v484
    %486 = vdwg.mxu0
    %487 = vmatpush.msra.mxu0 0.0
    %488 = vmatpush.msra.mxu0 0.0
    %489 = vmatpush.msra.mxu0 0.0
    %490 = vmatpush.msra.mxu0 0.0
    %491 = vmatpush.msra.mxu0 0.0
    %492 = vmatpush.msra.mxu0 0.0
    %493 = vmatpush.msra.mxu0 0.0
    %494 = vmatpush.msra.mxu0 0.0
    %495 = vmatpush.msra.mxu0 0.0
    %496 = vmatpush.msra.mxu0 0.0
    %497 = vmatpush.msra.mxu0 0.0
    %498 = vmatpush.msra.mxu0 0.0
    %v499 = vand.u32 %v40, 4294901760
    %v500 = vsub.f32 %v40, %v499
    %501 = vmatpush.msra.mxu0 %v500
    %v502 = vand.u32 %v35, 4294901760
    %v503 = vsub.f32 %v35, %v502
    %504 = vmatpush.msra.mxu0 %v503
    %v505 = vand.u32 %v30, 4294901760
    %v506 = vsub.f32 %v30, %v505
    %507 = vmatpush.msra.mxu0 %v506
    %v508 = vand.u32 %v25, 4294901760
    %v509 = vsub.f32 %v25, %v508
    %510 = vmatpush.msra.mxu0 %v509
    %v511 = vand.u32 %v45, 4294901760
    %v512 = vsub.f32 %v45, %v511
    %513 = vmatmul.f32.gmra.mxu0 %v512
    %v514 = vpop.f32.mrf.mxu0
    %v515 = vadd.f32 %v485, %v514
    %516 = vdwg.mxu0
    %517 = vmatpush.msra.mxu0 0.0
    %518 = vmatpush.msra.mxu0 0.0
    %519 = vmatpush.msra.mxu0 0.0
    %520 = vmatpush.msra.mxu0 0.0
    %521 = vmatpush.msra.mxu0 0.0
    %522 = vmatpush.msra.mxu0 0.0
    %523 = vmatpush.msra.mxu0 0.0
    %524 = vmatpush.msra.mxu0 0.0
    %525 = vmatpush.msra.mxu0 0.0
    %526 = vmatpush.msra.mxu0 0.0
    %527 = vmatpush.msra.mxu0 0.0
    %528 = vmatpush.msra.mxu0 0.0
    %v529 = vand.u32 %v40, 4294901760
    %530 = vmatpush.msra.mxu0 %v529
    %v531 = vand.u32 %v35, 4294901760
    %532 = vmatpush.msra.mxu0 %v531
    %v533 = vand.u32 %v30, 4294901760
    %534 = vmatpush.msra.mxu0 %v533
    %v535 = vand.u32 %v25, 4294901760
    %536 = vmatpush.msra.mxu0 %v535
    %v537 = vand.u32 %v45, 4294901760
    %v538 = vsub.f32 %v45, %v537
    %v539 = vand.u32 %v538, 4294901760
    %540 = vmatmul.f32.gmra.mxu0 %v539
    %v541 = vpop.f32.mrf.mxu0
    %v542 = vadd.f32 %v515, %v541
    %543 = vdwg.mxu0
    %544 = vmatpush.msra.mxu0 0.0
    %545 = vmatpush.msra.mxu0 0.0
    %546 = vmatpush.msra.mxu0 0.0
    %547 = vmatpush.msra.mxu0 0.0
    %548 = vmatpush.msra.mxu0 0.0
    %549 = vmatpush.msra.mxu0 0.0
    %550 = vmatpush.msra.mxu0 0.0
    %551 = vmatpush.msra.mxu0 0.0
    %552 = vmatpush.msra.mxu0 0.0
    %553 = vmatpush.msra.mxu0 0.0
    %554 = vmatpush.msra.mxu0 0.0
    %555 = vmatpush.msra.mxu0 0.0
    %v556 = vand.u32 %v40, 4294901760
    %v557 = vsub.f32 %v40, %v556
    %v558 = vand.u32 %v557, 4294901760
    %559 = vmatpush.msra.mxu0 %v558
    %v560 = vand.u32 %v35, 4294901760
    %v561 = vsub.f32 %v35, %v560
    %v562 = vand.u32 %v561, 4294901760
    %563 = vmatpush.msra.mxu0 %v562
    %v564 = vand.u32 %v30, 4294901760
    %v565 = vsub.f32 %v30, %v564
    %v566 = vand.u32 %v565, 4294901760
    %567 = vmatpush.msra.mxu0 %v566
    %v568 = vand.u32 %v25, 4294901760
    %v569 = vsub.f32 %v25, %v568
    %v570 = vand.u32 %v569, 4294901760
    %571 = vmatpush.msra.mxu0 %v570
    %v572 = vand.u32 %v45, 4294901760
    %573 = vmatmul.f32.gmra.mxu0 %v572
    %v574 = vpop.f32.mrf.mxu0
    %v575 = vadd.f32 %v542, %v574
    %576 = vdwg.mxu0
    %577 = vmatpush.msra.mxu0 0.0
    %578 = vmatpush.msra.mxu0 0.0
    %579 = vmatpush.msra.mxu0 0.0
    %580 = vmatpush.msra.mxu0 0.0
    %581 = vmatpush.msra.mxu0 0.0
    %582 = vmatpush.msra.mxu0 0.0
    %583 = vmatpush.msra.mxu0 0.0
    %584 = vmatpush.msra.mxu0 0.0
    %585 = vmatpush.msra.mxu0 0.0
    %586 = vmatpush.msra.mxu0 0.0
    %587 = vmatpush.msra.mxu0 0.0
    %588 = vmatpush.msra.mxu0 0.0
    %v589 = vand.u32 %v40, 4294901760
    %590 = vmatpush.msra.mxu0 %v589
    %v591 = vand.u32 %v35, 4294901760
    %592 = vmatpush.msra.mxu0 %v591
    %v593 = vand.u32 %v30, 4294901760
    %594 = vmatpush.msra.mxu0 %v593
    %v595 = vand.u32 %v25, 4294901760
    %596 = vmatpush.msra.mxu0 %v595
    %v597 = vand.u32 %v45, 4294901760
    %598 = vmatmul.f32.gmra.mxu0 %v597
    %v599 = vpop.f32.mrf.mxu0
    %v600 = vadd.f32 %v575, %v599
    %601 = vdwg.mxu0
    %602 = vmatpush.msra.mxu0 0.0
    %603 = vmatpush.msra.mxu0 0.0
    %604 = vmatpush.msra.mxu0 0.0
    %605 = vmatpush.msra.mxu0 0.0
    %606 = vmatpush.msra.mxu0 0.0
    %607 = vmatpush.msra.mxu0 0.0
    %608 = vmatpush.msra.mxu0 0.0
    %609 = vmatpush.msra.mxu0 0.0
    %610 = vmatpush.msra.mxu0 0.0
    %611 = vmatpush.msra.mxu0 0.0
    %612 = vmatpush.msra.mxu0 0.0
    %613 = vmatpush.msra.mxu0 0.0
    %v614 = vand.u32 %v41, 4294901760
    %615 = vmatpush.msra.mxu0 %v614
    %v616 = vand.u32 %v36, 4294901760
    %617 = vmatpush.msra.mxu0 %v616
    %v618 = vand.u32 %v31, 4294901760
    %619 = vmatpush.msra.mxu0 %v618
    %v620 = vand.u32 %v26, 4294901760
    %621 = vmatpush.msra.mxu0 %v620
    %v622 = vand.u32 %v45, 4294901760
    %v623 = vsub.f32 %v45, %v622
    %v624 = vand.u32 %v623, 4294901760
    %v625 = vsub.f32 %v623, %v624
    %v626 = vand.u32 %v625, 4294901760
    %627 = vmatmul.f32.gmra.mxu0 %v626
    %v628 = vpop.f32.mrf.mxu0
    %v629 = vadd.f32 0.0, %v628
    %630 = vdwg.mxu0
    %631 = vmatpush.msra.mxu0 0.0
    %632 = vmatpush.msra.mxu0 0.0
    %633 = vmatpush.msra.mxu0 0.0
    %634 = vmatpush.msra.mxu0 0.0
    %635 = vmatpush.msra.mxu0 0.0
    %636 = vmatpush.msra.mxu0 0.0
    %637 = vmatpush.msra.mxu0 0.0
    %638 = vmatpush.msra.mxu0 0.0
    %639 = vmatpush.msra.mxu0 0.0
    %640 = vmatpush.msra.mxu0 0.0
    %641 = vmatpush.msra.mxu0 0.0
    %642 = vmatpush.msra.mxu0 0.0
    %v643 = vand.u32 %v41, 4294901760
    %v644 = vsub.f32 %v41, %v643
    %v645 = vand.u32 %v644, 4294901760
    %v646 = vsub.f32 %v644, %v645
    %v647 = vand.u32 %v646, 4294901760
    %648 = vmatpush.msra.mxu0 %v647
    %v649 = vand.u32 %v36, 4294901760
    %v650 = vsub.f32 %v36, %v649
    %v651 = vand.u32 %v650, 4294901760
    %v652 = vsub.f32 %v650, %v651
    %v653 = vand.u32 %v652, 4294901760
    %654 = vmatpush.msra.mxu0 %v653
    %v655 = vand.u32 %v31, 4294901760
    %v656 = vsub.f32 %v31, %v655
    %v657 = vand.u32 %v656, 4294901760
    %v658 = vsub.f32 %v656, %v657
    %v659 = vand.u32 %v658, 4294901760
    %660 = vmatpush.msra.mxu0 %v659
    %v661 = vand.u32 %v26, 4294901760
    %v662 = vsub.f32 %v26, %v661
    %v663 = vand.u32 %v662, 4294901760
    %v664 = vsub.f32 %v662, %v663
    %v665 = vand.u32 %v664, 4294901760
    %666 = vmatpush.msra.mxu0 %v665
    %v667 = vand.u32 %v45, 4294901760
    %668 = vmatmul.f32.gmra.mxu0 %v667
    %v669 = vpop.f32.mrf.mxu0
    %v670 = vadd.f32 %v629, %v669
    %671 = vdwg.mxu0
    %672 = vmatpush.msra.mxu0 0.0
    %673 = vmatpush.msra.mxu0 0.0
    %674 = vmatpush.msra.mxu0 0.0
    %675 = vmatpush.msra.mxu0 0.0
    %676 = vmatpush.msra.mxu0 0.0
    %677 = vmatpush.msra.mxu0 0.0
    %678 = vmatpush.msra.mxu0 0.0
    %679 = vmatpush.msra.mxu0 0.0
    %680 = vmatpush.msra.mxu0 0.0
    %681 = vmatpush.msra.mxu0 0.0
    %682 = vmatpush.msra.mxu0 0.0
    %683 = vmatpush.msra.mxu0 0.0
    %v684 = vand.u32 %v41, 4294901760
    %v685 = vsub.f32 %v41, %v684
    %686 = vmatpush.msra.mxu0 %v685
    %v687 = vand.u32 %v36, 4294901760
    %v688 = vsub.f32 %v36, %v687
    %689 = vmatpush.msra.mxu0 %v688
    %v690 = vand.u32 %v31, 4294901760
    %v691 = vsub.f32 %v31, %v690
    %692 = vmatpush.msra.mxu0 %v691
    %v693 = vand.u32 %v26, 4294901760
    %v694 = vsub.f32 %v26, %v693
    %695 = vmatpush.msra.mxu0 %v694
    %v696 = vand.u32 %v45, 4294901760
    %v697 = vsub.f32 %v45, %v696
    %698 = vmatmul.f32.gmra.mxu0 %v697
    %v699 = vpop.f32.mrf.mxu0
    %v700 = vadd.f32 %v670, %v699
    %701 = vdwg.mxu0
    %702 = vmatpush.msra.mxu0 0.0
    %703 = vmatpush.msra.mxu0 0.0
    %704 = vmatpush.msra.mxu0 0.0
    %705 = vmatpush.msra.mxu0 0.0
    %706 = vmatpush.msra.mxu0 0.0
    %707 = vmatpush.msra.mxu0 0.0
    %708 = vmatpush.msra.mxu0 0.0
    %709 = vmatpush.msra.mxu0 0.0
    %710 = vmatpush.msra.mxu0 0.0
    %711 = vmatpush.msra.mxu0 0.0
    %712 = vmatpush.msra.mxu0 0.0
    %713 = vmatpush.msra.mxu0 0.0
    %v714 = vand.u32 %v41, 4294901760
    %715 = vmatpush.msra.mxu0 %v714
    %v716 = vand.u32 %v36, 4294901760
    %717 = vmatpush.msra.mxu0 %v716
    %v718 = vand.u32 %v31, 4294901760
    %719 = vmatpush.msra.mxu0 %v718
    %v720 = vand.u32 %v26, 4294901760
    %721 = vmatpush.msra.mxu0 %v720
    %v722 = vand.u32 %v45, 4294901760
    %v723 = vsub.f32 %v45, %v722
    %v724 = vand.u32 %v723, 4294901760
    %725 = vmatmul.f32.gmra.mxu0 %v724
    %v726 = vpop.f32.mrf.mxu0
    %v727 = vadd.f32 %v700, %v726
    %728 = vdwg.mxu0
    %729 = vmatpush.msra.mxu0 0.0
    %730 = vmatpush.msra.mxu0 0.0
    %731 = vmatpush.msra.mxu0 0.0
    %732 = vmatpush.msra.mxu0 0.0
    %733 = vmatpush.msra.mxu0 0.0
    %734 = vmatpush.msra.mxu0 0.0
    %735 = vmatpush.msra.mxu0 0.0
    %736 = vmatpush.msra.mxu0 0.0
    %737 = vmatpush.msra.mxu0 0.0
    %738 = vmatpush.msra.mxu0 0.0
    %739 = vmatpush.msra.mxu0 0.0
    %740 = vmatpush.msra.mxu0 0.0
    %v741 = vand.u32 %v41, 4294901760
    %v742 = vsub.f32 %v41, %v741
    %v743 = vand.u32 %v742, 4294901760
    %744 = vmatpush.msra.mxu0 %v743
    %v745 = vand.u32 %v36, 4294901760
    %v746 = vsub.f32 %v36, %v745
    %v747 = vand.u32 %v746, 4294901760
    %748 = vmatpush.msra.mxu0 %v747
    %v749 = vand.u32 %v31, 4294901760
    %v750 = vsub.f32 %v31, %v749
    %v751 = vand.u32 %v750, 4294901760
    %752 = vmatpush.msra.mxu0 %v751
    %v753 = vand.u32 %v26, 4294901760
    %v754 = vsub.f32 %v26, %v753
    %v755 = vand.u32 %v754, 4294901760
    %756 = vmatpush.msra.mxu0 %v755
    %v757 = vand.u32 %v45, 4294901760
    %758 = vmatmul.f32.gmra.mxu0 %v757
    %v759 = vpop.f32.mrf.mxu0
    %v760 = vadd.f32 %v727, %v759
    %761 = vdwg.mxu0
    %762 = vmatpush.msra.mxu0 0.0
    %763 = vmatpush.msra.mxu0 0.0
    %764 = vmatpush.msra.mxu0 0.0
    %765 = vmatpush.msra.mxu0 0.0
    %766 = vmatpush.msra.mxu0 0.0
    %767 = vmatpush.msra.mxu0 0.0
    %768 = vmatpush.msra.mxu0 0.0
    %769 = vmatpush.msra.mxu0 0.0
    %770 = vmatpush.msra.mxu0 0.0
    %771 = vmatpush.msra.mxu0 0.0
    %772 = vmatpush.msra.mxu0 0.0
    %773 = vmatpush.msra.mxu0 0.0
    %v774 = vand.u32 %v41, 4294901760
    %775 = vmatpush.msra.mxu0 %v774
    %v776 = vand.u32 %v36, 4294901760
    %777 = vmatpush.msra.mxu0 %v776
    %v778 = vand.u32 %v31, 4294901760
    %779 = vmatpush.msra.mxu0 %v778
    %v780 = vand.u32 %v26, 4294901760
    %781 = vmatpush.msra.mxu0 %v780
    %v782 = vand.u32 %v45, 4294901760
    %783 = vmatmul.f32.gmra.mxu0 %v782
    %v784 = vpop.f32.mrf.mxu0
    %v785 = vadd.f32 %v760, %v784
    %786 = vdwg.mxu0
    %787 = vmatpush.msra.mxu0 0.0
    %788 = vmatpush.msra.mxu0 0.0
    %789 = vmatpush.msra.mxu0 0.0
    %790 = vmatpush.msra.mxu0 0.0
    %791 = vmatpush.msra.mxu0 0.0
    %792 = vmatpush.msra.mxu0 0.0
    %793 = vmatpush.msra.mxu0 0.0
    %794 = vmatpush.msra.mxu0 0.0
    %795 = vmatpush.msra.mxu0 0.0
    %796 = vmatpush.msra.mxu0 0.0
    %797 = vmatpush.msra.mxu0 0.0
    %798 = vmatpush.msra.mxu0 0.0
    %v799 = vand.u32 %v42, 4294901760
    %800 = vmatpush.msra.mxu0 %v799
    %v801 = vand.u32 %v37, 4294901760
    %802 = vmatpush.msra.mxu0 %v801
    %v803 = vand.u32 %v32, 4294901760
    %804 = vmatpush.msra.mxu0 %v803
    %v805 = vand.u32 %v27, 4294901760
    %806 = vmatpush.msra.mxu0 %v805
    %v807 = vand.u32 %v45, 4294901760
    %v808 = vsub.f32 %v45, %v807
    %v809 = vand.u32 %v808, 4294901760
    %v810 = vsub.f32 %v808, %v809
    %v811 = vand.u32 %v810, 4294901760
    %812 = vmatmul.f32.gmra.mxu0 %v811
    %v813 = vpop.f32.mrf.mxu0
    %v814 = vadd.f32 0.0, %v813
    %815 = vdwg.mxu0
    %816 = vmatpush.msra.mxu0 0.0
    %817 = vmatpush.msra.mxu0 0.0
    %818 = vmatpush.msra.mxu0 0.0
    %819 = vmatpush.msra.mxu0 0.0
    %820 = vmatpush.msra.mxu0 0.0
    %821 = vmatpush.msra.mxu0 0.0
    %822 = vmatpush.msra.mxu0 0.0
    %823 = vmatpush.msra.mxu0 0.0
    %824 = vmatpush.msra.mxu0 0.0
    %825 = vmatpush.msra.mxu0 0.0
    %826 = vmatpush.msra.mxu0 0.0
    %827 = vmatpush.msra.mxu0 0.0
    %v828 = vand.u32 %v42, 4294901760
    %v829 = vsub.f32 %v42, %v828
    %v830 = vand.u32 %v829, 4294901760
    %v831 = vsub.f32 %v829, %v830
    %v832 = vand.u32 %v831, 4294901760
    %833 = vmatpush.msra.mxu0 %v832
    %v834 = vand.u32 %v37, 4294901760
    %v835 = vsub.f32 %v37, %v834
    %v836 = vand.u32 %v835, 4294901760
    %v837 = vsub.f32 %v835, %v836
    %v838 = vand.u32 %v837, 4294901760
    %839 = vmatpush.msra.mxu0 %v838
    %v840 = vand.u32 %v32, 4294901760
    %v841 = vsub.f32 %v32, %v840
    %v842 = vand.u32 %v841, 4294901760
    %v843 = vsub.f32 %v841, %v842
    %v844 = vand.u32 %v843, 4294901760
    %845 = vmatpush.msra.mxu0 %v844
    %v846 = vand.u32 %v27, 4294901760
    %v847 = vsub.f32 %v27, %v846
    %v848 = vand.u32 %v847, 4294901760
    %v849 = vsub.f32 %v847, %v848
    %v850 = vand.u32 %v849, 4294901760
    %851 = vmatpush.msra.mxu0 %v850
    %v852 = vand.u32 %v45, 4294901760
    %853 = vmatmul.f32.gmra.mxu0 %v852
    %v854 = vpop.f32.mrf.mxu0
    %v855 = vadd.f32 %v814, %v854
    %856 = vdwg.mxu0
    %857 = vmatpush.msra.mxu0 0.0
    %858 = vmatpush.msra.mxu0 0.0
    %859 = vmatpush.msra.mxu0 0.0
    %860 = vmatpush.msra.mxu0 0.0
    %861 = vmatpush.msra.mxu0 0.0
    %862 = vmatpush.msra.mxu0 0.0
    %863 = vmatpush.msra.mxu0 0.0
    %864 = vmatpush.msra.mxu0 0.0
    %865 = vmatpush.msra.mxu0 0.0
    %866 = vmatpush.msra.mxu0 0.0
    %867 = vmatpush.msra.mxu0 0.0
    %868 = vmatpush.msra.mxu0 0.0
    %v869 = vand.u32 %v42, 4294901760
    %v870 = vsub.f32 %v42, %v869
    %871 = vmatpush.msra.mxu0 %v870
    %v872 = vand.u32 %v37, 4294901760
    %v873 = vsub.f32 %v37, %v872
    %874 = vmatpush.msra.mxu0 %v873
    %v875 = vand.u32 %v32, 4294901760
    %v876 = vsub.f32 %v32, %v875
    %877 = vmatpush.msra.mxu0 %v876
    %v878 = vand.u32 %v27, 4294901760
    %v879 = vsub.f32 %v27, %v878
    %880 = vmatpush.msra.mxu0 %v879
    %v881 = vand.u32 %v45, 4294901760
    %v882 = vsub.f32 %v45, %v881
    %883 = vmatmul.f32.gmra.mxu0 %v882
    %v884 = vpop.f32.mrf.mxu0
    %v885 = vadd.f32 %v855, %v884
    %886 = vdwg.mxu0
    %887 = vmatpush.msra.mxu0 0.0
    %888 = vmatpush.msra.mxu0 0.0
    %889 = vmatpush.msra.mxu0 0.0
    %890 = vmatpush.msra.mxu0 0.0
    %891 = vmatpush.msra.mxu0 0.0
    %892 = vmatpush.msra.mxu0 0.0
    %893 = vmatpush.msra.mxu0 0.0
    %894 = vmatpush.msra.mxu0 0.0
    %895 = vmatpush.msra.mxu0 0.0
    %896 = vmatpush.msra.mxu0 0.0
    %897 = vmatpush.msra.mxu0 0.0
    %898 = vmatpush.msra.mxu0 0.0
    %v899 = vand.u32 %v42, 4294901760
    %900 = vmatpush.msra.mxu0 %v899
    %v901 = vand.u32 %v37, 4294901760
    %902 = vmatpush.msra.mxu0 %v901
    %v903 = vand.u32 %v32, 4294901760
    %904 = vmatpush.msra.mxu0 %v903
    %v905 = vand.u32 %v27, 4294901760
    %906 = vmatpush.msra.mxu0 %v905
    %v907 = vand.u32 %v45, 4294901760
    %v908 = vsub.f32 %v45, %v907
    %v909 = vand.u32 %v908, 4294901760
    %910 = vmatmul.f32.gmra.mxu0 %v909
    %v911 = vpop.f32.mrf.mxu0
    %v912 = vadd.f32 %v885, %v911
    %913 = vdwg.mxu0
    %914 = vmatpush.msra.mxu0 0.0
    %915 = vmatpush.msra.mxu0 0.0
    %916 = vmatpush.msra.mxu0 0.0
    %917 = vmatpush.msra.mxu0 0.0
    %918 = vmatpush.msra.mxu0 0.0
    %919 = vmatpush.msra.mxu0 0.0
    %920 = vmatpush.msra.mxu0 0.0
    %921 = vmatpush.msra.mxu0 0.0
    %922 = vmatpush.msra.mxu0 0.0
    %923 = vmatpush.msra.mxu0 0.0
    %924 = vmatpush.msra.mxu0 0.0
    %925 = vmatpush.msra.mxu0 0.0
    %v926 = vand.u32 %v42, 4294901760
    %v927 = vsub.f32 %v42, %v926
    %v928 = vand.u32 %v927, 4294901760
    %929 = vmatpush.msra.mxu0 %v928
    %v930 = vand.u32 %v37, 4294901760
    %v931 = vsub.f32 %v37, %v930
    %v932 = vand.u32 %v931, 4294901760
    %933 = vmatpush.msra.mxu0 %v932
    %v934 = vand.u32 %v32, 4294901760
    %v935 = vsub.f32 %v32, %v934
    %v936 = vand.u32 %v935, 4294901760
    %937 = vmatpush.msra.mxu0 %v936
    %v938 = vand.u32 %v27, 4294901760
    %v939 = vsub.f32 %v27, %v938
    %v940 = vand.u32 %v939, 4294901760
    %941 = vmatpush.msra.mxu0 %v940
    %v942 = vand.u32 %v45, 4294901760
    %943 = vmatmul.f32.gmra.mxu0 %v942
    %v944 = vpop.f32.mrf.mxu0
    %v945 = vadd.f32 %v912, %v944
    %946 = vdwg.mxu0
    %947 = vmatpush.msra.mxu0 0.0
    %948 = vmatpush.msra.mxu0 0.0
    %949 = vmatpush.msra.mxu0 0.0
    %950 = vmatpush.msra.mxu0 0.0
    %951 = vmatpush.msra.mxu0 0.0
    %952 = vmatpush.msra.mxu0 0.0
    %953 = vmatpush.msra.mxu0 0.0
    %954 = vmatpush.msra.mxu0 0.0
    %955 = vmatpush.msra.mxu0 0.0
    %956 = vmatpush.msra.mxu0 0.0
    %957 = vmatpush.msra.mxu0 0.0
    %958 = vmatpush.msra.mxu0 0.0
    %v959 = vand.u32 %v42, 4294901760
    %960 = vmatpush.msra.mxu0 %v959
    %v961 = vand.u32 %v37, 4294901760
    %962 = vmatpush.msra.mxu0 %v961
    %v963 = vand.u32 %v32, 4294901760
    %964 = vmatpush.msra.mxu0 %v963
    %v965 = vand.u32 %v27, 4294901760
    %966 = vmatpush.msra.mxu0 %v965
    %v967 = vand.u32 %v45, 4294901760
    %968 = vmatmul.f32.gmra.mxu0 %v967
    %v969 = vpop.f32.mrf.mxu0
    %v970 = vadd.f32 %v945, %v969
    %971 = vdwg.mxu0
    %v972 = vld [vmem:[%s3] sm:$0xff]
    %v973 = vld [vmem:[%s3 + $0x8] sm:$0xff]
    %v974 = vld [vmem:[%s3 + $0x10] sm:$0xff]
    %v975 = vld [vmem:[%s3 + $0x18] sm:$0xff]
    %v976 = vld [vmem:[%s3 + $0x20] sm:$0xff]
    %v977 = vld [vmem:[%s3 + $0x28] sm:$0xff]
    %v978 = vld [vmem:[%s3 + $0x30] sm:$0xff]
    %v979 = vld [vmem:[%s3 + $0x38] sm:$0xff]
    %v980 = vunpack.c.l.bf16 %v972
    %v981 = vunpack.c.h.bf16 %v972
    %v982 = vunpack.c.l.bf16 %v973
    %v983 = vunpack.c.h.bf16 %v973
    %v984 = vunpack.c.l.bf16 %v974
    %v985 = vunpack.c.h.bf16 %v974
    %v986 = vunpack.c.l.bf16 %v975
    %v987 = vunpack.c.h.bf16 %v975
    %v988 = vunpack.c.l.bf16 %v976
    %v989 = vunpack.c.h.bf16 %v976
    %v990 = vunpack.c.l.bf16 %v977
    %v991 = vunpack.c.h.bf16 %v977
    %v992 = vunpack.c.l.bf16 %v978
    %v993 = vunpack.c.h.bf16 %v978
    %v994 = vunpack.c.l.bf16 %v979
    %v995 = vunpack.c.h.bf16 %v979
    %v997 = vsel %vm43, %v22, 0
    %999 = vmatpush.msra.mxu0 0.0
    %1000 = vmatpush.msra.mxu0 0.0
    %1001 = vmatpush.msra.mxu0 0.0
    %1002 = vmatpush.msra.mxu0 0.0
    %1003 = vmatpush.msra.mxu0 0.0
    %1004 = vmatpush.msra.mxu0 0.0
    %1005 = vmatpush.msra.mxu0 0.0
    %1006 = vmatpush.msra.mxu0 0.0
    %1007 = vmatpush.msra.mxu0 0.0
    %1008 = vmatpush.msra.mxu0 0.0
    %1009 = vmatpush.msra.mxu0 0.0
    %1010 = vmatpush.msra.mxu0 0.0
    %1011 = vmatpush.msra.mxu0 %v992
    %1012 = vmatpush.msra.mxu0 %v988
    %1013 = vmatpush.msra.mxu0 %v984
    %1014 = vmatpush.msra.mxu0 %v980
    %v1015 = vand.u32 %v997, 4294901760
    %v1016 = vsub.f32 %v997, %v1015
    %v1017 = vand.u32 %v1016, 4294901760
    %v1018 = vsub.f32 %v1016, %v1017
    %v1019 = vand.u32 %v1018, 4294901760
    %1020 = vmatmul.f32.gmra.mxu0 %v1019
    %v1021 = vpop.f32.mrf.mxu0
    %v1022 = vadd.f32 0.0, %v1021
    %1023 = vdwg.mxu0
    %1024 = vmatpush.msra.mxu0 0.0
    %1025 = vmatpush.msra.mxu0 0.0
    %1026 = vmatpush.msra.mxu0 0.0
    %1027 = vmatpush.msra.mxu0 0.0
    %1028 = vmatpush.msra.mxu0 0.0
    %1029 = vmatpush.msra.mxu0 0.0
    %1030 = vmatpush.msra.mxu0 0.0
    %1031 = vmatpush.msra.mxu0 0.0
    %1032 = vmatpush.msra.mxu0 0.0
    %1033 = vmatpush.msra.mxu0 0.0
    %1034 = vmatpush.msra.mxu0 0.0
    %1035 = vmatpush.msra.mxu0 0.0
    %v1036 = vsub.f32 %v992, %v992
    %v1037 = vand.u32 %v1036, 4294901760
    %v1038 = vsub.f32 %v1036, %v1037
    %v1039 = vand.u32 %v1038, 4294901760
    %1040 = vmatpush.msra.mxu0 %v1039
    %v1041 = vsub.f32 %v988, %v988
    %v1042 = vand.u32 %v1041, 4294901760
    %v1043 = vsub.f32 %v1041, %v1042
    %v1044 = vand.u32 %v1043, 4294901760
    %1045 = vmatpush.msra.mxu0 %v1044
    %v1046 = vsub.f32 %v984, %v984
    %v1047 = vand.u32 %v1046, 4294901760
    %v1048 = vsub.f32 %v1046, %v1047
    %v1049 = vand.u32 %v1048, 4294901760
    %1050 = vmatpush.msra.mxu0 %v1049
    %v1051 = vsub.f32 %v980, %v980
    %v1052 = vand.u32 %v1051, 4294901760
    %v1053 = vsub.f32 %v1051, %v1052
    %v1054 = vand.u32 %v1053, 4294901760
    %1055 = vmatpush.msra.mxu0 %v1054
    %v1056 = vand.u32 %v997, 4294901760
    %1057 = vmatmul.f32.gmra.mxu0 %v1056
    %v1058 = vpop.f32.mrf.mxu0
    %v1059 = vadd.f32 %v1022, %v1058
    %1060 = vdwg.mxu0
    %1061 = vmatpush.msra.mxu0 0.0
    %1062 = vmatpush.msra.mxu0 0.0
    %1063 = vmatpush.msra.mxu0 0.0
    %1064 = vmatpush.msra.mxu0 0.0
    %1065 = vmatpush.msra.mxu0 0.0
    %1066 = vmatpush.msra.mxu0 0.0
    %1067 = vmatpush.msra.mxu0 0.0
    %1068 = vmatpush.msra.mxu0 0.0
    %1069 = vmatpush.msra.mxu0 0.0
    %1070 = vmatpush.msra.mxu0 0.0
    %1071 = vmatpush.msra.mxu0 0.0
    %1072 = vmatpush.msra.mxu0 0.0
    %v1073 = vsub.f32 %v992, %v992
    %1074 = vmatpush.msra.mxu0 %v1073
    %v1075 = vsub.f32 %v988, %v988
    %1076 = vmatpush.msra.mxu0 %v1075
    %v1077 = vsub.f32 %v984, %v984
    %1078 = vmatpush.msra.mxu0 %v1077
    %v1079 = vsub.f32 %v980, %v980
    %1080 = vmatpush.msra.mxu0 %v1079
    %v1081 = vand.u32 %v997, 4294901760
    %v1082 = vsub.f32 %v997, %v1081
    %1083 = vmatmul.f32.gmra.mxu0 %v1082
    %v1084 = vpop.f32.mrf.mxu0
    %v1085 = vadd.f32 %v1059, %v1084
    %1086 = vdwg.mxu0
    %1087 = vmatpush.msra.mxu0 0.0
    %1088 = vmatpush.msra.mxu0 0.0
    %1089 = vmatpush.msra.mxu0 0.0
    %1090 = vmatpush.msra.mxu0 0.0
    %1091 = vmatpush.msra.mxu0 0.0
    %1092 = vmatpush.msra.mxu0 0.0
    %1093 = vmatpush.msra.mxu0 0.0
    %1094 = vmatpush.msra.mxu0 0.0
    %1095 = vmatpush.msra.mxu0 0.0
    %1096 = vmatpush.msra.mxu0 0.0
    %1097 = vmatpush.msra.mxu0 0.0
    %1098 = vmatpush.msra.mxu0 0.0
    %1099 = vmatpush.msra.mxu0 %v992
    %1100 = vmatpush.msra.mxu0 %v988
    %1101 = vmatpush.msra.mxu0 %v984
    %1102 = vmatpush.msra.mxu0 %v980
    %v1103 = vand.u32 %v997, 4294901760
    %v1104 = vsub.f32 %v997, %v1103
    %v1105 = vand.u32 %v1104, 4294901760
    %1106 = vmatmul.f32.gmra.mxu0 %v1105
    %v1107 = vpop.f32.mrf.mxu0
    %v1108 = vadd.f32 %v1085, %v1107
    %1109 = vdwg.mxu0
    %1110 = vmatpush.msra.mxu0 0.0
    %1111 = vmatpush.msra.mxu0 0.0
    %1112 = vmatpush.msra.mxu0 0.0
    %1113 = vmatpush.msra.mxu0 0.0
    %1114 = vmatpush.msra.mxu0 0.0
    %1115 = vmatpush.msra.mxu0 0.0
    %1116 = vmatpush.msra.mxu0 0.0
    %1117 = vmatpush.msra.mxu0 0.0
    %1118 = vmatpush.msra.mxu0 0.0
    %1119 = vmatpush.msra.mxu0 0.0
    %1120 = vmatpush.msra.mxu0 0.0
    %1121 = vmatpush.msra.mxu0 0.0
    %v1122 = vsub.f32 %v992, %v992
    %v1123 = vand.u32 %v1122, 4294901760
    %1124 = vmatpush.msra.mxu0 %v1123
    %v1125 = vsub.f32 %v988, %v988
    %v1126 = vand.u32 %v1125, 4294901760
    %1127 = vmatpush.msra.mxu0 %v1126
    %v1128 = vsub.f32 %v984, %v984
    %v1129 = vand.u32 %v1128, 4294901760
    %1130 = vmatpush.msra.mxu0 %v1129
    %v1131 = vsub.f32 %v980, %v980
    %v1132 = vand.u32 %v1131, 4294901760
    %1133 = vmatpush.msra.mxu0 %v1132
    %v1134 = vand.u32 %v997, 4294901760
    %1135 = vmatmul.f32.gmra.mxu0 %v1134
    %v1136 = vpop.f32.mrf.mxu0
    %v1137 = vadd.f32 %v1108, %v1136
    %1138 = vdwg.mxu0
    %1139 = vmatpush.msra.mxu0 0.0
    %1140 = vmatpush.msra.mxu0 0.0
    %1141 = vmatpush.msra.mxu0 0.0
    %1142 = vmatpush.msra.mxu0 0.0
    %1143 = vmatpush.msra.mxu0 0.0
    %1144 = vmatpush.msra.mxu0 0.0
    %1145 = vmatpush.msra.mxu0 0.0
    %1146 = vmatpush.msra.mxu0 0.0
    %1147 = vmatpush.msra.mxu0 0.0
    %1148 = vmatpush.msra.mxu0 0.0
    %1149 = vmatpush.msra.mxu0 0.0
    %1150 = vmatpush.msra.mxu0 0.0
    %1151 = vmatpush.msra.mxu0 %v992
    %1152 = vmatpush.msra.mxu0 %v988
    %1153 = vmatpush.msra.mxu0 %v984
    %1154 = vmatpush.msra.mxu0 %v980
    %v1155 = vand.u32 %v997, 4294901760
    %1156 = vmatmul.f32.gmra.mxu0 %v1155
    %v1157 = vpop.f32.mrf.mxu0
    %v1158 = vadd.f32 %v1137, %v1157
    %1159 = vdwg.mxu0
    %1160 = vmatpush.msra.mxu0 0.0
    %1161 = vmatpush.msra.mxu0 0.0
    %1162 = vmatpush.msra.mxu0 0.0
    %1163 = vmatpush.msra.mxu0 0.0
    %1164 = vmatpush.msra.mxu0 0.0
    %1165 = vmatpush.msra.mxu0 0.0
    %1166 = vmatpush.msra.mxu0 0.0
    %1167 = vmatpush.msra.mxu0 0.0
    %1168 = vmatpush.msra.mxu0 0.0
    %1169 = vmatpush.msra.mxu0 0.0
    %1170 = vmatpush.msra.mxu0 0.0
    %1171 = vmatpush.msra.mxu0 0.0
    %1172 = vmatpush.msra.mxu0 %v993
    %1173 = vmatpush.msra.mxu0 %v989
    %1174 = vmatpush.msra.mxu0 %v985
    %1175 = vmatpush.msra.mxu0 %v981
    %v1176 = vand.u32 %v997, 4294901760
    %v1177 = vsub.f32 %v997, %v1176
    %v1178 = vand.u32 %v1177, 4294901760
    %v1179 = vsub.f32 %v1177, %v1178
    %v1180 = vand.u32 %v1179, 4294901760
    %1181 = vmatmul.f32.gmra.mxu0 %v1180
    %v1182 = vpop.f32.mrf.mxu0
    %v1183 = vadd.f32 0.0, %v1182
    %1184 = vdwg.mxu0
    %1185 = vmatpush.msra.mxu0 0.0
    %1186 = vmatpush.msra.mxu0 0.0
    %1187 = vmatpush.msra.mxu0 0.0
    %1188 = vmatpush.msra.mxu0 0.0
    %1189 = vmatpush.msra.mxu0 0.0
    %1190 = vmatpush.msra.mxu0 0.0
    %1191 = vmatpush.msra.mxu0 0.0
    %1192 = vmatpush.msra.mxu0 0.0
    %1193 = vmatpush.msra.mxu0 0.0
    %1194 = vmatpush.msra.mxu0 0.0
    %1195 = vmatpush.msra.mxu0 0.0
    %1196 = vmatpush.msra.mxu0 0.0
    %v1197 = vsub.f32 %v993, %v993
    %v1198 = vand.u32 %v1197, 4294901760
    %v1199 = vsub.f32 %v1197, %v1198
    %v1200 = vand.u32 %v1199, 4294901760
    %1201 = vmatpush.msra.mxu0 %v1200
    %v1202 = vsub.f32 %v989, %v989
    %v1203 = vand.u32 %v1202, 4294901760
    %v1204 = vsub.f32 %v1202, %v1203
    %v1205 = vand.u32 %v1204, 4294901760
    %1206 = vmatpush.msra.mxu0 %v1205
    %v1207 = vsub.f32 %v985, %v985
    %v1208 = vand.u32 %v1207, 4294901760
    %v1209 = vsub.f32 %v1207, %v1208
    %v1210 = vand.u32 %v1209, 4294901760
    %1211 = vmatpush.msra.mxu0 %v1210
    %v1212 = vsub.f32 %v981, %v981
    %v1213 = vand.u32 %v1212, 4294901760
    %v1214 = vsub.f32 %v1212, %v1213
    %v1215 = vand.u32 %v1214, 4294901760
    %1216 = vmatpush.msra.mxu0 %v1215
    %v1217 = vand.u32 %v997, 4294901760
    %1218 = vmatmul.f32.gmra.mxu0 %v1217
    %v1219 = vpop.f32.mrf.mxu0
    %v1220 = vadd.f32 %v1183, %v1219
    %1221 = vdwg.mxu0
    %1222 = vmatpush.msra.mxu0 0.0
    %1223 = vmatpush.msra.mxu0 0.0
    %1224 = vmatpush.msra.mxu0 0.0
    %1225 = vmatpush.msra.mxu0 0.0
    %1226 = vmatpush.msra.mxu0 0.0
    %1227 = vmatpush.msra.mxu0 0.0
    %1228 = vmatpush.msra.mxu0 0.0
    %1229 = vmatpush.msra.mxu0 0.0
    %1230 = vmatpush.msra.mxu0 0.0
    %1231 = vmatpush.msra.mxu0 0.0
    %1232 = vmatpush.msra.mxu0 0.0
    %1233 = vmatpush.msra.mxu0 0.0
    %v1234 = vsub.f32 %v993, %v993
    %1235 = vmatpush.msra.mxu0 %v1234
    %v1236 = vsub.f32 %v989, %v989
    %1237 = vmatpush.msra.mxu0 %v1236
    %v1238 = vsub.f32 %v985, %v985
    %1239 = vmatpush.msra.mxu0 %v1238
    %v1240 = vsub.f32 %v981, %v981
    %1241 = vmatpush.msra.mxu0 %v1240
    %v1242 = vand.u32 %v997, 4294901760
    %v1243 = vsub.f32 %v997, %v1242
    %1244 = vmatmul.f32.gmra.mxu0 %v1243
    %v1245 = vpop.f32.mrf.mxu0
    %v1246 = vadd.f32 %v1220, %v1245
    %1247 = vdwg.mxu0
    %1248 = vmatpush.msra.mxu0 0.0
    %1249 = vmatpush.msra.mxu0 0.0
    %1250 = vmatpush.msra.mxu0 0.0
    %1251 = vmatpush.msra.mxu0 0.0
    %1252 = vmatpush.msra.mxu0 0.0
    %1253 = vmatpush.msra.mxu0 0.0
    %1254 = vmatpush.msra.mxu0 0.0
    %1255 = vmatpush.msra.mxu0 0.0
    %1256 = vmatpush.msra.mxu0 0.0
    %1257 = vmatpush.msra.mxu0 0.0
    %1258 = vmatpush.msra.mxu0 0.0
    %1259 = vmatpush.msra.mxu0 0.0
    %1260 = vmatpush.msra.mxu0 %v993
    %1261 = vmatpush.msra.mxu0 %v989
    %1262 = vmatpush.msra.mxu0 %v985
    %1263 = vmatpush.msra.mxu0 %v981
    %v1264 = vand.u32 %v997, 4294901760
    %v1265 = vsub.f32 %v997, %v1264
    %v1266 = vand.u32 %v1265, 4294901760
    %1267 = vmatmul.f32.gmra.mxu0 %v1266
    %v1268 = vpop.f32.mrf.mxu0
    %v1269 = vadd.f32 %v1246, %v1268
    %1270 = vdwg.mxu0
    %1271 = vmatpush.msra.mxu0 0.0
    %1272 = vmatpush.msra.mxu0 0.0
    %1273 = vmatpush.msra.mxu0 0.0
    %1274 = vmatpush.msra.mxu0 0.0
    %1275 = vmatpush.msra.mxu0 0.0
    %1276 = vmatpush.msra.mxu0 0.0
    %1277 = vmatpush.msra.mxu0 0.0
    %1278 = vmatpush.msra.mxu0 0.0
    %1279 = vmatpush.msra.mxu0 0.0
    %1280 = vmatpush.msra.mxu0 0.0
    %1281 = vmatpush.msra.mxu0 0.0
    %1282 = vmatpush.msra.mxu0 0.0
    %v1283 = vsub.f32 %v993, %v993
    %v1284 = vand.u32 %v1283, 4294901760
    %1285 = vmatpush.msra.mxu0 %v1284
    %v1286 = vsub.f32 %v989, %v989
    %v1287 = vand.u32 %v1286, 4294901760
    %1288 = vmatpush.msra.mxu0 %v1287
    %v1289 = vsub.f32 %v985, %v985
    %v1290 = vand.u32 %v1289, 4294901760
    %1291 = vmatpush.msra.mxu0 %v1290
    %v1292 = vsub.f32 %v981, %v981
    %v1293 = vand.u32 %v1292, 4294901760
    %1294 = vmatpush.msra.mxu0 %v1293
    %v1295 = vand.u32 %v997, 4294901760
    %1296 = vmatmul.f32.gmra.mxu0 %v1295
    %v1297 = vpop.f32.mrf.mxu0
    %v1298 = vadd.f32 %v1269, %v1297
    %1299 = vdwg.mxu0
    %1300 = vmatpush.msra.mxu0 0.0
    %1301 = vmatpush.msra.mxu0 0.0
    %1302 = vmatpush.msra.mxu0 0.0
    %1303 = vmatpush.msra.mxu0 0.0
    %1304 = vmatpush.msra.mxu0 0.0
    %1305 = vmatpush.msra.mxu0 0.0
    %1306 = vmatpush.msra.mxu0 0.0
    %1307 = vmatpush.msra.mxu0 0.0
    %1308 = vmatpush.msra.mxu0 0.0
    %1309 = vmatpush.msra.mxu0 0.0
    %1310 = vmatpush.msra.mxu0 0.0
    %1311 = vmatpush.msra.mxu0 0.0
    %1312 = vmatpush.msra.mxu0 %v993
    %1313 = vmatpush.msra.mxu0 %v989
    %1314 = vmatpush.msra.mxu0 %v985
    %1315 = vmatpush.msra.mxu0 %v981
    %v1316 = vand.u32 %v997, 4294901760
    %1317 = vmatmul.f32.gmra.mxu0 %v1316
    %v1318 = vpop.f32.mrf.mxu0
    %v1319 = vadd.f32 %v1298, %v1318
    %1320 = vdwg.mxu0
    %1321 = vmatpush.msra.mxu0 0.0
    %1322 = vmatpush.msra.mxu0 0.0
    %1323 = vmatpush.msra.mxu0 0.0
    %1324 = vmatpush.msra.mxu0 0.0
    %1325 = vmatpush.msra.mxu0 0.0
    %1326 = vmatpush.msra.mxu0 0.0
    %1327 = vmatpush.msra.mxu0 0.0
    %1328 = vmatpush.msra.mxu0 0.0
    %1329 = vmatpush.msra.mxu0 0.0
    %1330 = vmatpush.msra.mxu0 0.0
    %1331 = vmatpush.msra.mxu0 0.0
    %1332 = vmatpush.msra.mxu0 0.0
    %1333 = vmatpush.msra.mxu0 %v994
    %1334 = vmatpush.msra.mxu0 %v990
    %1335 = vmatpush.msra.mxu0 %v986
    %1336 = vmatpush.msra.mxu0 %v982
    %v1337 = vand.u32 %v997, 4294901760
    %v1338 = vsub.f32 %v997, %v1337
    %v1339 = vand.u32 %v1338, 4294901760
    %v1340 = vsub.f32 %v1338, %v1339
    %v1341 = vand.u32 %v1340, 4294901760
    %1342 = vmatmul.f32.gmra.mxu0 %v1341
    %v1343 = vpop.f32.mrf.mxu0
    %v1344 = vadd.f32 0.0, %v1343
    %1345 = vdwg.mxu0
    %1346 = vmatpush.msra.mxu0 0.0
    %1347 = vmatpush.msra.mxu0 0.0
    %1348 = vmatpush.msra.mxu0 0.0
    %1349 = vmatpush.msra.mxu0 0.0
    %1350 = vmatpush.msra.mxu0 0.0
    %1351 = vmatpush.msra.mxu0 0.0
    %1352 = vmatpush.msra.mxu0 0.0
    %1353 = vmatpush.msra.mxu0 0.0
    %1354 = vmatpush.msra.mxu0 0.0
    %1355 = vmatpush.msra.mxu0 0.0
    %1356 = vmatpush.msra.mxu0 0.0
    %1357 = vmatpush.msra.mxu0 0.0
    %v1358 = vsub.f32 %v994, %v994
    %v1359 = vand.u32 %v1358, 4294901760
    %v1360 = vsub.f32 %v1358, %v1359
    %v1361 = vand.u32 %v1360, 4294901760
    %1362 = vmatpush.msra.mxu0 %v1361
    %v1363 = vsub.f32 %v990, %v990
    %v1364 = vand.u32 %v1363, 4294901760
    %v1365 = vsub.f32 %v1363, %v1364
    %v1366 = vand.u32 %v1365, 4294901760
    %1367 = vmatpush.msra.mxu0 %v1366
    %v1368 = vsub.f32 %v986, %v986
    %v1369 = vand.u32 %v1368, 4294901760
    %v1370 = vsub.f32 %v1368, %v1369
    %v1371 = vand.u32 %v1370, 4294901760
    %1372 = vmatpush.msra.mxu0 %v1371
    %v1373 = vsub.f32 %v982, %v982
    %v1374 = vand.u32 %v1373, 4294901760
    %v1375 = vsub.f32 %v1373, %v1374
    %v1376 = vand.u32 %v1375, 4294901760
    %1377 = vmatpush.msra.mxu0 %v1376
    %v1378 = vand.u32 %v997, 4294901760
    %1379 = vmatmul.f32.gmra.mxu0 %v1378
    %v1380 = vpop.f32.mrf.mxu0
    %v1381 = vadd.f32 %v1344, %v1380
    %1382 = vdwg.mxu0
    %1383 = vmatpush.msra.mxu0 0.0
    %1384 = vmatpush.msra.mxu0 0.0
    %1385 = vmatpush.msra.mxu0 0.0
    %1386 = vmatpush.msra.mxu0 0.0
    %1387 = vmatpush.msra.mxu0 0.0
    %1388 = vmatpush.msra.mxu0 0.0
    %1389 = vmatpush.msra.mxu0 0.0
    %1390 = vmatpush.msra.mxu0 0.0
    %1391 = vmatpush.msra.mxu0 0.0
    %1392 = vmatpush.msra.mxu0 0.0
    %1393 = vmatpush.msra.mxu0 0.0
    %1394 = vmatpush.msra.mxu0 0.0
    %v1395 = vsub.f32 %v994, %v994
    %1396 = vmatpush.msra.mxu0 %v1395
    %v1397 = vsub.f32 %v990, %v990
    %1398 = vmatpush.msra.mxu0 %v1397
    %v1399 = vsub.f32 %v986, %v986
    %1400 = vmatpush.msra.mxu0 %v1399
    %v1401 = vsub.f32 %v982, %v982
    %1402 = vmatpush.msra.mxu0 %v1401
    %v1403 = vand.u32 %v997, 4294901760
    %v1404 = vsub.f32 %v997, %v1403
    %1405 = vmatmul.f32.gmra.mxu0 %v1404
    %v1406 = vpop.f32.mrf.mxu0
    %v1407 = vadd.f32 %v1381, %v1406
    %1408 = vdwg.mxu0
    %1409 = vmatpush.msra.mxu0 0.0
    %1410 = vmatpush.msra.mxu0 0.0
    %1411 = vmatpush.msra.mxu0 0.0
    %1412 = vmatpush.msra.mxu0 0.0
    %1413 = vmatpush.msra.mxu0 0.0
    %1414 = vmatpush.msra.mxu0 0.0
    %1415 = vmatpush.msra.mxu0 0.0
    %1416 = vmatpush.msra.mxu0 0.0
    %1417 = vmatpush.msra.mxu0 0.0
    %1418 = vmatpush.msra.mxu0 0.0
    %1419 = vmatpush.msra.mxu0 0.0
    %1420 = vmatpush.msra.mxu0 0.0
    %1421 = vmatpush.msra.mxu0 %v994
    %1422 = vmatpush.msra.mxu0 %v990
    %1423 = vmatpush.msra.mxu0 %v986
    %1424 = vmatpush.msra.mxu0 %v982
    %v1425 = vand.u32 %v997, 4294901760
    %v1426 = vsub.f32 %v997, %v1425
    %v1427 = vand.u32 %v1426, 4294901760
    %1428 = vmatmul.f32.gmra.mxu0 %v1427
    %v1429 = vpop.f32.mrf.mxu0
    %v1430 = vadd.f32 %v1407, %v1429
    %1431 = vdwg.mxu0
    %1432 = vmatpush.msra.mxu0 0.0
    %1433 = vmatpush.msra.mxu0 0.0
    %1434 = vmatpush.msra.mxu0 0.0
    %1435 = vmatpush.msra.mxu0 0.0
    %1436 = vmatpush.msra.mxu0 0.0
    %1437 = vmatpush.msra.mxu0 0.0
    %1438 = vmatpush.msra.mxu0 0.0
    %1439 = vmatpush.msra.mxu0 0.0
    %1440 = vmatpush.msra.mxu0 0.0
    %1441 = vmatpush.msra.mxu0 0.0
    %1442 = vmatpush.msra.mxu0 0.0
    %1443 = vmatpush.msra.mxu0 0.0
    %v1444 = vsub.f32 %v994, %v994
    %v1445 = vand.u32 %v1444, 4294901760
    %1446 = vmatpush.msra.mxu0 %v1445
    %v1447 = vsub.f32 %v990, %v990
    %v1448 = vand.u32 %v1447, 4294901760
    %1449 = vmatpush.msra.mxu0 %v1448
    %v1450 = vsub.f32 %v986, %v986
    %v1451 = vand.u32 %v1450, 4294901760
    %1452 = vmatpush.msra.mxu0 %v1451
    %v1453 = vsub.f32 %v982, %v982
    %v1454 = vand.u32 %v1453, 4294901760
    %1455 = vmatpush.msra.mxu0 %v1454
    %v1456 = vand.u32 %v997, 4294901760
    %1457 = vmatmul.f32.gmra.mxu0 %v1456
    %v1458 = vpop.f32.mrf.mxu0
    %v1459 = vadd.f32 %v1430, %v1458
    %1460 = vdwg.mxu0
    %1461 = vmatpush.msra.mxu0 0.0
    %1462 = vmatpush.msra.mxu0 0.0
    %1463 = vmatpush.msra.mxu0 0.0
    %1464 = vmatpush.msra.mxu0 0.0
    %1465 = vmatpush.msra.mxu0 0.0
    %1466 = vmatpush.msra.mxu0 0.0
    %1467 = vmatpush.msra.mxu0 0.0
    %1468 = vmatpush.msra.mxu0 0.0
    %1469 = vmatpush.msra.mxu0 0.0
    %1470 = vmatpush.msra.mxu0 0.0
    %1471 = vmatpush.msra.mxu0 0.0
    %1472 = vmatpush.msra.mxu0 0.0
    %1473 = vmatpush.msra.mxu0 %v994
    %1474 = vmatpush.msra.mxu0 %v990
    %1475 = vmatpush.msra.mxu0 %v986
    %1476 = vmatpush.msra.mxu0 %v982
    %v1477 = vand.u32 %v997, 4294901760
    %1478 = vmatmul.f32.gmra.mxu0 %v1477
    %v1479 = vpop.f32.mrf.mxu0
    %v1480 = vadd.f32 %v1459, %v1479
    %1481 = vdwg.mxu0
    %1482 = vmatpush.msra.mxu0 0.0
    %1483 = vmatpush.msra.mxu0 0.0
    %1484 = vmatpush.msra.mxu0 0.0
    %1485 = vmatpush.msra.mxu0 0.0
    %1486 = vmatpush.msra.mxu0 0.0
    %1487 = vmatpush.msra.mxu0 0.0
    %1488 = vmatpush.msra.mxu0 0.0
    %1489 = vmatpush.msra.mxu0 0.0
    %1490 = vmatpush.msra.mxu0 0.0
    %1491 = vmatpush.msra.mxu0 0.0
    %1492 = vmatpush.msra.mxu0 0.0
    %1493 = vmatpush.msra.mxu0 0.0
    %1494 = vmatpush.msra.mxu0 %v995
    %1495 = vmatpush.msra.mxu0 %v991
    %1496 = vmatpush.msra.mxu0 %v987
    %1497 = vmatpush.msra.mxu0 %v983
    %v1498 = vand.u32 %v997, 4294901760
    %v1499 = vsub.f32 %v997, %v1498
    %v1500 = vand.u32 %v1499, 4294901760
    %v1501 = vsub.f32 %v1499, %v1500
    %v1502 = vand.u32 %v1501, 4294901760
    %1503 = vmatmul.f32.gmra.mxu0 %v1502
    %v1504 = vpop.f32.mrf.mxu0
    %v1505 = vadd.f32 0.0, %v1504
    %1506 = vdwg.mxu0
    %1507 = vmatpush.msra.mxu0 0.0
    %1508 = vmatpush.msra.mxu0 0.0
    %1509 = vmatpush.msra.mxu0 0.0
    %1510 = vmatpush.msra.mxu0 0.0
    %1511 = vmatpush.msra.mxu0 0.0
    %1512 = vmatpush.msra.mxu0 0.0
    %1513 = vmatpush.msra.mxu0 0.0
    %1514 = vmatpush.msra.mxu0 0.0
    %1515 = vmatpush.msra.mxu0 0.0
    %1516 = vmatpush.msra.mxu0 0.0
    %1517 = vmatpush.msra.mxu0 0.0
    %1518 = vmatpush.msra.mxu0 0.0
    %v1519 = vsub.f32 %v995, %v995
    %v1520 = vand.u32 %v1519, 4294901760
    %v1521 = vsub.f32 %v1519, %v1520
    %v1522 = vand.u32 %v1521, 4294901760
    %1523 = vmatpush.msra.mxu0 %v1522
    %v1524 = vsub.f32 %v991, %v991
    %v1525 = vand.u32 %v1524, 4294901760
    %v1526 = vsub.f32 %v1524, %v1525
    %v1527 = vand.u32 %v1526, 4294901760
    %1528 = vmatpush.msra.mxu0 %v1527
    %v1529 = vsub.f32 %v987, %v987
    %v1530 = vand.u32 %v1529, 4294901760
    %v1531 = vsub.f32 %v1529, %v1530
    %v1532 = vand.u32 %v1531, 4294901760
    %1533 = vmatpush.msra.mxu0 %v1532
    %v1534 = vsub.f32 %v983, %v983
    %v1535 = vand.u32 %v1534, 4294901760
    %v1536 = vsub.f32 %v1534, %v1535
    %v1537 = vand.u32 %v1536, 4294901760
    %1538 = vmatpush.msra.mxu0 %v1537
    %v1539 = vand.u32 %v997, 4294901760
    %1540 = vmatmul.f32.gmra.mxu0 %v1539
    %v1541 = vpop.f32.mrf.mxu0
    %v1542 = vadd.f32 %v1505, %v1541
    %1543 = vdwg.mxu0
    %1544 = vmatpush.msra.mxu0 0.0
    %1545 = vmatpush.msra.mxu0 0.0
    %1546 = vmatpush.msra.mxu0 0.0
    %1547 = vmatpush.msra.mxu0 0.0
    %1548 = vmatpush.msra.mxu0 0.0
    %1549 = vmatpush.msra.mxu0 0.0
    %1550 = vmatpush.msra.mxu0 0.0
    %1551 = vmatpush.msra.mxu0 0.0
    %1552 = vmatpush.msra.mxu0 0.0
    %1553 = vmatpush.msra.mxu0 0.0
    %1554 = vmatpush.msra.mxu0 0.0
    %1555 = vmatpush.msra.mxu0 0.0
    %v1556 = vsub.f32 %v995, %v995
    %1557 = vmatpush.msra.mxu0 %v1556
    %v1558 = vsub.f32 %v991, %v991
    %1559 = vmatpush.msra.mxu0 %v1558
    %v1560 = vsub.f32 %v987, %v987
    %1561 = vmatpush.msra.mxu0 %v1560
    %v1562 = vsub.f32 %v983, %v983
    %1563 = vmatpush.msra.mxu0 %v1562
    %v1564 = vand.u32 %v997, 4294901760
    %v1565 = vsub.f32 %v997, %v1564
    %1566 = vmatmul.f32.gmra.mxu0 %v1565
    %v1567 = vpop.f32.mrf.mxu0
    %v1568 = vadd.f32 %v1542, %v1567
    %1569 = vdwg.mxu0
    %1570 = vmatpush.msra.mxu0 0.0
    %1571 = vmatpush.msra.mxu0 0.0
    %1572 = vmatpush.msra.mxu0 0.0
    %1573 = vmatpush.msra.mxu0 0.0
    %1574 = vmatpush.msra.mxu0 0.0
    %1575 = vmatpush.msra.mxu0 0.0
    %1576 = vmatpush.msra.mxu0 0.0
    %1577 = vmatpush.msra.mxu0 0.0
    %1578 = vmatpush.msra.mxu0 0.0
    %1579 = vmatpush.msra.mxu0 0.0
    %1580 = vmatpush.msra.mxu0 0.0
    %1581 = vmatpush.msra.mxu0 0.0
    %1582 = vmatpush.msra.mxu0 %v995
    %1583 = vmatpush.msra.mxu0 %v991
    %1584 = vmatpush.msra.mxu0 %v987
    %1585 = vmatpush.msra.mxu0 %v983
    %v1586 = vand.u32 %v997, 4294901760
    %v1587 = vsub.f32 %v997, %v1586
    %v1588 = vand.u32 %v1587, 4294901760
    %1589 = vmatmul.f32.gmra.mxu0 %v1588
    %v1590 = vpop.f32.mrf.mxu0
    %v1591 = vadd.f32 %v1568, %v1590
    %1592 = vdwg.mxu0
    %1593 = vmatpush.msra.mxu0 0.0
    %1594 = vmatpush.msra.mxu0 0.0
    %1595 = vmatpush.msra.mxu0 0.0
    %1596 = vmatpush.msra.mxu0 0.0
    %1597 = vmatpush.msra.mxu0 0.0
    %1598 = vmatpush.msra.mxu0 0.0
    %1599 = vmatpush.msra.mxu0 0.0
    %1600 = vmatpush.msra.mxu0 0.0
    %1601 = vmatpush.msra.mxu0 0.0
    %1602 = vmatpush.msra.mxu0 0.0
    %1603 = vmatpush.msra.mxu0 0.0
    %1604 = vmatpush.msra.mxu0 0.0
    %v1605 = vsub.f32 %v995, %v995
    %v1606 = vand.u32 %v1605, 4294901760
    %1607 = vmatpush.msra.mxu0 %v1606
    %v1608 = vsub.f32 %v991, %v991
    %v1609 = vand.u32 %v1608, 4294901760
    %1610 = vmatpush.msra.mxu0 %v1609
    %v1611 = vsub.f32 %v987, %v987
    %v1612 = vand.u32 %v1611, 4294901760
    %1613 = vmatpush.msra.mxu0 %v1612
    %v1614 = vsub.f32 %v983, %v983
    %v1615 = vand.u32 %v1614, 4294901760
    %1616 = vmatpush.msra.mxu0 %v1615
    %v1617 = vand.u32 %v997, 4294901760
    %1618 = vmatmul.f32.gmra.mxu0 %v1617
    %v1619 = vpop.f32.mrf.mxu0
    %v1620 = vadd.f32 %v1591, %v1619
    %1621 = vdwg.mxu0
    %1622 = vmatpush.msra.mxu0 0.0
    %1623 = vmatpush.msra.mxu0 0.0
    %1624 = vmatpush.msra.mxu0 0.0
    %1625 = vmatpush.msra.mxu0 0.0
    %1626 = vmatpush.msra.mxu0 0.0
    %1627 = vmatpush.msra.mxu0 0.0
    %1628 = vmatpush.msra.mxu0 0.0
    %1629 = vmatpush.msra.mxu0 0.0
    %1630 = vmatpush.msra.mxu0 0.0
    %1631 = vmatpush.msra.mxu0 0.0
    %1632 = vmatpush.msra.mxu0 0.0
    %1633 = vmatpush.msra.mxu0 0.0
    %1634 = vmatpush.msra.mxu0 %v995
    %1635 = vmatpush.msra.mxu0 %v991
    %1636 = vmatpush.msra.mxu0 %v987
    %1637 = vmatpush.msra.mxu0 %v983
    %v1638 = vand.u32 %v997, 4294901760
    %1639 = vmatmul.f32.gmra.mxu0 %v1638
    %v1640 = vpop.f32.mrf.mxu0
    %v1641 = vadd.f32 %v1620, %v1640
    %1642 = vdwg.mxu0
    %v1643 = vmul.f32 %v230, %v1158
    %v1644 = vmul.f32 %v415, %v1319
    %v1645 = vmul.f32 %v600, %v1480
    %v1646 = vmul.f32 %v785, %v1641
    %v1647 = vld [vmem:[%s4] sm:$0xff]
    %v1648 = vld [vmem:[%s4 + $0x8] sm:$0xff]
    %v1649 = vld [vmem:[%s4 + $0x10] sm:$0xff]
    %v1650 = vld [vmem:[%s4 + $0x18] sm:$0xff]
    %v1651 = vld [vmem:[%s4 + $0x20] sm:$0xff]
    %v1652 = vld [vmem:[%s4 + $0x28] sm:$0xff]
    %v1653 = vld [vmem:[%s4 + $0x30] sm:$0xff]
    %v1654 = vld [vmem:[%s4 + $0x38] sm:$0xff]
    %v1655 = vld [vmem:[%s4 + $0x40] sm:$0xff]
    %v1656 = vld [vmem:[%s4 + $0x48] sm:$0xff]
    %v1657 = vld [vmem:[%s4 + $0x50] sm:$0xff]
    %v1658 = vld [vmem:[%s4 + $0x58] sm:$0xff]
    %v1659 = vld [vmem:[%s4 + $0x60] sm:$0xff]
    %v1660 = vld [vmem:[%s4 + $0x68] sm:$0xff]
    %v1661 = vld [vmem:[%s4 + $0x70] sm:$0xff]
    %v1662 = vld [vmem:[%s4 + $0x78] sm:$0xff]
    %v1663 = vld [vmem:[%s4 + $0x80] sm:$0xff]
    %v1664 = vld [vmem:[%s4 + $0x88] sm:$0xff]
    %v1665 = vld [vmem:[%s4 + $0x90] sm:$0xff]
    %v1666 = vld [vmem:[%s4 + $0x98] sm:$0xff]
    %v1667 = vld [vmem:[%s4 + $0xa0] sm:$0xff]
    %v1668 = vld [vmem:[%s4 + $0xa8] sm:$0xff]
    %v1669 = vld [vmem:[%s4 + $0xb0] sm:$0xff]
    %v1670 = vld [vmem:[%s4 + $0xb8] sm:$0xff]
    %v1671 = vld [vmem:[%s4 + $0xc0] sm:$0xff]
    %v1672 = vld [vmem:[%s4 + $0xc8] sm:$0xff]
    %v1673 = vld [vmem:[%s4 + $0xd0] sm:$0xff]
    %v1674 = vld [vmem:[%s4 + $0xd8] sm:$0xff]
    %v1675 = vld [vmem:[%s4 + $0xe0] sm:$0xff]
    %v1676 = vld [vmem:[%s4 + $0xe8] sm:$0xff]
    %v1677 = vld [vmem:[%s4 + $0xf0] sm:$0xff]
    %v1678 = vld [vmem:[%s4 + $0xf8] sm:$0xff]
    %v1679 = vld [vmem:[%s4 + $0x100] sm:$0xff]
    %v1680 = vld [vmem:[%s4 + $0x108] sm:$0xff]
    %v1681 = vld [vmem:[%s4 + $0x110] sm:$0xff]
    %v1682 = vld [vmem:[%s4 + $0x118] sm:$0xff]
    %v1683 = vld [vmem:[%s4 + $0x120] sm:$0xff]
    %v1684 = vld [vmem:[%s4 + $0x128] sm:$0xff]
    %v1685 = vld [vmem:[%s4 + $0x130] sm:$0xff]
    %v1686 = vld [vmem:[%s4 + $0x138] sm:$0xff]
    %v1687 = vld [vmem:[%s4 + $0x140] sm:$0xff]
    %v1688 = vld [vmem:[%s4 + $0x148] sm:$0xff]
    %v1689 = vld [vmem:[%s4 + $0x150] sm:$0xff]
    %v1690 = vld [vmem:[%s4 + $0x158] sm:$0xff]
    %v1691 = vld [vmem:[%s4 + $0x160] sm:$0xff]
    %v1692 = vld [vmem:[%s4 + $0x168] sm:$0xff]
    %v1693 = vld [vmem:[%s4 + $0x170] sm:$0xff]
    %v1694 = vld [vmem:[%s4 + $0x178] sm:$0xff]
    %v1695 = vld [vmem:[%s4 + $0x180] sm:$0xff]
    %v1696 = vld [vmem:[%s4 + $0x188] sm:$0xff]
    %v1697 = vld [vmem:[%s4 + $0x190] sm:$0xff]
    %v1698 = vld [vmem:[%s4 + $0x198] sm:$0xff]
    %v1699 = vld [vmem:[%s4 + $0x1a0] sm:$0xff]
    %v1700 = vld [vmem:[%s4 + $0x1a8] sm:$0xff]
    %v1701 = vld [vmem:[%s4 + $0x1b0] sm:$0xff]
    %v1702 = vld [vmem:[%s4 + $0x1b8] sm:$0xff]
    %v1703 = vld [vmem:[%s4 + $0x1c0] sm:$0xff]
    %v1704 = vld [vmem:[%s4 + $0x1c8] sm:$0xff]
    %v1705 = vld [vmem:[%s4 + $0x1d0] sm:$0xff]
    %v1706 = vld [vmem:[%s4 + $0x1d8] sm:$0xff]
    %v1707 = vld [vmem:[%s4 + $0x1e0] sm:$0xff]
    %v1708 = vld [vmem:[%s4 + $0x1e8] sm:$0xff]
    %v1709 = vld [vmem:[%s4 + $0x1f0] sm:$0xff]
    %v1710 = vld [vmem:[%s4 + $0x1f8] sm:$0xff]
    %v1711 = vld [vmem:[%s4 + $0x200] sm:$0xff]
    %v1712 = vld [vmem:[%s4 + $0x208] sm:$0xff]
    %v1713 = vld [vmem:[%s4 + $0x210] sm:$0xff]
    %v1714 = vld [vmem:[%s4 + $0x218] sm:$0xff]
    %1715 = vmatpush.msra.mxu0 0.0
    %1716 = vmatpush.msra.mxu0 0.0
    %1717 = vmatpush.msra.mxu0 0.0
    %1718 = vmatpush.msra.mxu0 0.0
    %1719 = vmatpush.msra.mxu0 0.0
    %1720 = vmatpush.msra.mxu0 0.0
    %1721 = vmatpush.msra.mxu0 0.0
    %1722 = vmatpush.msra.mxu0 0.0
    %1723 = vmatpush.msra.mxu0 0.0
    %1724 = vmatpush.msra.mxu0 0.0
    %1725 = vmatpush.msra.mxu0 0.0
    %1726 = vmatpush.msra.mxu0 0.0
    %v1727 = vand.u32 %v1714, 4294901760
    %1728 = vmatpush.msra.mxu0 %v1727
    %v1729 = vand.u32 %v1713, 4294901760
    %1730 = vmatpush.msra.mxu0 %v1729
    %v1731 = vand.u32 %v1712, 4294901760
    %1732 = vmatpush.msra.mxu0 %v1731
    %v1733 = vand.u32 %v1711, 4294901760
    %1734 = vmatpush.msra.mxu0 %v1733
    %v1735 = vand.u32 %v997, 4294901760
    %v1736 = vsub.f32 %v997, %v1735
    %v1737 = vand.u32 %v1736, 4294901760
    %v1738 = vsub.f32 %v1736, %v1737
    %v1739 = vand.u32 %v1738, 4294901760
    %1740 = vmatmul.f32.gmra.mxu0 %v1739
    %v1741 = vpop.f32.mrf.mxu0
    %v1742 = vadd.f32 0.0, %v1741
    %1743 = vdwg.mxu0
    %1744 = vmatpush.msra.mxu0 0.0
    %1745 = vmatpush.msra.mxu0 0.0
    %1746 = vmatpush.msra.mxu0 0.0
    %1747 = vmatpush.msra.mxu0 0.0
    %1748 = vmatpush.msra.mxu0 0.0
    %1749 = vmatpush.msra.mxu0 0.0
    %1750 = vmatpush.msra.mxu0 0.0
    %1751 = vmatpush.msra.mxu0 0.0
    %1752 = vmatpush.msra.mxu0 0.0
    %1753 = vmatpush.msra.mxu0 0.0
    %1754 = vmatpush.msra.mxu0 0.0
    %1755 = vmatpush.msra.mxu0 0.0
    %v1756 = vand.u32 %v1714, 4294901760
    %v1757 = vsub.f32 %v1714, %v1756
    %v1758 = vand.u32 %v1757, 4294901760
    %v1759 = vsub.f32 %v1757, %v1758
    %v1760 = vand.u32 %v1759, 4294901760
    %1761 = vmatpush.msra.mxu0 %v1760
    %v1762 = vand.u32 %v1713, 4294901760
    %v1763 = vsub.f32 %v1713, %v1762
    %v1764 = vand.u32 %v1763, 4294901760
    %v1765 = vsub.f32 %v1763, %v1764
    %v1766 = vand.u32 %v1765, 4294901760
    %1767 = vmatpush.msra.mxu0 %v1766
    %v1768 = vand.u32 %v1712, 4294901760
    %v1769 = vsub.f32 %v1712, %v1768
    %v1770 = vand.u32 %v1769, 4294901760
    %v1771 = vsub.f32 %v1769, %v1770
    %v1772 = vand.u32 %v1771, 4294901760
    %1773 = vmatpush.msra.mxu0 %v1772
    %v1774 = vand.u32 %v1711, 4294901760
    %v1775 = vsub.f32 %v1711, %v1774
    %v1776 = vand.u32 %v1775, 4294901760
    %v1777 = vsub.f32 %v1775, %v1776
    %v1778 = vand.u32 %v1777, 4294901760
    %1779 = vmatpush.msra.mxu0 %v1778
    %v1780 = vand.u32 %v997, 4294901760
    %1781 = vmatmul.f32.gmra.mxu0 %v1780
    %v1782 = vpop.f32.mrf.mxu0
    %v1783 = vadd.f32 %v1742, %v1782
    %1784 = vdwg.mxu0
    %1785 = vmatpush.msra.mxu0 0.0
    %1786 = vmatpush.msra.mxu0 0.0
    %1787 = vmatpush.msra.mxu0 0.0
    %1788 = vmatpush.msra.mxu0 0.0
    %1789 = vmatpush.msra.mxu0 0.0
    %1790 = vmatpush.msra.mxu0 0.0
    %1791 = vmatpush.msra.mxu0 0.0
    %1792 = vmatpush.msra.mxu0 0.0
    %1793 = vmatpush.msra.mxu0 0.0
    %1794 = vmatpush.msra.mxu0 0.0
    %1795 = vmatpush.msra.mxu0 0.0
    %1796 = vmatpush.msra.mxu0 0.0
    %v1797 = vand.u32 %v1714, 4294901760
    %v1798 = vsub.f32 %v1714, %v1797
    %1799 = vmatpush.msra.mxu0 %v1798
    %v1800 = vand.u32 %v1713, 4294901760
    %v1801 = vsub.f32 %v1713, %v1800
    %1802 = vmatpush.msra.mxu0 %v1801
    %v1803 = vand.u32 %v1712, 4294901760
    %v1804 = vsub.f32 %v1712, %v1803
    %1805 = vmatpush.msra.mxu0 %v1804
    %v1806 = vand.u32 %v1711, 4294901760
    %v1807 = vsub.f32 %v1711, %v1806
    %1808 = vmatpush.msra.mxu0 %v1807
    %v1809 = vand.u32 %v997, 4294901760
    %v1810 = vsub.f32 %v997, %v1809
    %1811 = vmatmul.f32.gmra.mxu0 %v1810
    %v1812 = vpop.f32.mrf.mxu0
    %v1813 = vadd.f32 %v1783, %v1812
    %1814 = vdwg.mxu0
    %1815 = vmatpush.msra.mxu0 0.0
    %1816 = vmatpush.msra.mxu0 0.0
    %1817 = vmatpush.msra.mxu0 0.0
    %1818 = vmatpush.msra.mxu0 0.0
    %1819 = vmatpush.msra.mxu0 0.0
    %1820 = vmatpush.msra.mxu0 0.0
    %1821 = vmatpush.msra.mxu0 0.0
    %1822 = vmatpush.msra.mxu0 0.0
    %1823 = vmatpush.msra.mxu0 0.0
    %1824 = vmatpush.msra.mxu0 0.0
    %1825 = vmatpush.msra.mxu0 0.0
    %1826 = vmatpush.msra.mxu0 0.0
    %v1827 = vand.u32 %v1714, 4294901760
    %1828 = vmatpush.msra.mxu0 %v1827
    %v1829 = vand.u32 %v1713, 4294901760
    %1830 = vmatpush.msra.mxu0 %v1829
    %v1831 = vand.u32 %v1712, 4294901760
    %1832 = vmatpush.msra.mxu0 %v1831
    %v1833 = vand.u32 %v1711, 4294901760
    %1834 = vmatpush.msra.mxu0 %v1833
    %v1835 = vand.u32 %v997, 4294901760
    %v1836 = vsub.f32 %v997, %v1835
    %v1837 = vand.u32 %v1836, 4294901760
    %1838 = vmatmul.f32.gmra.mxu0 %v1837
    %v1839 = vpop.f32.mrf.mxu0
    %v1840 = vadd.f32 %v1813, %v1839
    %1841 = vdwg.mxu0
    %1842 = vmatpush.msra.mxu0 0.0
    %1843 = vmatpush.msra.mxu0 0.0
    %1844 = vmatpush.msra.mxu0 0.0
    %1845 = vmatpush.msra.mxu0 0.0
    %1846 = vmatpush.msra.mxu0 0.0
    %1847 = vmatpush.msra.mxu0 0.0
    %1848 = vmatpush.msra.mxu0 0.0
    %1849 = vmatpush.msra.mxu0 0.0
    %1850 = vmatpush.msra.mxu0 0.0
    %1851 = vmatpush.msra.mxu0 0.0
    %1852 = vmatpush.msra.mxu0 0.0
    %1853 = vmatpush.msra.mxu0 0.0
    %v1854 = vand.u32 %v1714, 4294901760
    %v1855 = vsub.f32 %v1714, %v1854
    %v1856 = vand.u32 %v1855, 4294901760
    %1857 = vmatpush.msra.mxu0 %v1856
    %v1858 = vand.u32 %v1713, 4294901760
    %v1859 = vsub.f32 %v1713, %v1858
    %v1860 = vand.u32 %v1859, 4294901760
    %1861 = vmatpush.msra.mxu0 %v1860
    %v1862 = vand.u32 %v1712, 4294901760
    %v1863 = vsub.f32 %v1712, %v1862
    %v1864 = vand.u32 %v1863, 4294901760
    %1865 = vmatpush.msra.mxu0 %v1864
    %v1866 = vand.u32 %v1711, 4294901760
    %v1867 = vsub.f32 %v1711, %v1866
    %v1868 = vand.u32 %v1867, 4294901760
    %1869 = vmatpush.msra.mxu0 %v1868
    %v1870 = vand.u32 %v997, 4294901760
    %1871 = vmatmul.f32.gmra.mxu0 %v1870
    %v1872 = vpop.f32.mrf.mxu0
    %v1873 = vadd.f32 %v1840, %v1872
    %1874 = vdwg.mxu0
    %1875 = vmatpush.msra.mxu0 0.0
    %1876 = vmatpush.msra.mxu0 0.0
    %1877 = vmatpush.msra.mxu0 0.0
    %1878 = vmatpush.msra.mxu0 0.0
    %1879 = vmatpush.msra.mxu0 0.0
    %1880 = vmatpush.msra.mxu0 0.0
    %1881 = vmatpush.msra.mxu0 0.0
    %1882 = vmatpush.msra.mxu0 0.0
    %1883 = vmatpush.msra.mxu0 0.0
    %1884 = vmatpush.msra.mxu0 0.0
    %1885 = vmatpush.msra.mxu0 0.0
    %1886 = vmatpush.msra.mxu0 0.0
    %v1887 = vand.u32 %v1714, 4294901760
    %1888 = vmatpush.msra.mxu0 %v1887
    %v1889 = vand.u32 %v1713, 4294901760
    %1890 = vmatpush.msra.mxu0 %v1889
    %v1891 = vand.u32 %v1712, 4294901760
    %1892 = vmatpush.msra.mxu0 %v1891
    %v1893 = vand.u32 %v1711, 4294901760
    %1894 = vmatpush.msra.mxu0 %v1893
    %v1895 = vand.u32 %v997, 4294901760
    %1896 = vmatmul.f32.gmra.mxu0 %v1895
    %v1897 = vpop.f32.mrf.mxu0
    %v1898 = vadd.f32 %v1873, %v1897
    %1899 = vdwg.mxu0
    %v1900 = vand.u32 %v1662, 4294901760
    %1901 = vmatpush.msra.mxu0 %v1900
    %v1902 = vand.u32 %v1661, 4294901760
    %1903 = vmatpush.msra.mxu0 %v1902
    %v1904 = vand.u32 %v1660, 4294901760
    %1905 = vmatpush.msra.mxu0 %v1904
    %v1906 = vand.u32 %v1659, 4294901760
    %1907 = vmatpush.msra.mxu0 %v1906
    %v1908 = vand.u32 %v1658, 4294901760
    %1909 = vmatpush.msra.mxu0 %v1908
    %v1910 = vand.u32 %v1657, 4294901760
    %1911 = vmatpush.msra.mxu0 %v1910
    %v1912 = vand.u32 %v1656, 4294901760
    %1913 = vmatpush.msra.mxu0 %v1912
    %v1914 = vand.u32 %v1655, 4294901760
    %1915 = vmatpush.msra.mxu0 %v1914
    %v1916 = vand.u32 %v1654, 4294901760
    %1917 = vmatpush.msra.mxu0 %v1916
    %v1918 = vand.u32 %v1653, 4294901760
    %1919 = vmatpush.msra.mxu0 %v1918
    %v1920 = vand.u32 %v1652, 4294901760
    %1921 = vmatpush.msra.mxu0 %v1920
    %v1922 = vand.u32 %v1651, 4294901760
    %1923 = vmatpush.msra.mxu0 %v1922
    %v1924 = vand.u32 %v1650, 4294901760
    %1925 = vmatpush.msra.mxu0 %v1924
    %v1926 = vand.u32 %v1649, 4294901760
    %1927 = vmatpush.msra.mxu0 %v1926
    %v1928 = vand.u32 %v1648, 4294901760
    %1929 = vmatpush.msra.mxu0 %v1928
    %v1930 = vand.u32 %v1647, 4294901760
    %1931 = vmatpush.msra.mxu0 %v1930
    %v1932 = vand.u32 %v1643, 4294901760
    %v1933 = vsub.f32 %v1643, %v1932
    %v1934 = vand.u32 %v1933, 4294901760
    %v1935 = vsub.f32 %v1933, %v1934
    %v1936 = vand.u32 %v1935, 4294901760
    %1937 = vmatmul.f32.gmra.mxu0 %v1936
    %v1938 = vpop.f32.mrf.mxu0
    %v1939 = vadd.f32 %v1898, %v1938
    %1940 = vdwg.mxu0
    %v1941 = vand.u32 %v1662, 4294901760
    %v1942 = vsub.f32 %v1662, %v1941
    %v1943 = vand.u32 %v1942, 4294901760
    %v1944 = vsub.f32 %v1942, %v1943
    %v1945 = vand.u32 %v1944, 4294901760
    %1946 = vmatpush.msra.mxu0 %v1945
    %v1947 = vand.u32 %v1661, 4294901760
    %v1948 = vsub.f32 %v1661, %v1947
    %v1949 = vand.u32 %v1948, 4294901760
    %v1950 = vsub.f32 %v1948, %v1949
    %v1951 = vand.u32 %v1950, 4294901760
    %1952 = vmatpush.msra.mxu0 %v1951
    %v1953 = vand.u32 %v1660, 4294901760
    %v1954 = vsub.f32 %v1660, %v1953
    %v1955 = vand.u32 %v1954, 4294901760
    %v1956 = vsub.f32 %v1954, %v1955
    %v1957 = vand.u32 %v1956, 4294901760
    %1958 = vmatpush.msra.mxu0 %v1957
    %v1959 = vand.u32 %v1659, 4294901760
    %v1960 = vsub.f32 %v1659, %v1959
    %v1961 = vand.u32 %v1960, 4294901760
    %v1962 = vsub.f32 %v1960, %v1961
    %v1963 = vand.u32 %v1962, 4294901760
    %1964 = vmatpush.msra.mxu0 %v1963
    %v1965 = vand.u32 %v1658, 4294901760
    %v1966 = vsub.f32 %v1658, %v1965
    %v1967 = vand.u32 %v1966, 4294901760
    %v1968 = vsub.f32 %v1966, %v1967
    %v1969 = vand.u32 %v1968, 4294901760
    %1970 = vmatpush.msra.mxu0 %v1969
    %v1971 = vand.u32 %v1657, 4294901760
    %v1972 = vsub.f32 %v1657, %v1971
    %v1973 = vand.u32 %v1972, 4294901760
    %v1974 = vsub.f32 %v1972, %v1973
    %v1975 = vand.u32 %v1974, 4294901760
    %1976 = vmatpush.msra.mxu0 %v1975
    %v1977 = vand.u32 %v1656, 4294901760
    %v1978 = vsub.f32 %v1656, %v1977
    %v1979 = vand.u32 %v1978, 4294901760
    %v1980 = vsub.f32 %v1978, %v1979
    %v1981 = vand.u32 %v1980, 4294901760
    %1982 = vmatpush.msra.mxu0 %v1981
    %v1983 = vand.u32 %v1655, 4294901760
    %v1984 = vsub.f32 %v1655, %v1983
    %v1985 = vand.u32 %v1984, 4294901760
    %v1986 = vsub.f32 %v1984, %v1985
    %v1987 = vand.u32 %v1986, 4294901760
    %1988 = vmatpush.msra.mxu0 %v1987
    %v1989 = vand.u32 %v1654, 4294901760
    %v1990 = vsub.f32 %v1654, %v1989
    %v1991 = vand.u32 %v1990, 4294901760
    %v1992 = vsub.f32 %v1990, %v1991
    %v1993 = vand.u32 %v1992, 4294901760
    %1994 = vmatpush.msra.mxu0 %v1993
    %v1995 = vand.u32 %v1653, 4294901760
    %v1996 = vsub.f32 %v1653, %v1995
    %v1997 = vand.u32 %v1996, 4294901760
    %v1998 = vsub.f32 %v1996, %v1997
    %v1999 = vand.u32 %v1998, 4294901760
    %2000 = vmatpush.msra.mxu0 %v1999
    %v2001 = vand.u32 %v1652, 4294901760
    %v2002 = vsub.f32 %v1652, %v2001
    %v2003 = vand.u32 %v2002, 4294901760
    %v2004 = vsub.f32 %v2002, %v2003
    %v2005 = vand.u32 %v2004, 4294901760
    %2006 = vmatpush.msra.mxu0 %v2005
    %v2007 = vand.u32 %v1651, 4294901760
    %v2008 = vsub.f32 %v1651, %v2007
    %v2009 = vand.u32 %v2008, 4294901760
    %v2010 = vsub.f32 %v2008, %v2009
    %v2011 = vand.u32 %v2010, 4294901760
    %2012 = vmatpush.msra.mxu0 %v2011
    %v2013 = vand.u32 %v1650, 4294901760
    %v2014 = vsub.f32 %v1650, %v2013
    %v2015 = vand.u32 %v2014, 4294901760
    %v2016 = vsub.f32 %v2014, %v2015
    %v2017 = vand.u32 %v2016, 4294901760
    %2018 = vmatpush.msra.mxu0 %v2017
    %v2019 = vand.u32 %v1649, 4294901760
    %v2020 = vsub.f32 %v1649, %v2019
    %v2021 = vand.u32 %v2020, 4294901760
    %v2022 = vsub.f32 %v2020, %v2021
    %v2023 = vand.u32 %v2022, 4294901760
    %2024 = vmatpush.msra.mxu0 %v2023
    %v2025 = vand.u32 %v1648, 4294901760
    %v2026 = vsub.f32 %v1648, %v2025
    %v2027 = vand.u32 %v2026, 4294901760
    %v2028 = vsub.f32 %v2026, %v2027
    %v2029 = vand.u32 %v2028, 4294901760
    %2030 = vmatpush.msra.mxu0 %v2029
    %v2031 = vand.u32 %v1647, 4294901760
    %v2032 = vsub.f32 %v1647, %v2031
    %v2033 = vand.u32 %v2032, 4294901760
    %v2034 = vsub.f32 %v2032, %v2033
    %v2035 = vand.u32 %v2034, 4294901760
    %2036 = vmatpush.msra.mxu0 %v2035
    %v2037 = vand.u32 %v1643, 4294901760
    %2038 = vmatmul.f32.gmra.mxu0 %v2037
    %v2039 = vpop.f32.mrf.mxu0
    %v2040 = vadd.f32 %v1939, %v2039
    %2041 = vdwg.mxu0
    %v2042 = vand.u32 %v1662, 4294901760
    %v2043 = vsub.f32 %v1662, %v2042
    %2044 = vmatpush.msra.mxu0 %v2043
    %v2045 = vand.u32 %v1661, 4294901760
    %v2046 = vsub.f32 %v1661, %v2045
    %2047 = vmatpush.msra.mxu0 %v2046
    %v2048 = vand.u32 %v1660, 4294901760
    %v2049 = vsub.f32 %v1660, %v2048
    %2050 = vmatpush.msra.mxu0 %v2049
    %v2051 = vand.u32 %v1659, 4294901760
    %v2052 = vsub.f32 %v1659, %v2051
    %2053 = vmatpush.msra.mxu0 %v2052
    %v2054 = vand.u32 %v1658, 4294901760
    %v2055 = vsub.f32 %v1658, %v2054
    %2056 = vmatpush.msra.mxu0 %v2055
    %v2057 = vand.u32 %v1657, 4294901760
    %v2058 = vsub.f32 %v1657, %v2057
    %2059 = vmatpush.msra.mxu0 %v2058
    %v2060 = vand.u32 %v1656, 4294901760
    %v2061 = vsub.f32 %v1656, %v2060
    %2062 = vmatpush.msra.mxu0 %v2061
    %v2063 = vand.u32 %v1655, 4294901760
    %v2064 = vsub.f32 %v1655, %v2063
    %2065 = vmatpush.msra.mxu0 %v2064
    %v2066 = vand.u32 %v1654, 4294901760
    %v2067 = vsub.f32 %v1654, %v2066
    %2068 = vmatpush.msra.mxu0 %v2067
    %v2069 = vand.u32 %v1653, 4294901760
    %v2070 = vsub.f32 %v1653, %v2069
    %2071 = vmatpush.msra.mxu0 %v2070
    %v2072 = vand.u32 %v1652, 4294901760
    %v2073 = vsub.f32 %v1652, %v2072
    %2074 = vmatpush.msra.mxu0 %v2073
    %v2075 = vand.u32 %v1651, 4294901760
    %v2076 = vsub.f32 %v1651, %v2075
    %2077 = vmatpush.msra.mxu0 %v2076
    %v2078 = vand.u32 %v1650, 4294901760
    %v2079 = vsub.f32 %v1650, %v2078
    %2080 = vmatpush.msra.mxu0 %v2079
    %v2081 = vand.u32 %v1649, 4294901760
    %v2082 = vsub.f32 %v1649, %v2081
    %2083 = vmatpush.msra.mxu0 %v2082
    %v2084 = vand.u32 %v1648, 4294901760
    %v2085 = vsub.f32 %v1648, %v2084
    %2086 = vmatpush.msra.mxu0 %v2085
    %v2087 = vand.u32 %v1647, 4294901760
    %v2088 = vsub.f32 %v1647, %v2087
    %2089 = vmatpush.msra.mxu0 %v2088
    %v2090 = vand.u32 %v1643, 4294901760
    %v2091 = vsub.f32 %v1643, %v2090
    %2092 = vmatmul.f32.gmra.mxu0 %v2091
    %v2093 = vpop.f32.mrf.mxu0
    %v2094 = vadd.f32 %v2040, %v2093
    %2095 = vdwg.mxu0
    %v2096 = vand.u32 %v1662, 4294901760
    %2097 = vmatpush.msra.mxu0 %v2096
    %v2098 = vand.u32 %v1661, 4294901760
    %2099 = vmatpush.msra.mxu0 %v2098
    %v2100 = vand.u32 %v1660, 4294901760
    %2101 = vmatpush.msra.mxu0 %v2100
    %v2102 = vand.u32 %v1659, 4294901760
    %2103 = vmatpush.msra.mxu0 %v2102
    %v2104 = vand.u32 %v1658, 4294901760
    %2105 = vmatpush.msra.mxu0 %v2104
    %v2106 = vand.u32 %v1657, 4294901760
    %2107 = vmatpush.msra.mxu0 %v2106
    %v2108 = vand.u32 %v1656, 4294901760
    %2109 = vmatpush.msra.mxu0 %v2108
    %v2110 = vand.u32 %v1655, 4294901760
    %2111 = vmatpush.msra.mxu0 %v2110
    %v2112 = vand.u32 %v1654, 4294901760
    %2113 = vmatpush.msra.mxu0 %v2112
    %v2114 = vand.u32 %v1653, 4294901760
    %2115 = vmatpush.msra.mxu0 %v2114
    %v2116 = vand.u32 %v1652, 4294901760
    %2117 = vmatpush.msra.mxu0 %v2116
    %v2118 = vand.u32 %v1651, 4294901760
    %2119 = vmatpush.msra.mxu0 %v2118
    %v2120 = vand.u32 %v1650, 4294901760
    %2121 = vmatpush.msra.mxu0 %v2120
    %v2122 = vand.u32 %v1649, 4294901760
    %2123 = vmatpush.msra.mxu0 %v2122
    %v2124 = vand.u32 %v1648, 4294901760
    %2125 = vmatpush.msra.mxu0 %v2124
    %v2126 = vand.u32 %v1647, 4294901760
    %2127 = vmatpush.msra.mxu0 %v2126
    %v2128 = vand.u32 %v1643, 4294901760
    %v2129 = vsub.f32 %v1643, %v2128
    %v2130 = vand.u32 %v2129, 4294901760
    %2131 = vmatmul.f32.gmra.mxu0 %v2130
    %v2132 = vpop.f32.mrf.mxu0
    %v2133 = vadd.f32 %v2094, %v2132
    %2134 = vdwg.mxu0
    %v2135 = vand.u32 %v1662, 4294901760
    %v2136 = vsub.f32 %v1662, %v2135
    %v2137 = vand.u32 %v2136, 4294901760
    %2138 = vmatpush.msra.mxu0 %v2137
    %v2139 = vand.u32 %v1661, 4294901760
    %v2140 = vsub.f32 %v1661, %v2139
    %v2141 = vand.u32 %v2140, 4294901760
    %2142 = vmatpush.msra.mxu0 %v2141
    %v2143 = vand.u32 %v1660, 4294901760
    %v2144 = vsub.f32 %v1660, %v2143
    %v2145 = vand.u32 %v2144, 4294901760
    %2146 = vmatpush.msra.mxu0 %v2145
    %v2147 = vand.u32 %v1659, 4294901760
    %v2148 = vsub.f32 %v1659, %v2147
    %v2149 = vand.u32 %v2148, 4294901760
    %2150 = vmatpush.msra.mxu0 %v2149
    %v2151 = vand.u32 %v1658, 4294901760
    %v2152 = vsub.f32 %v1658, %v2151
    %v2153 = vand.u32 %v2152, 4294901760
    %2154 = vmatpush.msra.mxu0 %v2153
    %v2155 = vand.u32 %v1657, 4294901760
    %v2156 = vsub.f32 %v1657, %v2155
    %v2157 = vand.u32 %v2156, 4294901760
    %2158 = vmatpush.msra.mxu0 %v2157
    %v2159 = vand.u32 %v1656, 4294901760
    %v2160 = vsub.f32 %v1656, %v2159
    %v2161 = vand.u32 %v2160, 4294901760
    %2162 = vmatpush.msra.mxu0 %v2161
    %v2163 = vand.u32 %v1655, 4294901760
    %v2164 = vsub.f32 %v1655, %v2163
    %v2165 = vand.u32 %v2164, 4294901760
    %2166 = vmatpush.msra.mxu0 %v2165
    %v2167 = vand.u32 %v1654, 4294901760
    %v2168 = vsub.f32 %v1654, %v2167
    %v2169 = vand.u32 %v2168, 4294901760
    %2170 = vmatpush.msra.mxu0 %v2169
    %v2171 = vand.u32 %v1653, 4294901760
    %v2172 = vsub.f32 %v1653, %v2171
    %v2173 = vand.u32 %v2172, 4294901760
    %2174 = vmatpush.msra.mxu0 %v2173
    %v2175 = vand.u32 %v1652, 4294901760
    %v2176 = vsub.f32 %v1652, %v2175
    %v2177 = vand.u32 %v2176, 4294901760
    %2178 = vmatpush.msra.mxu0 %v2177
    %v2179 = vand.u32 %v1651, 4294901760
    %v2180 = vsub.f32 %v1651, %v2179
    %v2181 = vand.u32 %v2180, 4294901760
    %2182 = vmatpush.msra.mxu0 %v2181
    %v2183 = vand.u32 %v1650, 4294901760
    %v2184 = vsub.f32 %v1650, %v2183
    %v2185 = vand.u32 %v2184, 4294901760
    %2186 = vmatpush.msra.mxu0 %v2185
    %v2187 = vand.u32 %v1649, 4294901760
    %v2188 = vsub.f32 %v1649, %v2187
    %v2189 = vand.u32 %v2188, 4294901760
    %2190 = vmatpush.msra.mxu0 %v2189
    %v2191 = vand.u32 %v1648, 4294901760
    %v2192 = vsub.f32 %v1648, %v2191
    %v2193 = vand.u32 %v2192, 4294901760
    %2194 = vmatpush.msra.mxu0 %v2193
    %v2195 = vand.u32 %v1647, 4294901760
    %v2196 = vsub.f32 %v1647, %v2195
    %v2197 = vand.u32 %v2196, 4294901760
    %2198 = vmatpush.msra.mxu0 %v2197
    %v2199 = vand.u32 %v1643, 4294901760
    %2200 = vmatmul.f32.gmra.mxu0 %v2199
    %v2201 = vpop.f32.mrf.mxu0
    %v2202 = vadd.f32 %v2133, %v2201
    %2203 = vdwg.mxu0
    %v2204 = vand.u32 %v1662, 4294901760
    %2205 = vmatpush.msra.mxu0 %v2204
    %v2206 = vand.u32 %v1661, 4294901760
    %2207 = vmatpush.msra.mxu0 %v2206
    %v2208 = vand.u32 %v1660, 4294901760
    %2209 = vmatpush.msra.mxu0 %v2208
    %v2210 = vand.u32 %v1659, 4294901760
    %2211 = vmatpush.msra.mxu0 %v2210
    %v2212 = vand.u32 %v1658, 4294901760
    %2213 = vmatpush.msra.mxu0 %v2212
    %v2214 = vand.u32 %v1657, 4294901760
    %2215 = vmatpush.msra.mxu0 %v2214
    %v2216 = vand.u32 %v1656, 4294901760
    %2217 = vmatpush.msra.mxu0 %v2216
    %v2218 = vand.u32 %v1655, 4294901760
    %2219 = vmatpush.msra.mxu0 %v2218
    %v2220 = vand.u32 %v1654, 4294901760
    %2221 = vmatpush.msra.mxu0 %v2220
    %v2222 = vand.u32 %v1653, 4294901760
    %2223 = vmatpush.msra.mxu0 %v2222
    %v2224 = vand.u32 %v1652, 4294901760
    %2225 = vmatpush.msra.mxu0 %v2224
    %v2226 = vand.u32 %v1651, 4294901760
    %2227 = vmatpush.msra.mxu0 %v2226
    %v2228 = vand.u32 %v1650, 4294901760
    %2229 = vmatpush.msra.mxu0 %v2228
    %v2230 = vand.u32 %v1649, 4294901760
    %2231 = vmatpush.msra.mxu0 %v2230
    %v2232 = vand.u32 %v1648, 4294901760
    %2233 = vmatpush.msra.mxu0 %v2232
    %v2234 = vand.u32 %v1647, 4294901760
    %2235 = vmatpush.msra.mxu0 %v2234
    %v2236 = vand.u32 %v1643, 4294901760
    %2237 = vmatmul.f32.gmra.mxu0 %v2236
    %v2238 = vpop.f32.mrf.mxu0
    %v2239 = vadd.f32 %v2202, %v2238
    %2240 = vdwg.mxu0
    %v2241 = vand.u32 %v1678, 4294901760
    %2242 = vmatpush.msra.mxu0 %v2241
    %v2243 = vand.u32 %v1677, 4294901760
    %2244 = vmatpush.msra.mxu0 %v2243
    %v2245 = vand.u32 %v1676, 4294901760
    %2246 = vmatpush.msra.mxu0 %v2245
    %v2247 = vand.u32 %v1675, 4294901760
    %2248 = vmatpush.msra.mxu0 %v2247
    %v2249 = vand.u32 %v1674, 4294901760
    %2250 = vmatpush.msra.mxu0 %v2249
    %v2251 = vand.u32 %v1673, 4294901760
    %2252 = vmatpush.msra.mxu0 %v2251
    %v2253 = vand.u32 %v1672, 4294901760
    %2254 = vmatpush.msra.mxu0 %v2253
    %v2255 = vand.u32 %v1671, 4294901760
    %2256 = vmatpush.msra.mxu0 %v2255
    %v2257 = vand.u32 %v1670, 4294901760
    %2258 = vmatpush.msra.mxu0 %v2257
    %v2259 = vand.u32 %v1669, 4294901760
    %2260 = vmatpush.msra.mxu0 %v2259
    %v2261 = vand.u32 %v1668, 4294901760
    %2262 = vmatpush.msra.mxu0 %v2261
    %v2263 = vand.u32 %v1667, 4294901760
    %2264 = vmatpush.msra.mxu0 %v2263
    %v2265 = vand.u32 %v1666, 4294901760
    %2266 = vmatpush.msra.mxu0 %v2265
    %v2267 = vand.u32 %v1665, 4294901760
    %2268 = vmatpush.msra.mxu0 %v2267
    %v2269 = vand.u32 %v1664, 4294901760
    %2270 = vmatpush.msra.mxu0 %v2269
    %v2271 = vand.u32 %v1663, 4294901760
    %2272 = vmatpush.msra.mxu0 %v2271
    %v2273 = vand.u32 %v1644, 4294901760
    %v2274 = vsub.f32 %v1644, %v2273
    %v2275 = vand.u32 %v2274, 4294901760
    %v2276 = vsub.f32 %v2274, %v2275
    %v2277 = vand.u32 %v2276, 4294901760
    %2278 = vmatmul.f32.gmra.mxu0 %v2277
    %v2279 = vpop.f32.mrf.mxu0
    %v2280 = vadd.f32 %v2239, %v2279
    %2281 = vdwg.mxu0
    %v2282 = vand.u32 %v1678, 4294901760
    %v2283 = vsub.f32 %v1678, %v2282
    %v2284 = vand.u32 %v2283, 4294901760
    %v2285 = vsub.f32 %v2283, %v2284
    %v2286 = vand.u32 %v2285, 4294901760
    %2287 = vmatpush.msra.mxu0 %v2286
    %v2288 = vand.u32 %v1677, 4294901760
    %v2289 = vsub.f32 %v1677, %v2288
    %v2290 = vand.u32 %v2289, 4294901760
    %v2291 = vsub.f32 %v2289, %v2290
    %v2292 = vand.u32 %v2291, 4294901760
    %2293 = vmatpush.msra.mxu0 %v2292
    %v2294 = vand.u32 %v1676, 4294901760
    %v2295 = vsub.f32 %v1676, %v2294
    %v2296 = vand.u32 %v2295, 4294901760
    %v2297 = vsub.f32 %v2295, %v2296
    %v2298 = vand.u32 %v2297, 4294901760
    %2299 = vmatpush.msra.mxu0 %v2298
    %v2300 = vand.u32 %v1675, 4294901760
    %v2301 = vsub.f32 %v1675, %v2300
    %v2302 = vand.u32 %v2301, 4294901760
    %v2303 = vsub.f32 %v2301, %v2302
    %v2304 = vand.u32 %v2303, 4294901760
    %2305 = vmatpush.msra.mxu0 %v2304
    %v2306 = vand.u32 %v1674, 4294901760
    %v2307 = vsub.f32 %v1674, %v2306
    %v2308 = vand.u32 %v2307, 4294901760
    %v2309 = vsub.f32 %v2307, %v2308
    %v2310 = vand.u32 %v2309, 4294901760
    %2311 = vmatpush.msra.mxu0 %v2310
    %v2312 = vand.u32 %v1673, 4294901760
    %v2313 = vsub.f32 %v1673, %v2312
    %v2314 = vand.u32 %v2313, 4294901760
    %v2315 = vsub.f32 %v2313, %v2314
    %v2316 = vand.u32 %v2315, 4294901760
    %2317 = vmatpush.msra.mxu0 %v2316
    %v2318 = vand.u32 %v1672, 4294901760
    %v2319 = vsub.f32 %v1672, %v2318
    %v2320 = vand.u32 %v2319, 4294901760
    %v2321 = vsub.f32 %v2319, %v2320
    %v2322 = vand.u32 %v2321, 4294901760
    %2323 = vmatpush.msra.mxu0 %v2322
    %v2324 = vand.u32 %v1671, 4294901760
    %v2325 = vsub.f32 %v1671, %v2324
    %v2326 = vand.u32 %v2325, 4294901760
    %v2327 = vsub.f32 %v2325, %v2326
    %v2328 = vand.u32 %v2327, 4294901760
    %2329 = vmatpush.msra.mxu0 %v2328
    %v2330 = vand.u32 %v1670, 4294901760
    %v2331 = vsub.f32 %v1670, %v2330
    %v2332 = vand.u32 %v2331, 4294901760
    %v2333 = vsub.f32 %v2331, %v2332
    %v2334 = vand.u32 %v2333, 4294901760
    %2335 = vmatpush.msra.mxu0 %v2334
    %v2336 = vand.u32 %v1669, 4294901760
    %v2337 = vsub.f32 %v1669, %v2336
    %v2338 = vand.u32 %v2337, 4294901760
    %v2339 = vsub.f32 %v2337, %v2338
    %v2340 = vand.u32 %v2339, 4294901760
    %2341 = vmatpush.msra.mxu0 %v2340
    %v2342 = vand.u32 %v1668, 4294901760
    %v2343 = vsub.f32 %v1668, %v2342
    %v2344 = vand.u32 %v2343, 4294901760
    %v2345 = vsub.f32 %v2343, %v2344
    %v2346 = vand.u32 %v2345, 4294901760
    %2347 = vmatpush.msra.mxu0 %v2346
    %v2348 = vand.u32 %v1667, 4294901760
    %v2349 = vsub.f32 %v1667, %v2348
    %v2350 = vand.u32 %v2349, 4294901760
    %v2351 = vsub.f32 %v2349, %v2350
    %v2352 = vand.u32 %v2351, 4294901760
    %2353 = vmatpush.msra.mxu0 %v2352
    %v2354 = vand.u32 %v1666, 4294901760
    %v2355 = vsub.f32 %v1666, %v2354
    %v2356 = vand.u32 %v2355, 4294901760
    %v2357 = vsub.f32 %v2355, %v2356
    %v2358 = vand.u32 %v2357, 4294901760
    %2359 = vmatpush.msra.mxu0 %v2358
    %v2360 = vand.u32 %v1665, 4294901760
    %v2361 = vsub.f32 %v1665, %v2360
    %v2362 = vand.u32 %v2361, 4294901760
    %v2363 = vsub.f32 %v2361, %v2362
    %v2364 = vand.u32 %v2363, 4294901760
    %2365 = vmatpush.msra.mxu0 %v2364
    %v2366 = vand.u32 %v1664, 4294901760
    %v2367 = vsub.f32 %v1664, %v2366
    %v2368 = vand.u32 %v2367, 4294901760
    %v2369 = vsub.f32 %v2367, %v2368
    %v2370 = vand.u32 %v2369, 4294901760
    %2371 = vmatpush.msra.mxu0 %v2370
    %v2372 = vand.u32 %v1663, 4294901760
    %v2373 = vsub.f32 %v1663, %v2372
    %v2374 = vand.u32 %v2373, 4294901760
    %v2375 = vsub.f32 %v2373, %v2374
    %v2376 = vand.u32 %v2375, 4294901760
    %2377 = vmatpush.msra.mxu0 %v2376
    %v2378 = vand.u32 %v1644, 4294901760
    %2379 = vmatmul.f32.gmra.mxu0 %v2378
    %v2380 = vpop.f32.mrf.mxu0
    %v2381 = vadd.f32 %v2280, %v2380
    %2382 = vdwg.mxu0
    %v2383 = vand.u32 %v1678, 4294901760
    %v2384 = vsub.f32 %v1678, %v2383
    %2385 = vmatpush.msra.mxu0 %v2384
    %v2386 = vand.u32 %v1677, 4294901760
    %v2387 = vsub.f32 %v1677, %v2386
    %2388 = vmatpush.msra.mxu0 %v2387
    %v2389 = vand.u32 %v1676, 4294901760
    %v2390 = vsub.f32 %v1676, %v2389
    %2391 = vmatpush.msra.mxu0 %v2390
    %v2392 = vand.u32 %v1675, 4294901760
    %v2393 = vsub.f32 %v1675, %v2392
    %2394 = vmatpush.msra.mxu0 %v2393
    %v2395 = vand.u32 %v1674, 4294901760
    %v2396 = vsub.f32 %v1674, %v2395
    %2397 = vmatpush.msra.mxu0 %v2396
    %v2398 = vand.u32 %v1673, 4294901760
    %v2399 = vsub.f32 %v1673, %v2398
    %2400 = vmatpush.msra.mxu0 %v2399
    %v2401 = vand.u32 %v1672, 4294901760
    %v2402 = vsub.f32 %v1672, %v2401
    %2403 = vmatpush.msra.mxu0 %v2402
    %v2404 = vand.u32 %v1671, 4294901760
    %v2405 = vsub.f32 %v1671, %v2404
    %2406 = vmatpush.msra.mxu0 %v2405
    %v2407 = vand.u32 %v1670, 4294901760
    %v2408 = vsub.f32 %v1670, %v2407
    %2409 = vmatpush.msra.mxu0 %v2408
    %v2410 = vand.u32 %v1669, 4294901760
    %v2411 = vsub.f32 %v1669, %v2410
    %2412 = vmatpush.msra.mxu0 %v2411
    %v2413 = vand.u32 %v1668, 4294901760
    %v2414 = vsub.f32 %v1668, %v2413
    %2415 = vmatpush.msra.mxu0 %v2414
    %v2416 = vand.u32 %v1667, 4294901760
    %v2417 = vsub.f32 %v1667, %v2416
    %2418 = vmatpush.msra.mxu0 %v2417
    %v2419 = vand.u32 %v1666, 4294901760
    %v2420 = vsub.f32 %v1666, %v2419
    %2421 = vmatpush.msra.mxu0 %v2420
    %v2422 = vand.u32 %v1665, 4294901760
    %v2423 = vsub.f32 %v1665, %v2422
    %2424 = vmatpush.msra.mxu0 %v2423
    %v2425 = vand.u32 %v1664, 4294901760
    %v2426 = vsub.f32 %v1664, %v2425
    %2427 = vmatpush.msra.mxu0 %v2426
    %v2428 = vand.u32 %v1663, 4294901760
    %v2429 = vsub.f32 %v1663, %v2428
    %2430 = vmatpush.msra.mxu0 %v2429
    %v2431 = vand.u32 %v1644, 4294901760
    %v2432 = vsub.f32 %v1644, %v2431
    %2433 = vmatmul.f32.gmra.mxu0 %v2432
    %v2434 = vpop.f32.mrf.mxu0
    %v2435 = vadd.f32 %v2381, %v2434
    %2436 = vdwg.mxu0
    %v2437 = vand.u32 %v1678, 4294901760
    %2438 = vmatpush.msra.mxu0 %v2437
    %v2439 = vand.u32 %v1677, 4294901760
    %2440 = vmatpush.msra.mxu0 %v2439
    %v2441 = vand.u32 %v1676, 4294901760
    %2442 = vmatpush.msra.mxu0 %v2441
    %v2443 = vand.u32 %v1675, 4294901760
    %2444 = vmatpush.msra.mxu0 %v2443
    %v2445 = vand.u32 %v1674, 4294901760
    %2446 = vmatpush.msra.mxu0 %v2445
    %v2447 = vand.u32 %v1673, 4294901760
    %2448 = vmatpush.msra.mxu0 %v2447
    %v2449 = vand.u32 %v1672, 4294901760
    %2450 = vmatpush.msra.mxu0 %v2449
    %v2451 = vand.u32 %v1671, 4294901760
    %2452 = vmatpush.msra.mxu0 %v2451
    %v2453 = vand.u32 %v1670, 4294901760
    %2454 = vmatpush.msra.mxu0 %v2453
    %v2455 = vand.u32 %v1669, 4294901760
    %2456 = vmatpush.msra.mxu0 %v2455
    %v2457 = vand.u32 %v1668, 4294901760
    %2458 = vmatpush.msra.mxu0 %v2457
    %v2459 = vand.u32 %v1667, 4294901760
    %2460 = vmatpush.msra.mxu0 %v2459
    %v2461 = vand.u32 %v1666, 4294901760
    %2462 = vmatpush.msra.mxu0 %v2461
    %v2463 = vand.u32 %v1665, 4294901760
    %2464 = vmatpush.msra.mxu0 %v2463
    %v2465 = vand.u32 %v1664, 4294901760
    %2466 = vmatpush.msra.mxu0 %v2465
    %v2467 = vand.u32 %v1663, 4294901760
    %2468 = vmatpush.msra.mxu0 %v2467
    %v2469 = vand.u32 %v1644, 4294901760
    %v2470 = vsub.f32 %v1644, %v2469
    %v2471 = vand.u32 %v2470, 4294901760
    %2472 = vmatmul.f32.gmra.mxu0 %v2471
    %v2473 = vpop.f32.mrf.mxu0
    %v2474 = vadd.f32 %v2435, %v2473
    %2475 = vdwg.mxu0
    %v2476 = vand.u32 %v1678, 4294901760
    %v2477 = vsub.f32 %v1678, %v2476
    %v2478 = vand.u32 %v2477, 4294901760
    %2479 = vmatpush.msra.mxu0 %v2478
    %v2480 = vand.u32 %v1677, 4294901760
    %v2481 = vsub.f32 %v1677, %v2480
    %v2482 = vand.u32 %v2481, 4294901760
    %2483 = vmatpush.msra.mxu0 %v2482
    %v2484 = vand.u32 %v1676, 4294901760
    %v2485 = vsub.f32 %v1676, %v2484
    %v2486 = vand.u32 %v2485, 4294901760
    %2487 = vmatpush.msra.mxu0 %v2486
    %v2488 = vand.u32 %v1675, 4294901760
    %v2489 = vsub.f32 %v1675, %v2488
    %v2490 = vand.u32 %v2489, 4294901760
    %2491 = vmatpush.msra.mxu0 %v2490
    %v2492 = vand.u32 %v1674, 4294901760
    %v2493 = vsub.f32 %v1674, %v2492
    %v2494 = vand.u32 %v2493, 4294901760
    %2495 = vmatpush.msra.mxu0 %v2494
    %v2496 = vand.u32 %v1673, 4294901760
    %v2497 = vsub.f32 %v1673, %v2496
    %v2498 = vand.u32 %v2497, 4294901760
    %2499 = vmatpush.msra.mxu0 %v2498
    %v2500 = vand.u32 %v1672, 4294901760
    %v2501 = vsub.f32 %v1672, %v2500
    %v2502 = vand.u32 %v2501, 4294901760
    %2503 = vmatpush.msra.mxu0 %v2502
    %v2504 = vand.u32 %v1671, 4294901760
    %v2505 = vsub.f32 %v1671, %v2504
    %v2506 = vand.u32 %v2505, 4294901760
    %2507 = vmatpush.msra.mxu0 %v2506
    %v2508 = vand.u32 %v1670, 4294901760
    %v2509 = vsub.f32 %v1670, %v2508
    %v2510 = vand.u32 %v2509, 4294901760
    %2511 = vmatpush.msra.mxu0 %v2510
    %v2512 = vand.u32 %v1669, 4294901760
    %v2513 = vsub.f32 %v1669, %v2512
    %v2514 = vand.u32 %v2513, 4294901760
    %2515 = vmatpush.msra.mxu0 %v2514
    %v2516 = vand.u32 %v1668, 4294901760
    %v2517 = vsub.f32 %v1668, %v2516
    %v2518 = vand.u32 %v2517, 4294901760
    %2519 = vmatpush.msra.mxu0 %v2518
    %v2520 = vand.u32 %v1667, 4294901760
    %v2521 = vsub.f32 %v1667, %v2520
    %v2522 = vand.u32 %v2521, 4294901760
    %2523 = vmatpush.msra.mxu0 %v2522
    %v2524 = vand.u32 %v1666, 4294901760
    %v2525 = vsub.f32 %v1666, %v2524
    %v2526 = vand.u32 %v2525, 4294901760
    %2527 = vmatpush.msra.mxu0 %v2526
    %v2528 = vand.u32 %v1665, 4294901760
    %v2529 = vsub.f32 %v1665, %v2528
    %v2530 = vand.u32 %v2529, 4294901760
    %2531 = vmatpush.msra.mxu0 %v2530
    %v2532 = vand.u32 %v1664, 4294901760
    %v2533 = vsub.f32 %v1664, %v2532
    %v2534 = vand.u32 %v2533, 4294901760
    %2535 = vmatpush.msra.mxu0 %v2534
    %v2536 = vand.u32 %v1663, 4294901760
    %v2537 = vsub.f32 %v1663, %v2536
    %v2538 = vand.u32 %v2537, 4294901760
    %2539 = vmatpush.msra.mxu0 %v2538
    %v2540 = vand.u32 %v1644, 4294901760
    %2541 = vmatmul.f32.gmra.mxu0 %v2540
    %v2542 = vpop.f32.mrf.mxu0
    %v2543 = vadd.f32 %v2474, %v2542
    %2544 = vdwg.mxu0
    %v2545 = vand.u32 %v1678, 4294901760
    %2546 = vmatpush.msra.mxu0 %v2545
    %v2547 = vand.u32 %v1677, 4294901760
    %2548 = vmatpush.msra.mxu0 %v2547
    %v2549 = vand.u32 %v1676, 4294901760
    %2550 = vmatpush.msra.mxu0 %v2549
    %v2551 = vand.u32 %v1675, 4294901760
    %2552 = vmatpush.msra.mxu0 %v2551
    %v2553 = vand.u32 %v1674, 4294901760
    %2554 = vmatpush.msra.mxu0 %v2553
    %v2555 = vand.u32 %v1673, 4294901760
    %2556 = vmatpush.msra.mxu0 %v2555
    %v2557 = vand.u32 %v1672, 4294901760
    %2558 = vmatpush.msra.mxu0 %v2557
    %v2559 = vand.u32 %v1671, 4294901760
    %2560 = vmatpush.msra.mxu0 %v2559
    %v2561 = vand.u32 %v1670, 4294901760
    %2562 = vmatpush.msra.mxu0 %v2561
    %v2563 = vand.u32 %v1669, 4294901760
    %2564 = vmatpush.msra.mxu0 %v2563
    %v2565 = vand.u32 %v1668, 4294901760
    %2566 = vmatpush.msra.mxu0 %v2565
    %v2567 = vand.u32 %v1667, 4294901760
    %2568 = vmatpush.msra.mxu0 %v2567
    %v2569 = vand.u32 %v1666, 4294901760
    %2570 = vmatpush.msra.mxu0 %v2569
    %v2571 = vand.u32 %v1665, 4294901760
    %2572 = vmatpush.msra.mxu0 %v2571
    %v2573 = vand.u32 %v1664, 4294901760
    %2574 = vmatpush.msra.mxu0 %v2573
    %v2575 = vand.u32 %v1663, 4294901760
    %2576 = vmatpush.msra.mxu0 %v2575
    %v2577 = vand.u32 %v1644, 4294901760
    %2578 = vmatmul.f32.gmra.mxu0 %v2577
    %v2579 = vpop.f32.mrf.mxu0
    %v2580 = vadd.f32 %v2543, %v2579
    %2581 = vdwg.mxu0
    %v2582 = vand.u32 %v1694, 4294901760
    %2583 = vmatpush.msra.mxu0 %v2582
    %v2584 = vand.u32 %v1693, 4294901760
    %2585 = vmatpush.msra.mxu0 %v2584
    %v2586 = vand.u32 %v1692, 4294901760
    %2587 = vmatpush.msra.mxu0 %v2586
    %v2588 = vand.u32 %v1691, 4294901760
    %2589 = vmatpush.msra.mxu0 %v2588
    %v2590 = vand.u32 %v1690, 4294901760
    %2591 = vmatpush.msra.mxu0 %v2590
    %v2592 = vand.u32 %v1689, 4294901760
    %2593 = vmatpush.msra.mxu0 %v2592
    %v2594 = vand.u32 %v1688, 4294901760
    %2595 = vmatpush.msra.mxu0 %v2594
    %v2596 = vand.u32 %v1687, 4294901760
    %2597 = vmatpush.msra.mxu0 %v2596
    %v2598 = vand.u32 %v1686, 4294901760
    %2599 = vmatpush.msra.mxu0 %v2598
    %v2600 = vand.u32 %v1685, 4294901760
    %2601 = vmatpush.msra.mxu0 %v2600
    %v2602 = vand.u32 %v1684, 4294901760
    %2603 = vmatpush.msra.mxu0 %v2602
    %v2604 = vand.u32 %v1683, 4294901760
    %2605 = vmatpush.msra.mxu0 %v2604
    %v2606 = vand.u32 %v1682, 4294901760
    %2607 = vmatpush.msra.mxu0 %v2606
    %v2608 = vand.u32 %v1681, 4294901760
    %2609 = vmatpush.msra.mxu0 %v2608
    %v2610 = vand.u32 %v1680, 4294901760
    %2611 = vmatpush.msra.mxu0 %v2610
    %v2612 = vand.u32 %v1679, 4294901760
    %2613 = vmatpush.msra.mxu0 %v2612
    %v2614 = vand.u32 %v1645, 4294901760
    %v2615 = vsub.f32 %v1645, %v2614
    %v2616 = vand.u32 %v2615, 4294901760
    %v2617 = vsub.f32 %v2615, %v2616
    %v2618 = vand.u32 %v2617, 4294901760
    %2619 = vmatmul.f32.gmra.mxu0 %v2618
    %v2620 = vpop.f32.mrf.mxu0
    %v2621 = vadd.f32 %v2580, %v2620
    %2622 = vdwg.mxu0
    %v2623 = vand.u32 %v1694, 4294901760
    %v2624 = vsub.f32 %v1694, %v2623
    %v2625 = vand.u32 %v2624, 4294901760
    %v2626 = vsub.f32 %v2624, %v2625
    %v2627 = vand.u32 %v2626, 4294901760
    %2628 = vmatpush.msra.mxu0 %v2627
    %v2629 = vand.u32 %v1693, 4294901760
    %v2630 = vsub.f32 %v1693, %v2629
    %v2631 = vand.u32 %v2630, 4294901760
    %v2632 = vsub.f32 %v2630, %v2631
    %v2633 = vand.u32 %v2632, 4294901760
    %2634 = vmatpush.msra.mxu0 %v2633
    %v2635 = vand.u32 %v1692, 4294901760
    %v2636 = vsub.f32 %v1692, %v2635
    %v2637 = vand.u32 %v2636, 4294901760
    %v2638 = vsub.f32 %v2636, %v2637
    %v2639 = vand.u32 %v2638, 4294901760
    %2640 = vmatpush.msra.mxu0 %v2639
    %v2641 = vand.u32 %v1691, 4294901760
    %v2642 = vsub.f32 %v1691, %v2641
    %v2643 = vand.u32 %v2642, 4294901760
    %v2644 = vsub.f32 %v2642, %v2643
    %v2645 = vand.u32 %v2644, 4294901760
    %2646 = vmatpush.msra.mxu0 %v2645
    %v2647 = vand.u32 %v1690, 4294901760
    %v2648 = vsub.f32 %v1690, %v2647
    %v2649 = vand.u32 %v2648, 4294901760
    %v2650 = vsub.f32 %v2648, %v2649
    %v2651 = vand.u32 %v2650, 4294901760
    %2652 = vmatpush.msra.mxu0 %v2651
    %v2653 = vand.u32 %v1689, 4294901760
    %v2654 = vsub.f32 %v1689, %v2653
    %v2655 = vand.u32 %v2654, 4294901760
    %v2656 = vsub.f32 %v2654, %v2655
    %v2657 = vand.u32 %v2656, 4294901760
    %2658 = vmatpush.msra.mxu0 %v2657
    %v2659 = vand.u32 %v1688, 4294901760
    %v2660 = vsub.f32 %v1688, %v2659
    %v2661 = vand.u32 %v2660, 4294901760
    %v2662 = vsub.f32 %v2660, %v2661
    %v2663 = vand.u32 %v2662, 4294901760
    %2664 = vmatpush.msra.mxu0 %v2663
    %v2665 = vand.u32 %v1687, 4294901760
    %v2666 = vsub.f32 %v1687, %v2665
    %v2667 = vand.u32 %v2666, 4294901760
    %v2668 = vsub.f32 %v2666, %v2667
    %v2669 = vand.u32 %v2668, 4294901760
    %2670 = vmatpush.msra.mxu0 %v2669
    %v2671 = vand.u32 %v1686, 4294901760
    %v2672 = vsub.f32 %v1686, %v2671
    %v2673 = vand.u32 %v2672, 4294901760
    %v2674 = vsub.f32 %v2672, %v2673
    %v2675 = vand.u32 %v2674, 4294901760
    %2676 = vmatpush.msra.mxu0 %v2675
    %v2677 = vand.u32 %v1685, 4294901760
    %v2678 = vsub.f32 %v1685, %v2677
    %v2679 = vand.u32 %v2678, 4294901760
    %v2680 = vsub.f32 %v2678, %v2679
    %v2681 = vand.u32 %v2680, 4294901760
    %2682 = vmatpush.msra.mxu0 %v2681
    %v2683 = vand.u32 %v1684, 4294901760
    %v2684 = vsub.f32 %v1684, %v2683
    %v2685 = vand.u32 %v2684, 4294901760
    %v2686 = vsub.f32 %v2684, %v2685
    %v2687 = vand.u32 %v2686, 4294901760
    %2688 = vmatpush.msra.mxu0 %v2687
    %v2689 = vand.u32 %v1683, 4294901760
    %v2690 = vsub.f32 %v1683, %v2689
    %v2691 = vand.u32 %v2690, 4294901760
    %v2692 = vsub.f32 %v2690, %v2691
    %v2693 = vand.u32 %v2692, 4294901760
    %2694 = vmatpush.msra.mxu0 %v2693
    %v2695 = vand.u32 %v1682, 4294901760
    %v2696 = vsub.f32 %v1682, %v2695
    %v2697 = vand.u32 %v2696, 4294901760
    %v2698 = vsub.f32 %v2696, %v2697
    %v2699 = vand.u32 %v2698, 4294901760
    %2700 = vmatpush.msra.mxu0 %v2699
    %v2701 = vand.u32 %v1681, 4294901760
    %v2702 = vsub.f32 %v1681, %v2701
    %v2703 = vand.u32 %v2702, 4294901760
    %v2704 = vsub.f32 %v2702, %v2703
    %v2705 = vand.u32 %v2704, 4294901760
    %2706 = vmatpush.msra.mxu0 %v2705
    %v2707 = vand.u32 %v1680, 4294901760
    %v2708 = vsub.f32 %v1680, %v2707
    %v2709 = vand.u32 %v2708, 4294901760
    %v2710 = vsub.f32 %v2708, %v2709
    %v2711 = vand.u32 %v2710, 4294901760
    %2712 = vmatpush.msra.mxu0 %v2711
    %v2713 = vand.u32 %v1679, 4294901760
    %v2714 = vsub.f32 %v1679, %v2713
    %v2715 = vand.u32 %v2714, 4294901760
    %v2716 = vsub.f32 %v2714, %v2715
    %v2717 = vand.u32 %v2716, 4294901760
    %2718 = vmatpush.msra.mxu0 %v2717
    %v2719 = vand.u32 %v1645, 4294901760
    %2720 = vmatmul.f32.gmra.mxu0 %v2719
    %v2721 = vpop.f32.mrf.mxu0
    %v2722 = vadd.f32 %v2621, %v2721
    %2723 = vdwg.mxu0
    %v2724 = vand.u32 %v1694, 4294901760
    %v2725 = vsub.f32 %v1694, %v2724
    %2726 = vmatpush.msra.mxu0 %v2725
    %v2727 = vand.u32 %v1693, 4294901760
    %v2728 = vsub.f32 %v1693, %v2727
    %2729 = vmatpush.msra.mxu0 %v2728
    %v2730 = vand.u32 %v1692, 4294901760
    %v2731 = vsub.f32 %v1692, %v2730
    %2732 = vmatpush.msra.mxu0 %v2731
    %v2733 = vand.u32 %v1691, 4294901760
    %v2734 = vsub.f32 %v1691, %v2733
    %2735 = vmatpush.msra.mxu0 %v2734
    %v2736 = vand.u32 %v1690, 4294901760
    %v2737 = vsub.f32 %v1690, %v2736
    %2738 = vmatpush.msra.mxu0 %v2737
    %v2739 = vand.u32 %v1689, 4294901760
    %v2740 = vsub.f32 %v1689, %v2739
    %2741 = vmatpush.msra.mxu0 %v2740
    %v2742 = vand.u32 %v1688, 4294901760
    %v2743 = vsub.f32 %v1688, %v2742
    %2744 = vmatpush.msra.mxu0 %v2743
    %v2745 = vand.u32 %v1687, 4294901760
    %v2746 = vsub.f32 %v1687, %v2745
    %2747 = vmatpush.msra.mxu0 %v2746
    %v2748 = vand.u32 %v1686, 4294901760
    %v2749 = vsub.f32 %v1686, %v2748
    %2750 = vmatpush.msra.mxu0 %v2749
    %v2751 = vand.u32 %v1685, 4294901760
    %v2752 = vsub.f32 %v1685, %v2751
    %2753 = vmatpush.msra.mxu0 %v2752
    %v2754 = vand.u32 %v1684, 4294901760
    %v2755 = vsub.f32 %v1684, %v2754
    %2756 = vmatpush.msra.mxu0 %v2755
    %v2757 = vand.u32 %v1683, 4294901760
    %v2758 = vsub.f32 %v1683, %v2757
    %2759 = vmatpush.msra.mxu0 %v2758
    %v2760 = vand.u32 %v1682, 4294901760
    %v2761 = vsub.f32 %v1682, %v2760
    %2762 = vmatpush.msra.mxu0 %v2761
    %v2763 = vand.u32 %v1681, 4294901760
    %v2764 = vsub.f32 %v1681, %v2763
    %2765 = vmatpush.msra.mxu0 %v2764
    %v2766 = vand.u32 %v1680, 4294901760
    %v2767 = vsub.f32 %v1680, %v2766
    %2768 = vmatpush.msra.mxu0 %v2767
    %v2769 = vand.u32 %v1679, 4294901760
    %v2770 = vsub.f32 %v1679, %v2769
    %2771 = vmatpush.msra.mxu0 %v2770
    %v2772 = vand.u32 %v1645, 4294901760
    %v2773 = vsub.f32 %v1645, %v2772
    %2774 = vmatmul.f32.gmra.mxu0 %v2773
    %v2775 = vpop.f32.mrf.mxu0
    %v2776 = vadd.f32 %v2722, %v2775
    %2777 = vdwg.mxu0
    %v2778 = vand.u32 %v1694, 4294901760
    %2779 = vmatpush.msra.mxu0 %v2778
    %v2780 = vand.u32 %v1693, 4294901760
    %2781 = vmatpush.msra.mxu0 %v2780
    %v2782 = vand.u32 %v1692, 4294901760
    %2783 = vmatpush.msra.mxu0 %v2782
    %v2784 = vand.u32 %v1691, 4294901760
    %2785 = vmatpush.msra.mxu0 %v2784
    %v2786 = vand.u32 %v1690, 4294901760
    %2787 = vmatpush.msra.mxu0 %v2786
    %v2788 = vand.u32 %v1689, 4294901760
    %2789 = vmatpush.msra.mxu0 %v2788
    %v2790 = vand.u32 %v1688, 4294901760
    %2791 = vmatpush.msra.mxu0 %v2790
    %v2792 = vand.u32 %v1687, 4294901760
    %2793 = vmatpush.msra.mxu0 %v2792
    %v2794 = vand.u32 %v1686, 4294901760
    %2795 = vmatpush.msra.mxu0 %v2794
    %v2796 = vand.u32 %v1685, 4294901760
    %2797 = vmatpush.msra.mxu0 %v2796
    %v2798 = vand.u32 %v1684, 4294901760
    %2799 = vmatpush.msra.mxu0 %v2798
    %v2800 = vand.u32 %v1683, 4294901760
    %2801 = vmatpush.msra.mxu0 %v2800
    %v2802 = vand.u32 %v1682, 4294901760
    %2803 = vmatpush.msra.mxu0 %v2802
    %v2804 = vand.u32 %v1681, 4294901760
    %2805 = vmatpush.msra.mxu0 %v2804
    %v2806 = vand.u32 %v1680, 4294901760
    %2807 = vmatpush.msra.mxu0 %v2806
    %v2808 = vand.u32 %v1679, 4294901760
    %2809 = vmatpush.msra.mxu0 %v2808
    %v2810 = vand.u32 %v1645, 4294901760
    %v2811 = vsub.f32 %v1645, %v2810
    %v2812 = vand.u32 %v2811, 4294901760
    %2813 = vmatmul.f32.gmra.mxu0 %v2812
    %v2814 = vpop.f32.mrf.mxu0
    %v2815 = vadd.f32 %v2776, %v2814
    %2816 = vdwg.mxu0
    %v2817 = vand.u32 %v1694, 4294901760
    %v2818 = vsub.f32 %v1694, %v2817
    %v2819 = vand.u32 %v2818, 4294901760
    %2820 = vmatpush.msra.mxu0 %v2819
    %v2821 = vand.u32 %v1693, 4294901760
    %v2822 = vsub.f32 %v1693, %v2821
    %v2823 = vand.u32 %v2822, 4294901760
    %2824 = vmatpush.msra.mxu0 %v2823
    %v2825 = vand.u32 %v1692, 4294901760
    %v2826 = vsub.f32 %v1692, %v2825
    %v2827 = vand.u32 %v2826, 4294901760
    %2828 = vmatpush.msra.mxu0 %v2827
    %v2829 = vand.u32 %v1691, 4294901760
    %v2830 = vsub.f32 %v1691, %v2829
    %v2831 = vand.u32 %v2830, 4294901760
    %2832 = vmatpush.msra.mxu0 %v2831
    %v2833 = vand.u32 %v1690, 4294901760
    %v2834 = vsub.f32 %v1690, %v2833
    %v2835 = vand.u32 %v2834, 4294901760
    %2836 = vmatpush.msra.mxu0 %v2835
    %v2837 = vand.u32 %v1689, 4294901760
    %v2838 = vsub.f32 %v1689, %v2837
    %v2839 = vand.u32 %v2838, 4294901760
    %2840 = vmatpush.msra.mxu0 %v2839
    %v2841 = vand.u32 %v1688, 4294901760
    %v2842 = vsub.f32 %v1688, %v2841
    %v2843 = vand.u32 %v2842, 4294901760
    %2844 = vmatpush.msra.mxu0 %v2843
    %v2845 = vand.u32 %v1687, 4294901760
    %v2846 = vsub.f32 %v1687, %v2845
    %v2847 = vand.u32 %v2846, 4294901760
    %2848 = vmatpush.msra.mxu0 %v2847
    %v2849 = vand.u32 %v1686, 4294901760
    %v2850 = vsub.f32 %v1686, %v2849
    %v2851 = vand.u32 %v2850, 4294901760
    %2852 = vmatpush.msra.mxu0 %v2851
    %v2853 = vand.u32 %v1685, 4294901760
    %v2854 = vsub.f32 %v1685, %v2853
    %v2855 = vand.u32 %v2854, 4294901760
    %2856 = vmatpush.msra.mxu0 %v2855
    %v2857 = vand.u32 %v1684, 4294901760
    %v2858 = vsub.f32 %v1684, %v2857
    %v2859 = vand.u32 %v2858, 4294901760
    %2860 = vmatpush.msra.mxu0 %v2859
    %v2861 = vand.u32 %v1683, 4294901760
    %v2862 = vsub.f32 %v1683, %v2861
    %v2863 = vand.u32 %v2862, 4294901760
    %2864 = vmatpush.msra.mxu0 %v2863
    %v2865 = vand.u32 %v1682, 4294901760
    %v2866 = vsub.f32 %v1682, %v2865
    %v2867 = vand.u32 %v2866, 4294901760
    %2868 = vmatpush.msra.mxu0 %v2867
    %v2869 = vand.u32 %v1681, 4294901760
    %v2870 = vsub.f32 %v1681, %v2869
    %v2871 = vand.u32 %v2870, 4294901760
    %2872 = vmatpush.msra.mxu0 %v2871
    %v2873 = vand.u32 %v1680, 4294901760
    %v2874 = vsub.f32 %v1680, %v2873
    %v2875 = vand.u32 %v2874, 4294901760
    %2876 = vmatpush.msra.mxu0 %v2875
    %v2877 = vand.u32 %v1679, 4294901760
    %v2878 = vsub.f32 %v1679, %v2877
    %v2879 = vand.u32 %v2878, 4294901760
    %2880 = vmatpush.msra.mxu0 %v2879
    %v2881 = vand.u32 %v1645, 4294901760
    %2882 = vmatmul.f32.gmra.mxu0 %v2881
    %v2883 = vpop.f32.mrf.mxu0
    %v2884 = vadd.f32 %v2815, %v2883
    %2885 = vdwg.mxu0
    %v2886 = vand.u32 %v1694, 4294901760
    %2887 = vmatpush.msra.mxu0 %v2886
    %v2888 = vand.u32 %v1693, 4294901760
    %2889 = vmatpush.msra.mxu0 %v2888
    %v2890 = vand.u32 %v1692, 4294901760
    %2891 = vmatpush.msra.mxu0 %v2890
    %v2892 = vand.u32 %v1691, 4294901760
    %2893 = vmatpush.msra.mxu0 %v2892
    %v2894 = vand.u32 %v1690, 4294901760
    %2895 = vmatpush.msra.mxu0 %v2894
    %v2896 = vand.u32 %v1689, 4294901760
    %2897 = vmatpush.msra.mxu0 %v2896
    %v2898 = vand.u32 %v1688, 4294901760
    %2899 = vmatpush.msra.mxu0 %v2898
    %v2900 = vand.u32 %v1687, 4294901760
    %2901 = vmatpush.msra.mxu0 %v2900
    %v2902 = vand.u32 %v1686, 4294901760
    %2903 = vmatpush.msra.mxu0 %v2902
    %v2904 = vand.u32 %v1685, 4294901760
    %2905 = vmatpush.msra.mxu0 %v2904
    %v2906 = vand.u32 %v1684, 4294901760
    %2907 = vmatpush.msra.mxu0 %v2906
    %v2908 = vand.u32 %v1683, 4294901760
    %2909 = vmatpush.msra.mxu0 %v2908
    %v2910 = vand.u32 %v1682, 4294901760
    %2911 = vmatpush.msra.mxu0 %v2910
    %v2912 = vand.u32 %v1681, 4294901760
    %2913 = vmatpush.msra.mxu0 %v2912
    %v2914 = vand.u32 %v1680, 4294901760
    %2915 = vmatpush.msra.mxu0 %v2914
    %v2916 = vand.u32 %v1679, 4294901760
    %2917 = vmatpush.msra.mxu0 %v2916
    %v2918 = vand.u32 %v1645, 4294901760
    %2919 = vmatmul.f32.gmra.mxu0 %v2918
    %v2920 = vpop.f32.mrf.mxu0
    %v2921 = vadd.f32 %v2884, %v2920
    %2922 = vdwg.mxu0
    %v2923 = vand.u32 %v1710, 4294901760
    %2924 = vmatpush.msra.mxu0 %v2923
    %v2925 = vand.u32 %v1709, 4294901760
    %2926 = vmatpush.msra.mxu0 %v2925
    %v2927 = vand.u32 %v1708, 4294901760
    %2928 = vmatpush.msra.mxu0 %v2927
    %v2929 = vand.u32 %v1707, 4294901760
    %2930 = vmatpush.msra.mxu0 %v2929
    %v2931 = vand.u32 %v1706, 4294901760
    %2932 = vmatpush.msra.mxu0 %v2931
    %v2933 = vand.u32 %v1705, 4294901760
    %2934 = vmatpush.msra.mxu0 %v2933
    %v2935 = vand.u32 %v1704, 4294901760
    %2936 = vmatpush.msra.mxu0 %v2935
    %v2937 = vand.u32 %v1703, 4294901760
    %2938 = vmatpush.msra.mxu0 %v2937
    %v2939 = vand.u32 %v1702, 4294901760
    %2940 = vmatpush.msra.mxu0 %v2939
    %v2941 = vand.u32 %v1701, 4294901760
    %2942 = vmatpush.msra.mxu0 %v2941
    %v2943 = vand.u32 %v1700, 4294901760
    %2944 = vmatpush.msra.mxu0 %v2943
    %v2945 = vand.u32 %v1699, 4294901760
    %2946 = vmatpush.msra.mxu0 %v2945
    %v2947 = vand.u32 %v1698, 4294901760
    %2948 = vmatpush.msra.mxu0 %v2947
    %v2949 = vand.u32 %v1697, 4294901760
    %2950 = vmatpush.msra.mxu0 %v2949
    %v2951 = vand.u32 %v1696, 4294901760
    %2952 = vmatpush.msra.mxu0 %v2951
    %v2953 = vand.u32 %v1695, 4294901760
    %2954 = vmatpush.msra.mxu0 %v2953
    %v2955 = vand.u32 %v1646, 4294901760
    %v2956 = vsub.f32 %v1646, %v2955
    %v2957 = vand.u32 %v2956, 4294901760
    %v2958 = vsub.f32 %v2956, %v2957
    %v2959 = vand.u32 %v2958, 4294901760
    %2960 = vmatmul.f32.gmra.mxu0 %v2959
    %v2961 = vpop.f32.mrf.mxu0
    %v2962 = vadd.f32 %v2921, %v2961
    %2963 = vdwg.mxu0
    %v2964 = vand.u32 %v1710, 4294901760
    %v2965 = vsub.f32 %v1710, %v2964
    %v2966 = vand.u32 %v2965, 4294901760
    %v2967 = vsub.f32 %v2965, %v2966
    %v2968 = vand.u32 %v2967, 4294901760
    %2969 = vmatpush.msra.mxu0 %v2968
    %v2970 = vand.u32 %v1709, 4294901760
    %v2971 = vsub.f32 %v1709, %v2970
    %v2972 = vand.u32 %v2971, 4294901760
    %v2973 = vsub.f32 %v2971, %v2972
    %v2974 = vand.u32 %v2973, 4294901760
    %2975 = vmatpush.msra.mxu0 %v2974
    %v2976 = vand.u32 %v1708, 4294901760
    %v2977 = vsub.f32 %v1708, %v2976
    %v2978 = vand.u32 %v2977, 4294901760
    %v2979 = vsub.f32 %v2977, %v2978
    %v2980 = vand.u32 %v2979, 4294901760
    %2981 = vmatpush.msra.mxu0 %v2980
    %v2982 = vand.u32 %v1707, 4294901760
    %v2983 = vsub.f32 %v1707, %v2982
    %v2984 = vand.u32 %v2983, 4294901760
    %v2985 = vsub.f32 %v2983, %v2984
    %v2986 = vand.u32 %v2985, 4294901760
    %2987 = vmatpush.msra.mxu0 %v2986
    %v2988 = vand.u32 %v1706, 4294901760
    %v2989 = vsub.f32 %v1706, %v2988
    %v2990 = vand.u32 %v2989, 4294901760
    %v2991 = vsub.f32 %v2989, %v2990
    %v2992 = vand.u32 %v2991, 4294901760
    %2993 = vmatpush.msra.mxu0 %v2992
    %v2994 = vand.u32 %v1705, 4294901760
    %v2995 = vsub.f32 %v1705, %v2994
    %v2996 = vand.u32 %v2995, 4294901760
    %v2997 = vsub.f32 %v2995, %v2996
    %v2998 = vand.u32 %v2997, 4294901760
    %2999 = vmatpush.msra.mxu0 %v2998
    %v3000 = vand.u32 %v1704, 4294901760
    %v3001 = vsub.f32 %v1704, %v3000
    %v3002 = vand.u32 %v3001, 4294901760
    %v3003 = vsub.f32 %v3001, %v3002
    %v3004 = vand.u32 %v3003, 4294901760
    %3005 = vmatpush.msra.mxu0 %v3004
    %v3006 = vand.u32 %v1703, 4294901760
    %v3007 = vsub.f32 %v1703, %v3006
    %v3008 = vand.u32 %v3007, 4294901760
    %v3009 = vsub.f32 %v3007, %v3008
    %v3010 = vand.u32 %v3009, 4294901760
    %3011 = vmatpush.msra.mxu0 %v3010
    %v3012 = vand.u32 %v1702, 4294901760
    %v3013 = vsub.f32 %v1702, %v3012
    %v3014 = vand.u32 %v3013, 4294901760
    %v3015 = vsub.f32 %v3013, %v3014
    %v3016 = vand.u32 %v3015, 4294901760
    %3017 = vmatpush.msra.mxu0 %v3016
    %v3018 = vand.u32 %v1701, 4294901760
    %v3019 = vsub.f32 %v1701, %v3018
    %v3020 = vand.u32 %v3019, 4294901760
    %v3021 = vsub.f32 %v3019, %v3020
    %v3022 = vand.u32 %v3021, 4294901760
    %3023 = vmatpush.msra.mxu0 %v3022
    %v3024 = vand.u32 %v1700, 4294901760
    %v3025 = vsub.f32 %v1700, %v3024
    %v3026 = vand.u32 %v3025, 4294901760
    %v3027 = vsub.f32 %v3025, %v3026
    %v3028 = vand.u32 %v3027, 4294901760
    %3029 = vmatpush.msra.mxu0 %v3028
    %v3030 = vand.u32 %v1699, 4294901760
    %v3031 = vsub.f32 %v1699, %v3030
    %v3032 = vand.u32 %v3031, 4294901760
    %v3033 = vsub.f32 %v3031, %v3032
    %v3034 = vand.u32 %v3033, 4294901760
    %3035 = vmatpush.msra.mxu0 %v3034
    %v3036 = vand.u32 %v1698, 4294901760
    %v3037 = vsub.f32 %v1698, %v3036
    %v3038 = vand.u32 %v3037, 4294901760
    %v3039 = vsub.f32 %v3037, %v3038
    %v3040 = vand.u32 %v3039, 4294901760
    %3041 = vmatpush.msra.mxu0 %v3040
    %v3042 = vand.u32 %v1697, 4294901760
    %v3043 = vsub.f32 %v1697, %v3042
    %v3044 = vand.u32 %v3043, 4294901760
    %v3045 = vsub.f32 %v3043, %v3044
    %v3046 = vand.u32 %v3045, 4294901760
    %3047 = vmatpush.msra.mxu0 %v3046
    %v3048 = vand.u32 %v1696, 4294901760
    %v3049 = vsub.f32 %v1696, %v3048
    %v3050 = vand.u32 %v3049, 4294901760
    %v3051 = vsub.f32 %v3049, %v3050
    %v3052 = vand.u32 %v3051, 4294901760
    %3053 = vmatpush.msra.mxu0 %v3052
    %v3054 = vand.u32 %v1695, 4294901760
    %v3055 = vsub.f32 %v1695, %v3054
    %v3056 = vand.u32 %v3055, 4294901760
    %v3057 = vsub.f32 %v3055, %v3056
    %v3058 = vand.u32 %v3057, 4294901760
    %3059 = vmatpush.msra.mxu0 %v3058
    %v3060 = vand.u32 %v1646, 4294901760
    %3061 = vmatmul.f32.gmra.mxu0 %v3060
    %v3062 = vpop.f32.mrf.mxu0
    %v3063 = vadd.f32 %v2962, %v3062
    %3064 = vdwg.mxu0
    %v3065 = vand.u32 %v1710, 4294901760
    %v3066 = vsub.f32 %v1710, %v3065
    %3067 = vmatpush.msra.mxu0 %v3066
    %v3068 = vand.u32 %v1709, 4294901760
    %v3069 = vsub.f32 %v1709, %v3068
    %3070 = vmatpush.msra.mxu0 %v3069
    %v3071 = vand.u32 %v1708, 4294901760
    %v3072 = vsub.f32 %v1708, %v3071
    %3073 = vmatpush.msra.mxu0 %v3072
    %v3074 = vand.u32 %v1707, 4294901760
    %v3075 = vsub.f32 %v1707, %v3074
    %3076 = vmatpush.msra.mxu0 %v3075
    %v3077 = vand.u32 %v1706, 4294901760
    %v3078 = vsub.f32 %v1706, %v3077
    %3079 = vmatpush.msra.mxu0 %v3078
    %v3080 = vand.u32 %v1705, 4294901760
    %v3081 = vsub.f32 %v1705, %v3080
    %3082 = vmatpush.msra.mxu0 %v3081
    %v3083 = vand.u32 %v1704, 4294901760
    %v3084 = vsub.f32 %v1704, %v3083
    %3085 = vmatpush.msra.mxu0 %v3084
    %v3086 = vand.u32 %v1703, 4294901760
    %v3087 = vsub.f32 %v1703, %v3086
    %3088 = vmatpush.msra.mxu0 %v3087
    %v3089 = vand.u32 %v1702, 4294901760
    %v3090 = vsub.f32 %v1702, %v3089
    %3091 = vmatpush.msra.mxu0 %v3090
    %v3092 = vand.u32 %v1701, 4294901760
    %v3093 = vsub.f32 %v1701, %v3092
    %3094 = vmatpush.msra.mxu0 %v3093
    %v3095 = vand.u32 %v1700, 4294901760
    %v3096 = vsub.f32 %v1700, %v3095
    %3097 = vmatpush.msra.mxu0 %v3096
    %v3098 = vand.u32 %v1699, 4294901760
    %v3099 = vsub.f32 %v1699, %v3098
    %3100 = vmatpush.msra.mxu0 %v3099
    %v3101 = vand.u32 %v1698, 4294901760
    %v3102 = vsub.f32 %v1698, %v3101
    %3103 = vmatpush.msra.mxu0 %v3102
    %v3104 = vand.u32 %v1697, 4294901760
    %v3105 = vsub.f32 %v1697, %v3104
    %3106 = vmatpush.msra.mxu0 %v3105
    %v3107 = vand.u32 %v1696, 4294901760
    %v3108 = vsub.f32 %v1696, %v3107
    %3109 = vmatpush.msra.mxu0 %v3108
    %v3110 = vand.u32 %v1695, 4294901760
    %v3111 = vsub.f32 %v1695, %v3110
    %3112 = vmatpush.msra.mxu0 %v3111
    %v3113 = vand.u32 %v1646, 4294901760
    %v3114 = vsub.f32 %v1646, %v3113
    %3115 = vmatmul.f32.gmra.mxu0 %v3114
    %v3116 = vpop.f32.mrf.mxu0
    %v3117 = vadd.f32 %v3063, %v3116
    %3118 = vdwg.mxu0
    %v3119 = vand.u32 %v1710, 4294901760
    %3120 = vmatpush.msra.mxu0 %v3119
    %v3121 = vand.u32 %v1709, 4294901760
    %3122 = vmatpush.msra.mxu0 %v3121
    %v3123 = vand.u32 %v1708, 4294901760
    %3124 = vmatpush.msra.mxu0 %v3123
    %v3125 = vand.u32 %v1707, 4294901760
    %3126 = vmatpush.msra.mxu0 %v3125
    %v3127 = vand.u32 %v1706, 4294901760
    %3128 = vmatpush.msra.mxu0 %v3127
    %v3129 = vand.u32 %v1705, 4294901760
    %3130 = vmatpush.msra.mxu0 %v3129
    %v3131 = vand.u32 %v1704, 4294901760
    %3132 = vmatpush.msra.mxu0 %v3131
    %v3133 = vand.u32 %v1703, 4294901760
    %3134 = vmatpush.msra.mxu0 %v3133
    %v3135 = vand.u32 %v1702, 4294901760
    %3136 = vmatpush.msra.mxu0 %v3135
    %v3137 = vand.u32 %v1701, 4294901760
    %3138 = vmatpush.msra.mxu0 %v3137
    %v3139 = vand.u32 %v1700, 4294901760
    %3140 = vmatpush.msra.mxu0 %v3139
    %v3141 = vand.u32 %v1699, 4294901760
    %3142 = vmatpush.msra.mxu0 %v3141
    %v3143 = vand.u32 %v1698, 4294901760
    %3144 = vmatpush.msra.mxu0 %v3143
    %v3145 = vand.u32 %v1697, 4294901760
    %3146 = vmatpush.msra.mxu0 %v3145
    %v3147 = vand.u32 %v1696, 4294901760
    %3148 = vmatpush.msra.mxu0 %v3147
    %v3149 = vand.u32 %v1695, 4294901760
    %3150 = vmatpush.msra.mxu0 %v3149
    %v3151 = vand.u32 %v1646, 4294901760
    %v3152 = vsub.f32 %v1646, %v3151
    %v3153 = vand.u32 %v3152, 4294901760
    %3154 = vmatmul.f32.gmra.mxu0 %v3153
    %v3155 = vpop.f32.mrf.mxu0
    %v3156 = vadd.f32 %v3117, %v3155
    %3157 = vdwg.mxu0
    %v3158 = vand.u32 %v1710, 4294901760
    %v3159 = vsub.f32 %v1710, %v3158
    %v3160 = vand.u32 %v3159, 4294901760
    %3161 = vmatpush.msra.mxu0 %v3160
    %v3162 = vand.u32 %v1709, 4294901760
    %v3163 = vsub.f32 %v1709, %v3162
    %v3164 = vand.u32 %v3163, 4294901760
    %3165 = vmatpush.msra.mxu0 %v3164
    %v3166 = vand.u32 %v1708, 4294901760
    %v3167 = vsub.f32 %v1708, %v3166
    %v3168 = vand.u32 %v3167, 4294901760
    %3169 = vmatpush.msra.mxu0 %v3168
    %v3170 = vand.u32 %v1707, 4294901760
    %v3171 = vsub.f32 %v1707, %v3170
    %v3172 = vand.u32 %v3171, 4294901760
    %3173 = vmatpush.msra.mxu0 %v3172
    %v3174 = vand.u32 %v1706, 4294901760
    %v3175 = vsub.f32 %v1706, %v3174
    %v3176 = vand.u32 %v3175, 4294901760
    %3177 = vmatpush.msra.mxu0 %v3176
    %v3178 = vand.u32 %v1705, 4294901760
    %v3179 = vsub.f32 %v1705, %v3178
    %v3180 = vand.u32 %v3179, 4294901760
    %3181 = vmatpush.msra.mxu0 %v3180
    %v3182 = vand.u32 %v1704, 4294901760
    %v3183 = vsub.f32 %v1704, %v3182
    %v3184 = vand.u32 %v3183, 4294901760
    %3185 = vmatpush.msra.mxu0 %v3184
    %v3186 = vand.u32 %v1703, 4294901760
    %v3187 = vsub.f32 %v1703, %v3186
    %v3188 = vand.u32 %v3187, 4294901760
    %3189 = vmatpush.msra.mxu0 %v3188
    %v3190 = vand.u32 %v1702, 4294901760
    %v3191 = vsub.f32 %v1702, %v3190
    %v3192 = vand.u32 %v3191, 4294901760
    %3193 = vmatpush.msra.mxu0 %v3192
    %v3194 = vand.u32 %v1701, 4294901760
    %v3195 = vsub.f32 %v1701, %v3194
    %v3196 = vand.u32 %v3195, 4294901760
    %3197 = vmatpush.msra.mxu0 %v3196
    %v3198 = vand.u32 %v1700, 4294901760
    %v3199 = vsub.f32 %v1700, %v3198
    %v3200 = vand.u32 %v3199, 4294901760
    %3201 = vmatpush.msra.mxu0 %v3200
    %v3202 = vand.u32 %v1699, 4294901760
    %v3203 = vsub.f32 %v1699, %v3202
    %v3204 = vand.u32 %v3203, 4294901760
    %3205 = vmatpush.msra.mxu0 %v3204
    %v3206 = vand.u32 %v1698, 4294901760
    %v3207 = vsub.f32 %v1698, %v3206
    %v3208 = vand.u32 %v3207, 4294901760
    %3209 = vmatpush.msra.mxu0 %v3208
    %v3210 = vand.u32 %v1697, 4294901760
    %v3211 = vsub.f32 %v1697, %v3210
    %v3212 = vand.u32 %v3211, 4294901760
    %3213 = vmatpush.msra.mxu0 %v3212
    %v3214 = vand.u32 %v1696, 4294901760
    %v3215 = vsub.f32 %v1696, %v3214
    %v3216 = vand.u32 %v3215, 4294901760
    %3217 = vmatpush.msra.mxu0 %v3216
    %v3218 = vand.u32 %v1695, 4294901760
    %v3219 = vsub.f32 %v1695, %v3218
    %v3220 = vand.u32 %v3219, 4294901760
    %3221 = vmatpush.msra.mxu0 %v3220
    %v3222 = vand.u32 %v1646, 4294901760
    %3223 = vmatmul.f32.gmra.mxu0 %v3222
    %v3224 = vpop.f32.mrf.mxu0
    %v3225 = vadd.f32 %v3156, %v3224
    %3226 = vdwg.mxu0
    %v3227 = vand.u32 %v1710, 4294901760
    %3228 = vmatpush.msra.mxu0 %v3227
    %v3229 = vand.u32 %v1709, 4294901760
    %3230 = vmatpush.msra.mxu0 %v3229
    %v3231 = vand.u32 %v1708, 4294901760
    %3232 = vmatpush.msra.mxu0 %v3231
    %v3233 = vand.u32 %v1707, 4294901760
    %3234 = vmatpush.msra.mxu0 %v3233
    %v3235 = vand.u32 %v1706, 4294901760
    %3236 = vmatpush.msra.mxu0 %v3235
    %v3237 = vand.u32 %v1705, 4294901760
    %3238 = vmatpush.msra.mxu0 %v3237
    %v3239 = vand.u32 %v1704, 4294901760
    %3240 = vmatpush.msra.mxu0 %v3239
    %v3241 = vand.u32 %v1703, 4294901760
    %3242 = vmatpush.msra.mxu0 %v3241
    %v3243 = vand.u32 %v1702, 4294901760
    %3244 = vmatpush.msra.mxu0 %v3243
    %v3245 = vand.u32 %v1701, 4294901760
    %3246 = vmatpush.msra.mxu0 %v3245
    %v3247 = vand.u32 %v1700, 4294901760
    %3248 = vmatpush.msra.mxu0 %v3247
    %v3249 = vand.u32 %v1699, 4294901760
    %3250 = vmatpush.msra.mxu0 %v3249
    %v3251 = vand.u32 %v1698, 4294901760
    %3252 = vmatpush.msra.mxu0 %v3251
    %v3253 = vand.u32 %v1697, 4294901760
    %3254 = vmatpush.msra.mxu0 %v3253
    %v3255 = vand.u32 %v1696, 4294901760
    %3256 = vmatpush.msra.mxu0 %v3255
    %v3257 = vand.u32 %v1695, 4294901760
    %3258 = vmatpush.msra.mxu0 %v3257
    %v3259 = vand.u32 %v1646, 4294901760
    %3260 = vmatmul.f32.gmra.mxu0 %v3259
    %v3261 = vpop.f32.mrf.mxu0
    %v3262 = vadd.f32 %v3225, %v3261
    %3263 = vdwg.mxu0
    %v3264 = vadd.f32 %v3262, %v970
    %v3265 = vld [vmem:[%s4 + $0x220] sm:$0x1]
    %v3266 = vperm.slane %v3265, 0
    %v3267 = vadd.f32 %v3264, %v3266
    %v3268 = vtanh.pop %v3267
    %vm3269 = vcmask 130048
    %3270 = vst.msk [vmem:[#allocation2] sm:$0xff] %vm3269, %v3268
    // Predicated region
    $region22: #{neural_tensor_layer.1} parent=1 // pred_check
      _
    $region23: #{neural_tensor_layer.1} parent=1 // pred_check_branch
      %3272 = sbr.rel (0) target = $region25
    $region24: #{neural_tensor_layer.1} parent=1 // pred_region
      %3274 = vsyncadd [#allocation3], 0
      %s3276 = sshll.u32 [#allocation2], 4
      %s3277 = int_to_ptr.vmem [resolvable:$true] %s3276
      %s3278 = sshll.u32 %s5, 4
      %s3279 = int_to_ptr.hbm [resolvable:$true] %s3278
      %3281 = dma.vmem_to_hbm [thread:$0]  %s3277, 128, %s3279, [#allocation3]
    $region25: #{neural_tensor_layer.1} parent=1 // pred_fallthru
      _
    // Predicated region
    $region26: #{neural_tensor_layer.1} parent=1 // pred_check
      _
    $region27: #{neural_tensor_layer.1} parent=1 // pred_check_branch
      %3283 = sbr.rel (0) target = $region29
    $region28: #{neural_tensor_layer.1} parent=1 // pred_region
      %3285 = dma.done [#allocation3], 128
    $region29: #{neural_tensor_layer.1} parent=1 // pred_fallthru
      _
    %3286 = vsyncpa [#allocation3], 1

</llo_original>
